<compile_context>
chip_gen: v7x
topology: tpu7x:2x2x1
jax: 0.10.0
libtpu: 0.0.40
codegen_flags: <defaults>
</compile_context>

<pallas_src>
import numpy as np
import jax
import jax.numpy as jnp
from jax import lax
from jax.experimental import pallas as pl
from jax.experimental.pallas import tpu as pltpu


_FUSED_VMEM_LIMIT = 40 << 20   # take the single-call (frame-resident) path below this
_TILED_TARGET = 20 << 20       # per-grid-step working-set target for the strip path


# ----------------------------------------------------------------------------
# Reflect-padded 5-tap box sum along one axis of a 2-D array:
#   out[i] = sum_{d=-2..2} v[reflect(i+d)]   (PyTorch 'reflect' rule; needs n >= 3)
# 4 circular rolls (XLU slot) + boundary corrections on the first/last two rows or
# columns (VPU selects).  No (n,n) fold matrix, no MXU, O(n) VMEM.
# ----------------------------------------------------------------------------
def _reflect_box5_1d(m, axis):
    n = m.shape[axis]
    s = m
    for d in (1, 2):
        s = s + pltpu.roll(m, shift=d % n, axis=axis)
        s = s + pltpu.roll(m, shift=(-d) % n, axis=axis)

    def pick(j):
        sl = [slice(None)] * m.ndim
        sl[axis] = slice(j, j + 1)
        return m[tuple(sl)]

    idx = lax.broadcasted_iota(jnp.int32, m.shape, axis)
    # (reflected value) - (what the circular roll brought in), per boundary index.
    s = s + jnp.where(idx == 0, pick(1) + pick(2) - pick(n - 1) - pick(n - 2), 0.0)
    s = s + jnp.where(idx == 1, pick(1) - pick(n - 1), 0.0)
    s = s + jnp.where(idx == n - 2, pick(n - 2) - pick(0), 0.0)
    s = s + jnp.where(idx == n - 1, pick(n - 2) + pick(n - 3) - pick(0) - pick(1), 0.0)
    return s


def _box5(m):
    """Reflect-padded 5x5 ones/25 filter of a 2-D matrix (separable)."""
    return _reflect_box5_1d(_reflect_box5_1d(m, 0), 1) * (1.0 / 25.0)


def _residuals(m1, m2_raw):
    """r1 (F,H), r2 (F,W) from m1 = mean_w x and m2_raw = mean_h x of the ORIGINAL x."""
    r1 = m1 - _box5(m1)
    # mean_h of the row-corrected frame == mean_h(x) - mean_h(r1)   (exact algebra)
    m2 = m2_raw - jnp.mean(r1, axis=1, keepdims=True)
    r2 = m2 - _box5(m2)
    return r1, r2


# ----------------------------------------------------------------------------
# Path 1: small frames -- single fused kernel, whole frame resident in VMEM.
# ----------------------------------------------------------------------------
def _fused_kernel(x_ref, o_ref):
    # x_ref: (1, F, 1, H, W) selected channel; o_ref: (1, F, C, H, W)
    h = x_ref.shape[3]
    w = x_ref.shape[4]
    x = x_ref[0, :, 0, :, :].astype(jnp.float32)            # (F, H, W)
    m1 = jnp.sum(x, axis=2) * (1.0 / w)                     # (F, H)  mean over W
    m2_raw = jnp.sum(x, axis=1) * (1.0 / h)                 # (F, W)  mean over H
    r1, r2 = _residuals(m1, m2_raw)
    y = x - r1[:, :, None] - r2[:, None, :]
    for c in range(o_ref.shape[2]):                         # channel replication in-kernel
        o_ref[0, :, c, :, :] = y.astype(o_ref.dtype)


def _fused_vmem_bytes(F_, C, H, W, itemsize):
    frame = F_ * H * W
    return (2 * frame * itemsize            # double-buffered input block
            + 2 * C * frame * itemsize      # double-buffered output block
            + 3 * frame * 4                 # in-kernel f32 temporaries
            + (2 << 20))


def _lnpp_fused(x, c_sel, vmem_bytes):
    N, F_, C, H, W = x.shape
    return pl.pallas_call(
        _fused_kernel,
        out_shape=jax.ShapeDtypeStruct((N, F_, C, H, W), x.dtype),
        grid=(N,),
        in_specs=[pl.BlockSpec((1, F_, 1, H, W), lambda n: (n, 0, c_sel, 0, 0))],
        out_specs=pl.BlockSpec((1, F_, C, H, W), lambda n: (n, 0, 0, 0, 0)),
        compiler_params=pltpu.CompilerParams(
            dimension_semantics=("parallel",),
            vmem_limit_bytes=int(min(max(vmem_bytes, 32 << 20), 100 << 20)),
        ),
    )(x)


# ----------------------------------------------------------------------------
# Path 2: large frames -- H-strip-tiled reduce pass + apply pass.
# ----------------------------------------------------------------------------
def _reduce_kernel(x_ref, m1_ref, msum_ref):
    # x_ref: (1, F, 1, TH, W); m1_ref: (1, F, H) and msum_ref: (1, F, W) are revisited
    # across the strip axis (accumulator pattern).
    s = pl.program_id(1)
    th = x_ref.shape[3]
    w = x_ref.shape[4]
    x = x_ref[0, :, 0, :, :].astype(jnp.float32)            # (F, TH, W)

    start = pl.multiple_of(s * th, th)
    m1_ref[0, :, pl.ds(start, th)] = jnp.sum(x, axis=2) * (1.0 / w)

    @pl.when(s == 0)
    def _():
        msum_ref[...] = jnp.zeros_like(msum_ref)

    msum_ref[0, :, :] += jnp.sum(x, axis=1)


def _apply_kernel(x_ref, m1_ref, msum_ref, o_ref, r1_scr):
    # Recomputing the tiny residual matrices per strip is far cheaper than another pass
    # over the frame; r1 goes through VMEM scratch so the strip slice is a plain ref read.
    s = pl.program_id(1)
    th = x_ref.shape[3]
    h = m1_ref.shape[2]
    m1 = m1_ref[0, :, :]                                    # (F, H)
    m2_raw = msum_ref[0, :, :] * (1.0 / h)                  # (F, W)
    r1, r2 = _residuals(m1, m2_raw)
    r1_scr[...] = r1
    start = pl.multiple_of(s * th, th)
    r1s = r1_scr[:, pl.ds(start, th)]                       # (F, TH)

    x = x_ref[0, :, 0, :, :].astype(jnp.float32)            # (F, TH, W)
    y = x - r1s[:, :, None] - r2[:, None, :]
    for c in range(o_ref.shape[2]):
        o_ref[0, :, c, :, :] = y.astype(o_ref.dtype)


def _strip_vmem_bytes(F_, C, TH, H, W, itemsize):
    strip = F_ * TH * W
    small = 6 * F_ * (H + W) * 4                            # m1/msum blocks + r1 scratch
    return (2 * strip * itemsize + 2 * C * strip * itemsize + 3 * strip * 4
            + small + (2 << 20))


def _pick_tile_h(F_, C, H, W, itemsize):
    best = None
    for t in range(8, H + 1, 8):                            # strips must divide H, mult of 8
        if H % t == 0 and _strip_vmem_bytes(F_, C, t, H, W, itemsize) <= _TILED_TARGET:
            best = t                                        # keep the largest strip that fits
    return best


def _lnpp_tiled(x, c_sel, tile_h):
    N, F_, C, H, W = x.shape
    S = H // tile_h
    vmem = int(min(max(_strip_vmem_bytes(F_, C, tile_h, H, W, x.dtype.itemsize), 32 << 20),
                   64 << 20))

    m1, msum = pl.pallas_call(
        _reduce_kernel,
        out_shape=(jax.ShapeDtypeStruct((N, F_, H), jnp.float32),
                   jax.ShapeDtypeStruct((N, F_, W), jnp.float32)),
        grid=(N, S),
        in_specs=[pl.BlockSpec((1, F_, 1, tile_h, W), lambda n, s: (n, 0, c_sel, s, 0))],
        out_specs=(pl.BlockSpec((1, F_, H), lambda n, s: (n, 0, 0)),
                   pl.BlockSpec((1, F_, W), lambda n, s: (n, 0, 0))),
        compiler_params=pltpu.CompilerParams(
            dimension_semantics=("parallel", "arbitrary"),
            vmem_limit_bytes=vmem,
        ),
    )(x)

    return pl.pallas_call(
        _apply_kernel,
        out_shape=jax.ShapeDtypeStruct((N, F_, C, H, W), x.dtype),
        grid=(N, S),
        in_specs=[pl.BlockSpec((1, F_, 1, tile_h, W), lambda n, s: (n, 0, c_sel, s, 0)),
                  pl.BlockSpec((1, F_, H), lambda n, s: (n, 0, 0)),
                  pl.BlockSpec((1, F_, W), lambda n, s: (n, 0, 0))],
        out_specs=pl.BlockSpec((1, F_, C, tile_h, W), lambda n, s: (n, 0, 0, s, 0)),
        scratch_shapes=[pltpu.VMEM((F_, H), jnp.float32)],
        compiler_params=pltpu.CompilerParams(
            dimension_semantics=("parallel", "parallel"),
            vmem_limit_bytes=vmem,
        ),
    )(x, m1, msum)


# ----------------------------------------------------------------------------
# Module-level forward
# ----------------------------------------------------------------------------
def lnpp_rowcol_forward(x, *, tile_h=None, force_tiled=False):
    N, F_, C, H, W = x.shape
    if C not in (1, 3):
        raise ValueError("C must be 1 or 3")
    if F_ < 3 or H < 3 or W < 3:
        raise ValueError("reflect padding of 2 requires F, H, W >= 3")
    c_sel = 1 if C == 3 else 0                 # original module keeps the middle channel
    itemsize = x.dtype.itemsize

    fused_need = _fused_vmem_bytes(F_, C, H, W, itemsize)
    if not force_tiled and fused_need <= _FUSED_VMEM_LIMIT:
        return _lnpp_fused(x, c_sel, fused_need)

    th = tile_h if tile_h is not None else _pick_tile_h(F_, C, H, W, itemsize)
    if th is None or th % 8 or H % th:
        # TODO(synk): H has no multiple-of-8 divisor that fits the strip budget; fall back
        # to whole-frame residency with a raised VMEM limit instead of ragged edge strips.
        return _lnpp_fused(x, c_sel, fused_need)
    return _lnpp_tiled(x, c_sel, th)


# ----------------------------------------------------------------------------
# Pure-numpy reference (mirrors the PyTorch module exactly, two-stage form)
# ----------------------------------------------------------------------------
def _reference_forward_np(x):
    x = np.asarray(x, dtype=np.float32)
    N, F_, C, H, W = x.shape
    xc = x[:, :, 1] if C == 3 else x[:, :, 0]

    def box5(m):  # reflect-padded 5x5 box filter over both axes of a 2D array
        A, B = m.shape
        mp = np.pad(m, ((2, 2), (2, 2)), mode="reflect")
        out = np.zeros_like(m)
        for dy in range(5):
            for dx in range(5):
                out += mp[dy:dy + A, dx:dx + B]
        return out / 25.0

    out = np.empty_like(xc)
    for n in range(N):
        xb = xc[n]                             # (F, H, W)
        m1 = xb.mean(axis=-1)                  # (F, H)
        x2 = xb - (m1 - box5(m1))[:, :, None]
        m2 = x2.mean(axis=1)                   # (F, W)
        out[n] = x2 - (m2 - box5(m2))[:, None, :]
    if C == 3:
        return np.repeat(out[:, :, None], 3, axis=2)
    return out[:, :, None]


if __name__ == "__main__":
    key = jax.random.PRNGKey(0)

    # Small shape consistent with the module: (N, F, C, H, W)
    N, F_, C, H, W = 2, 8, 3, 16, 16
    x = jax.random.normal(key, (N, F_, C, H, W), jnp.float32)

    y = jax.jit(lnpp_rowcol_forward)(x)
    jax.block_until_ready(y)
    assert y.shape == (N, F_, C, H, W) and y.dtype == x.dtype
    ref = _reference_forward_np(np.asarray(x))
    np.testing.assert_allclose(np.asarray(y), ref, rtol=2e-3, atol=2e-3)

    # Also exercise the H-strip-tiled (reduce + apply) path used for large frames.
    N2, F2, C2, H2, W2 = 1, 8, 1, 32, 128
    x2 = jax.random.normal(jax.random.PRNGKey(1), (N2, F2, C2, H2, W2), jnp.float32)
    y2 = jax.jit(lambda a: lnpp_rowcol_forward(a, force_tiled=True, tile_h=8))(x2)
    jax.block_until_ready(y2)
    ref2 = _reference_forward_np(np.asarray(x2))
    np.testing.assert_allclose(np.asarray(y2), ref2, rtol=2e-3, atol=2e-3)

    print("KERNEL_OK")
</pallas_src>

<mosaic_0001>
module attributes {stable_mosaic.version = 11 : i64} {
  func.func @_fused_kernel(%arg0: i32, %arg1: memref<1x8x1x16x16xf32, #tpu.memory_space<vmem>>, %arg2: memref<1x8x3x16x16xf32, #tpu.memory_space<vmem>>) attributes {dimension_semantics = [#tpu.dimension_semantics<parallel>], iteration_bounds = array<i64: 2>, scalar_prefetch = 0 : i64, scratch_operands = 0 : i64, tpu.core_type = #tpu.core_type<tc>, window_params = [{transform_indices = @transform_0, window_bounds = array<i64: 1, 8, 1, 16, 16>}, {transform_indices = @transform_1, window_bounds = array<i64: 1, 8, 3, 16, 16>}]} {
    %c0 = arith.constant 0 : index
    %c0_0 = arith.constant 0 : index
    %c0_1 = arith.constant 0 : index
    %c0_2 = arith.constant 0 : index
    %c0_3 = arith.constant 0 : index
    %0 = vector.load %arg1[%c0, %c0_0, %c0_1, %c0_2, %c0_3] : memref<1x8x1x16x16xf32, #tpu.memory_space<vmem>>, vector<1x8x1x16x16xf32>
    %1 = vector.shape_cast %0 : vector<1x8x1x16x16xf32> to vector<8x16x16xf32>
    %cst = arith.constant dense<0.000000e+00> : vector<8x16xf32>
    %2 = vector.multi_reduction <add>, %1, %cst [2] : vector<8x16x16xf32> to vector<8x16xf32>
    %cst_4 = arith.constant 6.250000e-02 : f32
    %3 = vector.broadcast %cst_4 : f32 to vector<8x16xf32>
    %4 = arith.mulf %2, %3 : vector<8x16xf32>
    %cst_5 = arith.constant dense<0.000000e+00> : vector<8x16xf32>
    %5 = vector.multi_reduction <add>, %1, %cst_5 [1] : vector<8x16x16xf32> to vector<8x16xf32>
    %cst_6 = arith.constant 6.250000e-02 : f32
    %6 = vector.broadcast %cst_6 : f32 to vector<8x16xf32>
    %7 = arith.mulf %5, %6 : vector<8x16xf32>
    %c1_i32 = arith.constant 1 : i32
    %8 = tpu.dynamic_rotate %4 by %c1_i32 dim 0 : vector<8x16xf32>, i32 -> vector<8x16xf32>
    %9 = arith.addf %4, %8 : vector<8x16xf32>
    %c7_i32 = arith.constant 7 : i32
    %10 = tpu.dynamic_rotate %4 by %c7_i32 dim 0 : vector<8x16xf32>, i32 -> vector<8x16xf32>
    %11 = arith.addf %9, %10 : vector<8x16xf32>
    %c2_i32 = arith.constant 2 : i32
    %12 = tpu.dynamic_rotate %4 by %c2_i32 dim 0 : vector<8x16xf32>, i32 -> vector<8x16xf32>
    %13 = arith.addf %11, %12 : vector<8x16xf32>
    %c6_i32 = arith.constant 6 : i32
    %14 = tpu.dynamic_rotate %4 by %c6_i32 dim 0 : vector<8x16xf32>, i32 -> vector<8x16xf32>
    %15 = arith.addf %13, %14 : vector<8x16xf32>
    %16 = tpu.iota {dimensions = array<i32: 0>} : vector<8x16xi32>
    %c0_i32 = arith.constant 0 : i32
    %17 = vector.broadcast %c0_i32 : i32 to vector<8x16xi32>
    %18 = arith.cmpi eq, %16, %17 : vector<8x16xi32>
    %19 = vector.extract_strided_slice %4 {offsets = [1, 0], sizes = [1, 16], strides = [1, 1]} : vector<8x16xf32> to vector<1x16xf32>
    %20 = vector.extract_strided_slice %4 {offsets = [2, 0], sizes = [1, 16], strides = [1, 1]} : vector<8x16xf32> to vector<1x16xf32>
    %21 = arith.addf %19, %20 : vector<1x16xf32>
    %22 = vector.extract_strided_slice %4 {offsets = [7, 0], sizes = [1, 16], strides = [1, 1]} : vector<8x16xf32> to vector<1x16xf32>
    %23 = arith.subf %21, %22 : vector<1x16xf32>
    %24 = vector.extract_strided_slice %4 {offsets = [6, 0], sizes = [1, 16], strides = [1, 1]} : vector<8x16xf32> to vector<1x16xf32>
    %25 = arith.subf %23, %24 : vector<1x16xf32>
    %cst_7 = arith.constant 0.000000e+00 : f32
    %26 = vector.shape_cast %25 : vector<1x16xf32> to vector<1x16xf32>
    %27 = vector.broadcast %26 : vector<1x16xf32> to vector<8x16xf32>
    %28 = vector.broadcast %cst_7 : f32 to vector<8x16xf32>
    %29 = arith.select %18, %27, %28 : vector<8x16xi1>, vector<8x16xf32>
    %30 = arith.addf %15, %29 : vector<8x16xf32>
    %c1_i32_8 = arith.constant 1 : i32
    %31 = vector.broadcast %c1_i32_8 : i32 to vector<8x16xi32>
    %32 = arith.cmpi eq, %16, %31 : vector<8x16xi32>
    %33 = vector.extract_strided_slice %4 {offsets = [1, 0], sizes = [1, 16], strides = [1, 1]} : vector<8x16xf32> to vector<1x16xf32>
    %34 = vector.extract_strided_slice %4 {offsets = [7, 0], sizes = [1, 16], strides = [1, 1]} : vector<8x16xf32> to vector<1x16xf32>
    %35 = arith.subf %33, %34 : vector<1x16xf32>
    %cst_9 = arith.constant 0.000000e+00 : f32
    %36 = vector.shape_cast %35 : vector<1x16xf32> to vector<1x16xf32>
    %37 = vector.broadcast %36 : vector<1x16xf32> to vector<8x16xf32>
    %38 = vector.broadcast %cst_9 : f32 to vector<8x16xf32>
    %39 = arith.select %32, %37, %38 : vector<8x16xi1>, vector<8x16xf32>
    %40 = arith.addf %30, %39 : vector<8x16xf32>
    %c6_i32_10 = arith.constant 6 : i32
    %41 = vector.broadcast %c6_i32_10 : i32 to vector<8x16xi32>
    %42 = arith.cmpi eq, %16, %41 : vector<8x16xi32>
    %43 = vector.extract_strided_slice %4 {offsets = [6, 0], sizes = [1, 16], strides = [1, 1]} : vector<8x16xf32> to vector<1x16xf32>
    %44 = vector.extract_strided_slice %4 {offsets = [0, 0], sizes = [1, 16], strides = [1, 1]} : vector<8x16xf32> to vector<1x16xf32>
    %45 = arith.subf %43, %44 : vector<1x16xf32>
    %cst_11 = arith.constant 0.000000e+00 : f32
    %46 = vector.shape_cast %45 : vector<1x16xf32> to vector<1x16xf32>
    %47 = vector.broadcast %46 : vector<1x16xf32> to vector<8x16xf32>
    %48 = vector.broadcast %cst_11 : f32 to vector<8x16xf32>
    %49 = arith.select %42, %47, %48 : vector<8x16xi1>, vector<8x16xf32>
    %50 = arith.addf %40, %49 : vector<8x16xf32>
    %c7_i32_12 = arith.constant 7 : i32
    %51 = vector.broadcast %c7_i32_12 : i32 to vector<8x16xi32>
    %52 = arith.cmpi eq, %16, %51 : vector<8x16xi32>
    %53 = vector.extract_strided_slice %4 {offsets = [6, 0], sizes = [1, 16], strides = [1, 1]} : vector<8x16xf32> to vector<1x16xf32>
    %54 = vector.extract_strided_slice %4 {offsets = [5, 0], sizes = [1, 16], strides = [1, 1]} : vector<8x16xf32> to vector<1x16xf32>
    %55 = arith.addf %53, %54 : vector<1x16xf32>
    %56 = vector.extract_strided_slice %4 {offsets = [0, 0], sizes = [1, 16], strides = [1, 1]} : vector<8x16xf32> to vector<1x16xf32>
    %57 = arith.subf %55, %56 : vector<1x16xf32>
    %58 = vector.extract_strided_slice %4 {offsets = [1, 0], sizes = [1, 16], strides = [1, 1]} : vector<8x16xf32> to vector<1x16xf32>
    %59 = arith.subf %57, %58 : vector<1x16xf32>
    %cst_13 = arith.constant 0.000000e+00 : f32
    %60 = vector.shape_cast %59 : vector<1x16xf32> to vector<1x16xf32>
    %61 = vector.broadcast %60 : vector<1x16xf32> to vector<8x16xf32>
    %62 = vector.broadcast %cst_13 : f32 to vector<8x16xf32>
    %63 = arith.select %52, %61, %62 : vector<8x16xi1>, vector<8x16xf32>
    %64 = arith.addf %50, %63 : vector<8x16xf32>
    %c1_i32_14 = arith.constant 1 : i32
    %65 = tpu.dynamic_rotate %64 by %c1_i32_14 dim 1 : vector<8x16xf32>, i32 -> vector<8x16xf32>
    %66 = arith.addf %64, %65 : vector<8x16xf32>
    %c15_i32 = arith.constant 15 : i32
    %67 = tpu.dynamic_rotate %64 by %c15_i32 dim 1 : vector<8x16xf32>, i32 -> vector<8x16xf32>
    %68 = arith.addf %66, %67 : vector<8x16xf32>
    %c2_i32_15 = arith.constant 2 : i32
    %69 = tpu.dynamic_rotate %64 by %c2_i32_15 dim 1 : vector<8x16xf32>, i32 -> vector<8x16xf32>
    %70 = arith.addf %68, %69 : vector<8x16xf32>
    %c14_i32 = arith.constant 14 : i32
    %71 = tpu.dynamic_rotate %64 by %c14_i32 dim 1 : vector<8x16xf32>, i32 -> vector<8x16xf32>
    %72 = arith.addf %70, %71 : vector<8x16xf32>
    %73 = tpu.iota {dimensions = array<i32: 1>} : vector<8x16xi32>
    %c0_i32_16 = arith.constant 0 : i32
    %74 = vector.broadcast %c0_i32_16 : i32 to vector<8x16xi32>
    %75 = arith.cmpi eq, %73, %74 : vector<8x16xi32>
    %76 = vector.extract_strided_slice %64 {offsets = [0, 1], sizes = [8, 1], strides = [1, 1]} : vector<8x16xf32> to vector<8x1xf32>
    %77 = vector.extract_strided_slice %64 {offsets = [0, 2], sizes = [8, 1], strides = [1, 1]} : vector<8x16xf32> to vector<8x1xf32>
    %78 = arith.addf %76, %77 : vector<8x1xf32>
    %79 = vector.extract_strided_slice %64 {offsets = [0, 15], sizes = [8, 1], strides = [1, 1]} : vector<8x16xf32> to vector<8x1xf32>
    %80 = arith.subf %78, %79 : vector<8x1xf32>
    %81 = vector.extract_strided_slice %64 {offsets = [0, 14], sizes = [8, 1], strides = [1, 1]} : vector<8x16xf32> to vector<8x1xf32>
    %82 = arith.subf %80, %81 : vector<8x1xf32>
    %cst_17 = arith.constant 0.000000e+00 : f32
    %83 = vector.shape_cast %82 : vector<8x1xf32> to vector<8x1xf32>
    %84 = vector.broadcast %83 : vector<8x1xf32> to vector<8x16xf32>
    %85 = vector.broadcast %cst_17 : f32 to vector<8x16xf32>
    %86 = arith.select %75, %84, %85 : vector<8x16xi1>, vector<8x16xf32>
    %87 = arith.addf %72, %86 : vector<8x16xf32>
    %c1_i32_18 = arith.constant 1 : i32
    %88 = vector.broadcast %c1_i32_18 : i32 to vector<8x16xi32>
    %89 = arith.cmpi eq, %73, %88 : vector<8x16xi32>
    %90 = vector.extract_strided_slice %64 {offsets = [0, 1], sizes = [8, 1], strides = [1, 1]} : vector<8x16xf32> to vector<8x1xf32>
    %91 = vector.extract_strided_slice %64 {offsets = [0, 15], sizes = [8, 1], strides = [1, 1]} : vector<8x16xf32> to vector<8x1xf32>
    %92 = arith.subf %90, %91 : vector<8x1xf32>
    %cst_19 = arith.constant 0.000000e+00 : f32
    %93 = vector.shape_cast %92 : vector<8x1xf32> to vector<8x1xf32>
    %94 = vector.broadcast %93 : vector<8x1xf32> to vector<8x16xf32>
    %95 = vector.broadcast %cst_19 : f32 to vector<8x16xf32>
    %96 = arith.select %89, %94, %95 : vector<8x16xi1>, vector<8x16xf32>
    %97 = arith.addf %87, %96 : vector<8x16xf32>
    %c14_i32_20 = arith.constant 14 : i32
    %98 = vector.broadcast %c14_i32_20 : i32 to vector<8x16xi32>
    %99 = arith.cmpi eq, %73, %98 : vector<8x16xi32>
    %100 = vector.extract_strided_slice %64 {offsets = [0, 14], sizes = [8, 1], strides = [1, 1]} : vector<8x16xf32> to vector<8x1xf32>
    %101 = vector.extract_strided_slice %64 {offsets = [0, 0], sizes = [8, 1], strides = [1, 1]} : vector<8x16xf32> to vector<8x1xf32>
    %102 = arith.subf %100, %101 : vector<8x1xf32>
    %cst_21 = arith.constant 0.000000e+00 : f32
    %103 = vector.shape_cast %102 : vector<8x1xf32> to vector<8x1xf32>
    %104 = vector.broadcast %103 : vector<8x1xf32> to vector<8x16xf32>
    %105 = vector.broadcast %cst_21 : f32 to vector<8x16xf32>
    %106 = arith.select %99, %104, %105 : vector<8x16xi1>, vector<8x16xf32>
    %107 = arith.addf %97, %106 : vector<8x16xf32>
    %c15_i32_22 = arith.constant 15 : i32
    %108 = vector.broadcast %c15_i32_22 : i32 to vector<8x16xi32>
    %109 = arith.cmpi eq, %73, %108 : vector<8x16xi32>
    %110 = vector.extract_strided_slice %64 {offsets = [0, 14], sizes = [8, 1], strides = [1, 1]} : vector<8x16xf32> to vector<8x1xf32>
    %111 = vector.extract_strided_slice %64 {offsets = [0, 13], sizes = [8, 1], strides = [1, 1]} : vector<8x16xf32> to vector<8x1xf32>
    %112 = arith.addf %110, %111 : vector<8x1xf32>
    %113 = vector.extract_strided_slice %64 {offsets = [0, 0], sizes = [8, 1], strides = [1, 1]} : vector<8x16xf32> to vector<8x1xf32>
    %114 = arith.subf %112, %113 : vector<8x1xf32>
    %115 = vector.extract_strided_slice %64 {offsets = [0, 1], sizes = [8, 1], strides = [1, 1]} : vector<8x16xf32> to vector<8x1xf32>
    %116 = arith.subf %114, %115 : vector<8x1xf32>
    %cst_23 = arith.constant 0.000000e+00 : f32
    %117 = vector.shape_cast %116 : vector<8x1xf32> to vector<8x1xf32>
    %118 = vector.broadcast %117 : vector<8x1xf32> to vector<8x16xf32>
    %119 = vector.broadcast %cst_23 : f32 to vector<8x16xf32>
    %120 = arith.select %109, %118, %119 : vector<8x16xi1>, vector<8x16xf32>
    %121 = arith.addf %107, %120 : vector<8x16xf32>
    %cst_24 = arith.constant 4.000000e-02 : f32
    %122 = vector.broadcast %cst_24 : f32 to vector<8x16xf32>
    %123 = arith.mulf %121, %122 : vector<8x16xf32>
    %124 = arith.subf %4, %123 : vector<8x16xf32>
    %cst_25 = arith.constant dense<0.000000e+00> : vector<8xf32>
    %125 = vector.multi_reduction <add>, %124, %cst_25 [1] : vector<8x16xf32> to vector<8xf32>
    %126 = vector.shape_cast %125 : vector<8xf32> to vector<8x1xf32>
    %cst_26 = arith.constant 1.600000e+01 : f32
    %127 = vector.broadcast %cst_26 : f32 to vector<8x1xf32>
    %128 = arith.divf %126, %127 : vector<8x1xf32>
    %129 = vector.broadcast %128 : vector<8x1xf32> to vector<8x16xf32>
    %130 = arith.subf %7, %129 : vector<8x16xf32>
    %c1_i32_27 = arith.constant 1 : i32
    %131 = tpu.dynamic_rotate %130 by %c1_i32_27 dim 0 : vector<8x16xf32>, i32 -> vector<8x16xf32>
    %132 = arith.addf %130, %131 : vector<8x16xf32>
    %c7_i32_28 = arith.constant 7 : i32
    %133 = tpu.dynamic_rotate %130 by %c7_i32_28 dim 0 : vector<8x16xf32>, i32 -> vector<8x16xf32>
    %134 = arith.addf %132, %133 : vector<8x16xf32>
    %c2_i32_29 = arith.constant 2 : i32
    %135 = tpu.dynamic_rotate %130 by %c2_i32_29 dim 0 : vector<8x16xf32>, i32 -> vector<8x16xf32>
    %136 = arith.addf %134, %135 : vector<8x16xf32>
    %c6_i32_30 = arith.constant 6 : i32
    %137 = tpu.dynamic_rotate %130 by %c6_i32_30 dim 0 : vector<8x16xf32>, i32 -> vector<8x16xf32>
    %138 = arith.addf %136, %137 : vector<8x16xf32>
    %139 = tpu.iota {dimensions = array<i32: 0>} : vector<8x16xi32>
    %c0_i32_31 = arith.constant 0 : i32
    %140 = vector.broadcast %c0_i32_31 : i32 to vector<8x16xi32>
    %141 = arith.cmpi eq, %139, %140 : vector<8x16xi32>
    %142 = vector.extract_strided_slice %130 {offsets = [1, 0], sizes = [1, 16], strides = [1, 1]} : vector<8x16xf32> to vector<1x16xf32>
    %143 = vector.extract_strided_slice %130 {offsets = [2, 0], sizes = [1, 16], strides = [1, 1]} : vector<8x16xf32> to vector<1x16xf32>
    %144 = arith.addf %142, %143 : vector<1x16xf32>
    %145 = vector.extract_strided_slice %130 {offsets = [7, 0], sizes = [1, 16], strides = [1, 1]} : vector<8x16xf32> to vector<1x16xf32>
    %146 = arith.subf %144, %145 : vector<1x16xf32>
    %147 = vector.extract_strided_slice %130 {offsets = [6, 0], sizes = [1, 16], strides = [1, 1]} : vector<8x16xf32> to vector<1x16xf32>
    %148 = arith.subf %146, %147 : vector<1x16xf32>
    %cst_32 = arith.constant 0.000000e+00 : f32
    %149 = vector.shape_cast %148 : vector<1x16xf32> to vector<1x16xf32>
    %150 = vector.broadcast %149 : vector<1x16xf32> to vector<8x16xf32>
    %151 = vector.broadcast %cst_32 : f32 to vector<8x16xf32>
    %152 = arith.select %141, %150, %151 : vector<8x16xi1>, vector<8x16xf32>
    %153 = arith.addf %138, %152 : vector<8x16xf32>
    %c1_i32_33 = arith.constant 1 : i32
    %154 = vector.broadcast %c1_i32_33 : i32 to vector<8x16xi32>
    %155 = arith.cmpi eq, %139, %154 : vector<8x16xi32>
    %156 = vector.extract_strided_slice %130 {offsets = [1, 0], sizes = [1, 16], strides = [1, 1]} : vector<8x16xf32> to vector<1x16xf32>
    %157 = vector.extract_strided_slice %130 {offsets = [7, 0], sizes = [1, 16], strides = [1, 1]} : vector<8x16xf32> to vector<1x16xf32>
    %158 = arith.subf %156, %157 : vector<1x16xf32>
    %cst_34 = arith.constant 0.000000e+00 : f32
    %159 = vector.shape_cast %158 : vector<1x16xf32> to vector<1x16xf32>
    %160 = vector.broadcast %159 : vector<1x16xf32> to vector<8x16xf32>
    %161 = vector.broadcast %cst_34 : f32 to vector<8x16xf32>
    %162 = arith.select %155, %160, %161 : vector<8x16xi1>, vector<8x16xf32>
    %163 = arith.addf %153, %162 : vector<8x16xf32>
    %c6_i32_35 = arith.constant 6 : i32
    %164 = vector.broadcast %c6_i32_35 : i32 to vector<8x16xi32>
    %165 = arith.cmpi eq, %139, %164 : vector<8x16xi32>
    %166 = vector.extract_strided_slice %130 {offsets = [6, 0], sizes = [1, 16], strides = [1, 1]} : vector<8x16xf32> to vector<1x16xf32>
    %167 = vector.extract_strided_slice %130 {offsets = [0, 0], sizes = [1, 16], strides = [1, 1]} : vector<8x16xf32> to vector<1x16xf32>
    %168 = arith.subf %166, %167 : vector<1x16xf32>
    %cst_36 = arith.constant 0.000000e+00 : f32
    %169 = vector.shape_cast %168 : vector<1x16xf32> to vector<1x16xf32>
    %170 = vector.broadcast %169 : vector<1x16xf32> to vector<8x16xf32>
    %171 = vector.broadcast %cst_36 : f32 to vector<8x16xf32>
    %172 = arith.select %165, %170, %171 : vector<8x16xi1>, vector<8x16xf32>
    %173 = arith.addf %163, %172 : vector<8x16xf32>
    %c7_i32_37 = arith.constant 7 : i32
    %174 = vector.broadcast %c7_i32_37 : i32 to vector<8x16xi32>
    %175 = arith.cmpi eq, %139, %174 : vector<8x16xi32>
    %176 = vector.extract_strided_slice %130 {offsets = [6, 0], sizes = [1, 16], strides = [1, 1]} : vector<8x16xf32> to vector<1x16xf32>
    %177 = vector.extract_strided_slice %130 {offsets = [5, 0], sizes = [1, 16], strides = [1, 1]} : vector<8x16xf32> to vector<1x16xf32>
    %178 = arith.addf %176, %177 : vector<1x16xf32>
    %179 = vector.extract_strided_slice %130 {offsets = [0, 0], sizes = [1, 16], strides = [1, 1]} : vector<8x16xf32> to vector<1x16xf32>
    %180 = arith.subf %178, %179 : vector<1x16xf32>
    %181 = vector.extract_strided_slice %130 {offsets = [1, 0], sizes = [1, 16], strides = [1, 1]} : vector<8x16xf32> to vector<1x16xf32>
    %182 = arith.subf %180, %181 : vector<1x16xf32>
    %cst_38 = arith.constant 0.000000e+00 : f32
    %183 = vector.shape_cast %182 : vector<1x16xf32> to vector<1x16xf32>
    %184 = vector.broadcast %183 : vector<1x16xf32> to vector<8x16xf32>
    %185 = vector.broadcast %cst_38 : f32 to vector<8x16xf32>
    %186 = arith.select %175, %184, %185 : vector<8x16xi1>, vector<8x16xf32>
    %187 = arith.addf %173, %186 : vector<8x16xf32>
    %c1_i32_39 = arith.constant 1 : i32
    %188 = tpu.dynamic_rotate %187 by %c1_i32_39 dim 1 : vector<8x16xf32>, i32 -> vector<8x16xf32>
    %189 = arith.addf %187, %188 : vector<8x16xf32>
    %c15_i32_40 = arith.constant 15 : i32
    %190 = tpu.dynamic_rotate %187 by %c15_i32_40 dim 1 : vector<8x16xf32>, i32 -> vector<8x16xf32>
    %191 = arith.addf %189, %190 : vector<8x16xf32>
    %c2_i32_41 = arith.constant 2 : i32
    %192 = tpu.dynamic_rotate %187 by %c2_i32_41 dim 1 : vector<8x16xf32>, i32 -> vector<8x16xf32>
    %193 = arith.addf %191, %192 : vector<8x16xf32>
    %c14_i32_42 = arith.constant 14 : i32
    %194 = tpu.dynamic_rotate %187 by %c14_i32_42 dim 1 : vector<8x16xf32>, i32 -> vector<8x16xf32>
    %195 = arith.addf %193, %194 : vector<8x16xf32>
    %196 = tpu.iota {dimensions = array<i32: 1>} : vector<8x16xi32>
    %c0_i32_43 = arith.constant 0 : i32
    %197 = vector.broadcast %c0_i32_43 : i32 to vector<8x16xi32>
    %198 = arith.cmpi eq, %196, %197 : vector<8x16xi32>
    %199 = vector.extract_strided_slice %187 {offsets = [0, 1], sizes = [8, 1], strides = [1, 1]} : vector<8x16xf32> to vector<8x1xf32>
    %200 = vector.extract_strided_slice %187 {offsets = [0, 2], sizes = [8, 1], strides = [1, 1]} : vector<8x16xf32> to vector<8x1xf32>
    %201 = arith.addf %199, %200 : vector<8x1xf32>
    %202 = vector.extract_strided_slice %187 {offsets = [0, 15], sizes = [8, 1], strides = [1, 1]} : vector<8x16xf32> to vector<8x1xf32>
    %203 = arith.subf %201, %202 : vector<8x1xf32>
    %204 = vector.extract_strided_slice %187 {offsets = [0, 14], sizes = [8, 1], strides = [1, 1]} : vector<8x16xf32> to vector<8x1xf32>
    %205 = arith.subf %203, %204 : vector<8x1xf32>
    %cst_44 = arith.constant 0.000000e+00 : f32
    %206 = vector.shape_cast %205 : vector<8x1xf32> to vector<8x1xf32>
    %207 = vector.broadcast %206 : vector<8x1xf32> to vector<8x16xf32>
    %208 = vector.broadcast %cst_44 : f32 to vector<8x16xf32>
    %209 = arith.select %198, %207, %208 : vector<8x16xi1>, vector<8x16xf32>
    %210 = arith.addf %195, %209 : vector<8x16xf32>
    %c1_i32_45 = arith.constant 1 : i32
    %211 = vector.broadcast %c1_i32_45 : i32 to vector<8x16xi32>
    %212 = arith.cmpi eq, %196, %211 : vector<8x16xi32>
    %213 = vector.extract_strided_slice %187 {offsets = [0, 1], sizes = [8, 1], strides = [1, 1]} : vector<8x16xf32> to vector<8x1xf32>
    %214 = vector.extract_strided_slice %187 {offsets = [0, 15], sizes = [8, 1], strides = [1, 1]} : vector<8x16xf32> to vector<8x1xf32>
    %215 = arith.subf %213, %214 : vector<8x1xf32>
    %cst_46 = arith.constant 0.000000e+00 : f32
    %216 = vector.shape_cast %215 : vector<8x1xf32> to vector<8x1xf32>
    %217 = vector.broadcast %216 : vector<8x1xf32> to vector<8x16xf32>
    %218 = vector.broadcast %cst_46 : f32 to vector<8x16xf32>
    %219 = arith.select %212, %217, %218 : vector<8x16xi1>, vector<8x16xf32>
    %220 = arith.addf %210, %219 : vector<8x16xf32>
    %c14_i32_47 = arith.constant 14 : i32
    %221 = vector.broadcast %c14_i32_47 : i32 to vector<8x16xi32>
    %222 = arith.cmpi eq, %196, %221 : vector<8x16xi32>
    %223 = vector.extract_strided_slice %187 {offsets = [0, 14], sizes = [8, 1], strides = [1, 1]} : vector<8x16xf32> to vector<8x1xf32>
    %224 = vector.extract_strided_slice %187 {offsets = [0, 0], sizes = [8, 1], strides = [1, 1]} : vector<8x16xf32> to vector<8x1xf32>
    %225 = arith.subf %223, %224 : vector<8x1xf32>
    %cst_48 = arith.constant 0.000000e+00 : f32
    %226 = vector.shape_cast %225 : vector<8x1xf32> to vector<8x1xf32>
    %227 = vector.broadcast %226 : vector<8x1xf32> to vector<8x16xf32>
    %228 = vector.broadcast %cst_48 : f32 to vector<8x16xf32>
    %229 = arith.select %222, %227, %228 : vector<8x16xi1>, vector<8x16xf32>
    %230 = arith.addf %220, %229 : vector<8x16xf32>
    %c15_i32_49 = arith.constant 15 : i32
    %231 = vector.broadcast %c15_i32_49 : i32 to vector<8x16xi32>
    %232 = arith.cmpi eq, %196, %231 : vector<8x16xi32>
    %233 = vector.extract_strided_slice %187 {offsets = [0, 14], sizes = [8, 1], strides = [1, 1]} : vector<8x16xf32> to vector<8x1xf32>
    %234 = vector.extract_strided_slice %187 {offsets = [0, 13], sizes = [8, 1], strides = [1, 1]} : vector<8x16xf32> to vector<8x1xf32>
    %235 = arith.addf %233, %234 : vector<8x1xf32>
    %236 = vector.extract_strided_slice %187 {offsets = [0, 0], sizes = [8, 1], strides = [1, 1]} : vector<8x16xf32> to vector<8x1xf32>
    %237 = arith.subf %235, %236 : vector<8x1xf32>
    %238 = vector.extract_strided_slice %187 {offsets = [0, 1], sizes = [8, 1], strides = [1, 1]} : vector<8x16xf32> to vector<8x1xf32>
    %239 = arith.subf %237, %238 : vector<8x1xf32>
    %cst_50 = arith.constant 0.000000e+00 : f32
    %240 = vector.shape_cast %239 : vector<8x1xf32> to vector<8x1xf32>
    %241 = vector.broadcast %240 : vector<8x1xf32> to vector<8x16xf32>
    %242 = vector.broadcast %cst_50 : f32 to vector<8x16xf32>
    %243 = arith.select %232, %241, %242 : vector<8x16xi1>, vector<8x16xf32>
    %244 = arith.addf %230, %243 : vector<8x16xf32>
    %cst_51 = arith.constant 4.000000e-02 : f32
    %245 = vector.broadcast %cst_51 : f32 to vector<8x16xf32>
    %246 = arith.mulf %244, %245 : vector<8x16xf32>
    %247 = arith.subf %130, %246 : vector<8x16xf32>
    %248 = vector.shape_cast %124 : vector<8x16xf32> to vector<8x16x1xf32>
    %249 = vector.broadcast %248 : vector<8x16x1xf32> to vector<8x16x16xf32>
    %250 = arith.subf %1, %249 : vector<8x16x16xf32>
    %251 = vector.shape_cast %247 : vector<8x16xf32> to vector<8x1x16xf32>
    %252 = vector.broadcast %251 : vector<8x1x16xf32> to vector<8x16x16xf32>
    %253 = arith.subf %250, %252 : vector<8x16x16xf32>
    %c0_52 = arith.constant 0 : index
    %c0_53 = arith.constant 0 : index
    %c0_54 = arith.constant 0 : index
    %c0_55 = arith.constant 0 : index
    %c0_56 = arith.constant 0 : index
    %254 = vector.load %arg2[%c0_52, %c0_53, %c0_54, %c0_55, %c0_56] : memref<1x8x3x16x16xf32, #tpu.memory_space<vmem>>, vector<1x8x1x16x16xf32>
    %255 = vector.shape_cast %254 : vector<1x8x1x16x16xf32> to vector<8x16x16xf32>
    %256 = vector.shape_cast %253 : vector<8x16x16xf32> to vector<1x8x1x16x16xf32>
    tpu.vector_store %arg2[%c0_52, %c0_53, %c0_54, %c0_55, %c0_56], %256 {strides = array<i32>} : memref<1x8x3x16x16xf32, #tpu.memory_space<vmem>>, vector<1x8x1x16x16xf32>,
    %c0_57 = arith.constant 0 : index
    %c0_58 = arith.constant 0 : index
    %c1 = arith.constant 1 : index
    %c0_59 = arith.constant 0 : index
    %c0_60 = arith.constant 0 : index
    %257 = vector.load %arg2[%c0_57, %c0_58, %c1, %c0_59, %c0_60] : memref<1x8x3x16x16xf32, #tpu.memory_space<vmem>>, vector<1x8x1x16x16xf32>
    %258 = vector.shape_cast %257 : vector<1x8x1x16x16xf32> to vector<8x16x16xf32>
    %259 = vector.shape_cast %253 : vector<8x16x16xf32> to vector<1x8x1x16x16xf32>
    tpu.vector_store %arg2[%c0_57, %c0_58, %c1, %c0_59, %c0_60], %259 {strides = array<i32>} : memref<1x8x3x16x16xf32, #tpu.memory_space<vmem>>, vector<1x8x1x16x16xf32>,
    %c0_61 = arith.constant 0 : index
    %c0_62 = arith.constant 0 : index
    %c2 = arith.constant 2 : index
    %c0_63 = arith.constant 0 : index
    %c0_64 = arith.constant 0 : index
    %260 = vector.load %arg2[%c0_61, %c0_62, %c2, %c0_63, %c0_64] : memref<1x8x3x16x16xf32, #tpu.memory_space<vmem>>, vector<1x8x1x16x16xf32>
    %261 = vector.shape_cast %260 : vector<1x8x1x16x16xf32> to vector<8x16x16xf32>
    %262 = vector.shape_cast %253 : vector<8x16x16xf32> to vector<1x8x1x16x16xf32>
    tpu.vector_store %arg2[%c0_61, %c0_62, %c2, %c0_63, %c0_64], %262 {strides = array<i32>} : memref<1x8x3x16x16xf32, #tpu.memory_space<vmem>>, vector<1x8x1x16x16xf32>,
    return
  }
  func.func @transform_0(%arg0: i32) -> (i32, i32, i32, i32, i32) {
    %c0_i32 = arith.constant 0 : i32
    %c1_i32 = arith.constant 1 : i32
    %c0_i32_0 = arith.constant 0 : i32
    %c0_i32_1 = arith.constant 0 : i32
    %c0_i32_2 = arith.constant 0 : i32
    return %arg0, %c0_i32, %c1_i32, %c0_i32_0, %c0_i32_1 : i32, i32, i32, i32, i32
  }
  func.func @transform_1(%arg0: i32) -> (i32, i32, i32, i32, i32) {
    %c0_i32 = arith.constant 0 : i32
    %c0_i32_0 = arith.constant 0 : i32
    %c0_i32_1 = arith.constant 0 : i32
    %c0_i32_2 = arith.constant 0 : i32
    %c0_i32_3 = arith.constant 0 : i32
    return %arg0, %c0_i32, %c0_i32_0, %c0_i32_1, %c0_i32_2 : i32, i32, i32, i32, i32
  }
}

</mosaic_0001>

<llo_original>
// kernel: lnpp_rowcol_forward.1
$region0: #{lnpp_rowcol_forward.1}
  #allocation0 [shape = 'u32[]', space=smem, size = 0x4, offset = 0x4, fixed_abs, tag = 'smem constant byte address 0x4 - core index']
  #allocation1 [shape = 'u32[144,128]{1,0:T(1,128)}', space=vmem, size = 0x12000, scoped, tag = 'internal scratch']
  #allocation6 [shape = 's32[]', space=sflag, size = 0x4, offset = 0, fixed_abs, tag = 'sflag constant byte address 0x0 - dummy sync flag']
  %s0 = inlined_call_operand.hbm [shape: f32[2,8,3,16,16], index: 0, kind: input, shape index: {}]
  %s1 = inlined_call_operand.hbm [shape: f32[2,8,3,16,16], index: 1, kind: output, shape index: {}]
  %s2 = sld [smem:[#allocation0]]
  $region41: #{lnpp_rowcol_forward.1} parent=0
    _
  %s4 = ssub.s32 1, %s2
  %s5 = scalar_select 0, %s4, %s2
  $region1: #{lnpp_rowcol_forward.1} parent=0
    #allocation2 [shape = 'u8[131072]{0}', space=vmem, size = 0x20000, scoped, tag = 'input window, operand 0']
    #allocation3 [shape = 's32[2]{0}', space=sflag, size = 0x8, scoped, tag = 'scoped memory for lnpp_rowcol_forward.1']
    #allocation4 [shape = 's32[2]{0}', space=sflag, size = 0x8, scoped, tag = 'scoped memory for lnpp_rowcol_forward.1']
    #allocation5 [shape = 'u8[393216]{0}', space=vmem, size = 0x60000, scoped, tag = 'output window, operand 0']
    %6 = vsyncpa [#allocation3], 0
    %s7 = scalar_lea.sflag [#allocation3], 1
    %8 = vsyncpa %s7, 0
    %9 = vsyncpa [#allocation4], 0
    %s10 = scalar_lea.sflag [#allocation4], 1
    %11 = vsyncpa %s10, 0
    loop: start=0, step=1, limit=4
    $region2: #{lnpp_rowcol_forward.1} parent=1 // loop_pre_header
      _
    $region3: #{lnpp_rowcol_forward.1} parent=1 // loop_header
      %s13 = sphi 0, %s17
      %p14 = scmp.ge.s32.totalorder %s13, 4
      %s23 = sphi 0, %s25
      %s26 = sphi 0, %s23
      %s27 = sphi 0, %s26
      %s43 = sphi 0, %s27
      %s49 = sphi 0, %s51
      %s52 = sphi 0, %s49
      %s53 = sphi 0, %s52
      %s69 = sphi 0, %s53
    $region4: #{lnpp_rowcol_forward.1} parent=1 // loop_header_branch
      %16 = sbr.rel (%p14) target = $region8
    $region5: #{lnpp_rowcol_forward.1} parent=1 // loop_body
      %s18 = ssub.s32 %s13, 1
      %s19 = ssub.s32 %s13, 2
      %s20 = sadd.s32 %s13, 1
      %s21 = ssub.s32 %s13, %s20
      %p22 = scmp.eq.s32.totalorder %s21, 0
      %s24 = sadd.s32 %s23, 1
      %s25 = scalar_select %p22, %s23, %s24
      %p28 = pneg %p22
      %p29 = scmp.eq.s32.totalorder %s13, 1
      %p30 = por %p28, %p29
      %p31 = scmp.ne.s32.totalorder %s23, %s26
      %p32 = scmp.eq.s32.totalorder %s13, 0
      %p33 = por %p31, %p32
      %p34 = scmp.ne.s32.totalorder %s23, %s26
      %p35 = scmp.eq.s32.totalorder %s18, 1
      %p36 = por %p34, %p35
      %p37 = scmp.ne.s32.totalorder %s26, %s27
      %p38 = scmp.eq.s32.totalorder %s18, 0
      %p39 = por %p37, %p38
      %p40 = scmp.ne.s32.totalorder %s26, %s27
      %p41 = scmp.eq.s32.totalorder %s19, 1
      %p42 = por %p40, %p41
      %p44 = scmp.ne.s32.totalorder %s27, %s43
      %p45 = scmp.eq.s32.totalorder %s19, 0
      %p46 = por %p44, %p45
      %s47 = ssub.s32 %s13, %s20
      %p48 = scmp.eq.s32.totalorder %s47, 0
      %s50 = sadd.s32 %s49, 1
      %s51 = scalar_select %p48, %s49, %s50
      %p54 = pneg %p48
      %p55 = scmp.eq.s32.totalorder %s13, 1
      %p56 = por %p54, %p55
      %p57 = scmp.ne.s32.totalorder %s49, %s52
      %p58 = scmp.eq.s32.totalorder %s13, 0
      %p59 = por %p57, %p58
      %p60 = scmp.ne.s32.totalorder %s49, %s52
      %p61 = scmp.eq.s32.totalorder %s18, 1
      %p62 = por %p60, %p61
      %p63 = scmp.ne.s32.totalorder %s52, %s53
      %p64 = scmp.eq.s32.totalorder %s18, 0
      %p65 = por %p63, %p64
      %p66 = scmp.ne.s32.totalorder %s52, %s53
      %p67 = scmp.eq.s32.totalorder %s19, 1
      %p68 = por %p66, %p67
      %p70 = scmp.ne.s32.totalorder %s53, %s69
      %p71 = scmp.eq.s32.totalorder %s19, 0
      %p72 = por %p70, %p71
      %p73 = scmp.le.s32.totalorder 1, %s13
      %p74 = scmp.lt.s32.totalorder %s13, 3
      %p75 = pnand %p73, %p74
      %p76 = pneg %p75
      // Predicated region
      $region9: #{lnpp_rowcol_forward.1} parent=5 // pred_check
        _
      $region10: #{lnpp_rowcol_forward.1} parent=5 // pred_check_branch
        %78 = sbr.rel (%p75) target = $region12
      $region11: #{lnpp_rowcol_forward.1} parent=5 // pred_region
        %s79 = ssub.s32 %s13, 1
      $region12: #{lnpp_rowcol_forward.1} parent=5 // pred_fallthru
        _
      %p80 = scmp.lt.s32.totalorder %s13, 2
      // Predicated region
      $region13: #{lnpp_rowcol_forward.1} parent=5 // pred_check
        %p81 = pneg %p80
      $region14: #{lnpp_rowcol_forward.1} parent=5 // pred_check_branch
        %83 = sbr.rel (%p81) target = $region16
      $region15: #{lnpp_rowcol_forward.1} parent=5 // pred_region
        // Predicated region
        $region17: #{lnpp_rowcol_forward.1} parent=15 // pred_check
          %p84 = pneg %p33
        $region18: #{lnpp_rowcol_forward.1} parent=15 // pred_check_branch
          %86 = sbr.rel (%p84) target = $region20
        $region19: #{lnpp_rowcol_forward.1} parent=15 // pred_region
          #allocation7 [shape = 'u32[6]{0}', space=smem, size = 0x18, scoped, tag = 'DMA stride descriptor']
          %s87 = sand.u32 %s23, 1
          %s88 = scalar_lea.sflag [#allocation3], %s87
          %s89 = sand.u32 %s23, 1
          %s90 = smul.addr %s89, 128
          %s91 = scalar_lea.vmem [#allocation2], %s90
          %s93 = ssub.s32 2048, 2048
          %94 = vsyncadd %s88, %s93
          %s95 = smul.addr %s13, 48
          %s96 = sadd.s32 2, %s95
          %s97 = smul.addr %s96, 128
          %s98 = scalar_lea.hbm %s0, %s97
          %s100 = sshll.u32 1, 14
          %s101 = sxor.u32 4294967295, %s100
          %s103 = sld [smem:[#allocation0]]
          %s104 = sadd.s32 2, %s103
          %s106 = sshll.u32 7, 26
          %s107 = sxor.u32 4294967295, %s106
          %s108 = sand.u32 0, %s107
          %s109 = sshll.u32 %s104, 26
          %s110 = sor.u32 %s108, %s109
          %s111 = sshll.u32 %s91, 4
          %s112 = int_to_ptr.vmem [resolvable:$true] %s111
          %118 = sst [smem:[#allocation7]] 768
          %s119 = scalar_lea.smem [#allocation7], 1
          %120 = sst [smem:[%s119]] 256
          %s121 = scalar_lea.smem [#allocation7], 2
          %122 = sst [smem:[%s121]] 2
          %s123 = scalar_lea.smem [#allocation7], 3
          %124 = sst [smem:[%s123]] 128
          %s125 = scalar_lea.smem [#allocation7], 4
          %126 = sst [smem:[%s125]] 128
          %s127 = scalar_lea.smem [#allocation7], 5
          %128 = sst [smem:[%s127]] 8
          %130 = dma.general %s98, 2048, %s112, %s88, [#allocation6], [#allocation7], %s110, 0
        $region20: #{lnpp_rowcol_forward.1} parent=15 // pred_fallthru
          _
      $region16: #{lnpp_rowcol_forward.1} parent=5 // pred_fallthru
        _
      %p131 = scmp.le.s32.totalorder 1, %s13
      %p132 = scmp.lt.s32.totalorder %s13, 3
      %p133 = pnand %p131, %p132
      %p134 = pneg %p133
      // Predicated region
      $region21: #{lnpp_rowcol_forward.1} parent=5 // pred_check
        _
      $region22: #{lnpp_rowcol_forward.1} parent=5 // pred_check_branch
        %136 = sbr.rel (%p133) target = $region24
      $region23: #{lnpp_rowcol_forward.1} parent=5 // pred_region
        %s137 = ssub.s32 %s13, 1
        %s138 = sand.u32 %s26, 1
        %s139 = scalar_lea.sflag [#allocation3], %s138
        %s140 = sand.u32 %s26, 1
        %s141 = smul.addr %s140, 128
        %s142 = scalar_lea.vmem [#allocation2], %s141
        // Predicated region
        $region25: #{lnpp_rowcol_forward.1} parent=23 // pred_check
          %p143 = pneg %p39
        $region26: #{lnpp_rowcol_forward.1} parent=23 // pred_check_branch
          %145 = sbr.rel (%p143) target = $region28
        $region27: #{lnpp_rowcol_forward.1} parent=23 // pred_region
          %146 = dma.done %s139, 2048
        $region28: #{lnpp_rowcol_forward.1} parent=23 // pred_fallthru
          _
        %s147 = sand.u32 %s26, 1
        %s148 = scalar_lea.sflag [#allocation3], %s147
        %s149 = sand.u32 %s26, 1
        %s150 = smul.addr %s149, 128
        %s151 = scalar_lea.vmem [#allocation2], %s150
        %p152 = pneg %p39
        %p153 = pneg %p36
        %p154 = pneg %p65
        %p155 = pneg %p62
        %s156 = sand.u32 %s52, 1
        %s157 = scalar_lea.sflag [#allocation4], %s156
        %s158 = sand.u32 %s52, 1
        %s159 = smul.addr %s158, 384
        %s160 = scalar_lea.vmem [#allocation5], %s159
        %v161 = vld [vmem:[%s142] sm:$0xff]
        %v162 = vld [vmem:[%s142 + $0x8] sm:$0xff]
        %v163 = vld [vmem:[%s142 + $0x10] sm:$0xff]
        %v164 = vld [vmem:[%s142 + $0x18] sm:$0xff]
        %v165 = vld [vmem:[%s142 + $0x20] sm:$0xff]
        %v166 = vld [vmem:[%s142 + $0x28] sm:$0xff]
        %v167 = vld [vmem:[%s142 + $0x30] sm:$0xff]
        %v168 = vld [vmem:[%s142 + $0x38] sm:$0xff]
        %v169 = vld [vmem:[%s142 + $0x40] sm:$0xff]
        %v170 = vld [vmem:[%s142 + $0x48] sm:$0xff]
        %v171 = vld [vmem:[%s142 + $0x50] sm:$0xff]
        %v172 = vld [vmem:[%s142 + $0x58] sm:$0xff]
        %v173 = vld [vmem:[%s142 + $0x60] sm:$0xff]
        %v174 = vld [vmem:[%s142 + $0x68] sm:$0xff]
        %v175 = vld [vmem:[%s142 + $0x70] sm:$0xff]
        %v176 = vld [vmem:[%s142 + $0x78] sm:$0xff]
        %vm177 = vcmask 130048
        %v178 = vsel %vm177, %v161, 0.0
        %179 = vadd.xlane.f32.xlu0 %v178
        %v180 = vpop.xlane.xlu0 %179
        %v181 = vsel %vm177, %v162, 0.0
        %182 = vadd.xlane.f32.xlu0 %v181
        %v183 = vpop.xlane.xlu0 %182
        %v184 = vsel %vm177, %v163, 0.0
        %185 = vadd.xlane.f32.xlu0 %v184
        %v186 = vpop.xlane.xlu0 %185
        %v187 = vsel %vm177, %v164, 0.0
        %188 = vadd.xlane.f32.xlu0 %v187
        %v189 = vpop.xlane.xlu0 %188
        %v190 = vsel %vm177, %v165, 0.0
        %191 = vadd.xlane.f32.xlu0 %v190
        %v192 = vpop.xlane.xlu0 %191
        %v193 = vsel %vm177, %v166, 0.0
        %194 = vadd.xlane.f32.xlu0 %v193
        %v195 = vpop.xlane.xlu0 %194
        %v196 = vsel %vm177, %v167, 0.0
        %197 = vadd.xlane.f32.xlu0 %v196
        %v198 = vpop.xlane.xlu0 %197
        %v199 = vsel %vm177, %v168, 0.0
        %200 = vadd.xlane.f32.xlu0 %v199
        %v201 = vpop.xlane.xlu0 %200
        %v202 = vsel %vm177, %v169, 0.0
        %203 = vadd.xlane.f32.xlu0 %v202
        %v204 = vpop.xlane.xlu0 %203
        %v205 = vsel %vm177, %v170, 0.0
        %206 = vadd.xlane.f32.xlu0 %v205
        %v207 = vpop.xlane.xlu0 %206
        %v208 = vsel %vm177, %v171, 0.0
        %209 = vadd.xlane.f32.xlu0 %v208
        %v210 = vpop.xlane.xlu0 %209
        %v211 = vsel %vm177, %v172, 0.0
        %212 = vadd.xlane.f32.xlu0 %v211
        %v213 = vpop.xlane.xlu0 %212
        %v214 = vsel %vm177, %v173, 0.0
        %215 = vadd.xlane.f32.xlu0 %v214
        %v216 = vpop.xlane.xlu0 %215
        %v217 = vsel %vm177, %v174, 0.0
        %218 = vadd.xlane.f32.xlu0 %v217
        %v219 = vpop.xlane.xlu0 %218
        %v220 = vsel %vm177, %v175, 0.0
        %221 = vadd.xlane.f32.xlu0 %v220
        %v222 = vpop.xlane.xlu0 %221
        %v223 = vsel %vm177, %v176, 0.0
        %224 = vadd.xlane.f32.xlu0 %v223
        %v225 = vpop.xlane.xlu0 %224
        %v226 = vmul.f32 %v180, 0.0625
        %v227 = vmul.f32 %v183, 0.0625
        %v228 = vmul.f32 %v186, 0.0625
        %v229 = vmul.f32 %v189, 0.0625
        %v230 = vmul.f32 %v192, 0.0625
        %v231 = vmul.f32 %v195, 0.0625
        %v232 = vmul.f32 %v198, 0.0625
        %v233 = vmul.f32 %v201, 0.0625
        %v234 = vmul.f32 %v204, 0.0625
        %v235 = vmul.f32 %v207, 0.0625
        %v236 = vmul.f32 %v210, 0.0625
        %v237 = vmul.f32 %v213, 0.0625
        %v238 = vmul.f32 %v216, 0.0625
        %v239 = vmul.f32 %v219, 0.0625
        %v240 = vmul.f32 %v222, 0.0625
        %v241 = vmul.f32 %v225, 0.0625
        %v242 = vadd.f32 %v178, %v181
        %v243 = vrot.slane %v242, 4
        %v244 = vadd.f32 %v242, %v243
        %v245 = vrot.slane %v244, 2
        %v246 = vadd.f32 %v244, %v245
        %v247 = vrot.slane %v246, 1
        %v248 = vadd.f32 %v246, %v247
        %v249 = vadd.f32 %v184, %v187
        %v250 = vrot.slane %v249, 4
        %v251 = vadd.f32 %v249, %v250
        %v252 = vrot.slane %v251, 2
        %v253 = vadd.f32 %v251, %v252
        %v254 = vrot.slane %v253, 1
        %v255 = vadd.f32 %v253, %v254
        %v256 = vadd.f32 %v190, %v193
        %v257 = vrot.slane %v256, 4
        %v258 = vadd.f32 %v256, %v257
        %v259 = vrot.slane %v258, 2
        %v260 = vadd.f32 %v258, %v259
        %v261 = vrot.slane %v260, 1
        %v262 = vadd.f32 %v260, %v261
        %v263 = vadd.f32 %v196, %v199
        %v264 = vrot.slane %v263, 4
        %v265 = vadd.f32 %v263, %v264
        %v266 = vrot.slane %v265, 2
        %v267 = vadd.f32 %v265, %v266
        %v268 = vrot.slane %v267, 1
        %v269 = vadd.f32 %v267, %v268
        %v270 = vadd.f32 %v202, %v205
        %v271 = vrot.slane %v270, 4
        %v272 = vadd.f32 %v270, %v271
        %v273 = vrot.slane %v272, 2
        %v274 = vadd.f32 %v272, %v273
        %v275 = vrot.slane %v274, 1
        %v276 = vadd.f32 %v274, %v275
        %v277 = vadd.f32 %v208, %v211
        %v278 = vrot.slane %v277, 4
        %v279 = vadd.f32 %v277, %v278
        %v280 = vrot.slane %v279, 2
        %v281 = vadd.f32 %v279, %v280
        %v282 = vrot.slane %v281, 1
        %v283 = vadd.f32 %v281, %v282
        %v284 = vadd.f32 %v214, %v217
        %v285 = vrot.slane %v284, 4
        %v286 = vadd.f32 %v284, %v285
        %v287 = vrot.slane %v286, 2
        %v288 = vadd.f32 %v286, %v287
        %v289 = vrot.slane %v288, 1
        %v290 = vadd.f32 %v288, %v289
        %v291 = vadd.f32 %v220, %v223
        %v292 = vrot.slane %v291, 4
        %v293 = vadd.f32 %v291, %v292
        %v294 = vrot.slane %v293, 2
        %v295 = vadd.f32 %v293, %v294
        %v296 = vrot.slane %v295, 1
        %v297 = vadd.f32 %v295, %v296
        %v298 = vmul.f32 %v248, 0.0625
        %v299 = vmul.f32 %v255, 0.0625
        %v300 = vmul.f32 %v262, 0.0625
        %v301 = vmul.f32 %v269, 0.0625
        %v302 = vmul.f32 %v276, 0.0625
        %v303 = vmul.f32 %v283, 0.0625
        %v304 = vmul.f32 %v290, 0.0625
        %v305 = vmul.f32 %v297, 0.0625
        %v322 = vlaneseq
        %v323 = vand.u32 %v322, 127
        %v324 = vlaneseq
        %v325 = vshrl.u32 %v324, 7
        %v326 = vsub.s32 %v323, %v325
        %v327 = vrot.slane %v226, %v326
        %v328 = vadd.s32 %v323, 4294967288
        %v329 = vlaneseq
        %v330 = vshrl.u32 %v329, 7
        %v331 = vsub.s32 %v328, %v330
        %v332 = vrot.slane %v227, %v331
        %vm333 = vcmask 130112
        %v334 = vsel %vm333, %v332, %v327
        %v335 = vlaneseq
        %v336 = vshrl.u32 %v335, 7
        %v337 = vsub.s32 %v323, %v336
        %v338 = vrot.slane %v228, %v337
        %v339 = vlaneseq
        %v340 = vshrl.u32 %v339, 7
        %v341 = vsub.s32 %v328, %v340
        %v342 = vrot.slane %v229, %v341
        %v343 = vsel %vm333, %v342, %v338
        %v344 = vlaneseq
        %v345 = vshrl.u32 %v344, 7
        %v346 = vsub.s32 %v323, %v345
        %v347 = vrot.slane %v230, %v346
        %v348 = vlaneseq
        %v349 = vshrl.u32 %v348, 7
        %v350 = vsub.s32 %v328, %v349
        %v351 = vrot.slane %v231, %v350
        %v352 = vsel %vm333, %v351, %v347
        %v353 = vlaneseq
        %v354 = vshrl.u32 %v353, 7
        %v355 = vsub.s32 %v323, %v354
        %v356 = vrot.slane %v232, %v355
        %v357 = vlaneseq
        %v358 = vshrl.u32 %v357, 7
        %v359 = vsub.s32 %v328, %v358
        %v360 = vrot.slane %v233, %v359
        %v361 = vsel %vm333, %v360, %v356
        %v362 = vlaneseq
        %v363 = vshrl.u32 %v362, 7
        %v364 = vsub.s32 %v323, %v363
        %v365 = vrot.slane %v234, %v364
        %v366 = vlaneseq
        %v367 = vshrl.u32 %v366, 7
        %v368 = vsub.s32 %v328, %v367
        %v369 = vrot.slane %v235, %v368
        %v370 = vsel %vm333, %v369, %v365
        %v371 = vlaneseq
        %v372 = vshrl.u32 %v371, 7
        %v373 = vsub.s32 %v323, %v372
        %v374 = vrot.slane %v236, %v373
        %v375 = vlaneseq
        %v376 = vshrl.u32 %v375, 7
        %v377 = vsub.s32 %v328, %v376
        %v378 = vrot.slane %v237, %v377
        %v379 = vsel %vm333, %v378, %v374
        %v380 = vlaneseq
        %v381 = vshrl.u32 %v380, 7
        %v382 = vsub.s32 %v323, %v381
        %v383 = vrot.slane %v238, %v382
        %v384 = vlaneseq
        %v385 = vshrl.u32 %v384, 7
        %v386 = vsub.s32 %v328, %v385
        %v387 = vrot.slane %v239, %v386
        %v388 = vsel %vm333, %v387, %v383
        %v389 = vlaneseq
        %v390 = vshrl.u32 %v389, 7
        %v391 = vsub.s32 %v323, %v390
        %v392 = vrot.slane %v240, %v391
        %v393 = vlaneseq
        %v394 = vshrl.u32 %v393, 7
        %v395 = vsub.s32 %v328, %v394
        %v396 = vrot.slane %v241, %v395
        %v397 = vsel %vm333, %v396, %v392
        %vm398 = vcmask 1041409
        %v399 = vsel %vm398, %v343, %v334
        %vm400 = vcmask 1042434
        %v401 = vsel %vm400, %v352, %v399
        %vm402 = vcmask 1043459
        %v403 = vsel %vm402, %v361, %v401
        %vm404 = vcmask 1044484
        %v405 = vsel %vm404, %v370, %v403
        %vm406 = vcmask 1045509
        %v407 = vsel %vm406, %v379, %v405
        %vm408 = vcmask 1046534
        %v409 = vsel %vm408, %v388, %v407
        %vm410 = vcmask 1047559
        %v411 = vsel %vm410, %v397, %v409
        %v413 = vrot.slane %v411, 7
        %v415 = vlaneseq
        %v416 = vshrl.u32 %v415, 7
        %v417 = vsub.s32 0, %v416
        %v418 = vrot.slane %v413, %v417
        %420 = vbcast.lane.b32.xlu0 %v418, 256
        %v421 = vpop.permute.xlu0 %420
        %s423 = sor.u32 256, 8
        %424 = vbcast.lane.b32.xlu0 %v418, %s423
        %v425 = vpop.permute.xlu0 %424
        %v426 = vlaneseq
        %v427 = vshrl.u32 %v426, 7
        %v428 = vsub.s32 1, %v427
        %v429 = vrot.slane %v413, %v428
        %431 = vbcast.lane.b32.xlu0 %v429, 256
        %v432 = vpop.permute.xlu0 %431
        %s434 = sor.u32 256, 8
        %435 = vbcast.lane.b32.xlu0 %v429, %s434
        %v436 = vpop.permute.xlu0 %435
        %v437 = vlaneseq
        %v438 = vshrl.u32 %v437, 7
        %v439 = vsub.s32 2, %v438
        %v440 = vrot.slane %v413, %v439
        %442 = vbcast.lane.b32.xlu0 %v440, 256
        %v443 = vpop.permute.xlu0 %442
        %s445 = sor.u32 256, 8
        %446 = vbcast.lane.b32.xlu0 %v440, %s445
        %v447 = vpop.permute.xlu0 %446
        %v448 = vlaneseq
        %v449 = vshrl.u32 %v448, 7
        %v450 = vsub.s32 3, %v449
        %v451 = vrot.slane %v413, %v450
        %453 = vbcast.lane.b32.xlu0 %v451, 256
        %v454 = vpop.permute.xlu0 %453
        %s456 = sor.u32 256, 8
        %457 = vbcast.lane.b32.xlu0 %v451, %s456
        %v458 = vpop.permute.xlu0 %457
        %v459 = vlaneseq
        %v460 = vshrl.u32 %v459, 7
        %v461 = vsub.s32 4, %v460
        %v462 = vrot.slane %v413, %v461
        %464 = vbcast.lane.b32.xlu0 %v462, 256
        %v465 = vpop.permute.xlu0 %464
        %s467 = sor.u32 256, 8
        %468 = vbcast.lane.b32.xlu0 %v462, %s467
        %v469 = vpop.permute.xlu0 %468
        %v470 = vlaneseq
        %v471 = vshrl.u32 %v470, 7
        %v472 = vsub.s32 5, %v471
        %v473 = vrot.slane %v413, %v472
        %475 = vbcast.lane.b32.xlu0 %v473, 256
        %v476 = vpop.permute.xlu0 %475
        %s478 = sor.u32 256, 8
        %479 = vbcast.lane.b32.xlu0 %v473, %s478
        %v480 = vpop.permute.xlu0 %479
        %v481 = vlaneseq
        %v482 = vshrl.u32 %v481, 7
        %v483 = vsub.s32 6, %v482
        %v484 = vrot.slane %v413, %v483
        %486 = vbcast.lane.b32.xlu0 %v484, 256
        %v487 = vpop.permute.xlu0 %486
        %s489 = sor.u32 256, 8
        %490 = vbcast.lane.b32.xlu0 %v484, %s489
        %v491 = vpop.permute.xlu0 %490
        %v492 = vlaneseq
        %v493 = vshrl.u32 %v492, 7
        %v494 = vsub.s32 7, %v493
        %v495 = vrot.slane %v413, %v494
        %497 = vbcast.lane.b32.xlu0 %v495, 256
        %v498 = vpop.permute.xlu0 %497
        %s500 = sor.u32 256, 8
        %501 = vbcast.lane.b32.xlu0 %v495, %s500
        %v502 = vpop.permute.xlu0 %501
        %v519 = vadd.f32 %v226, %v421
        %v520 = vadd.f32 %v227, %v425
        %v521 = vadd.f32 %v228, %v432
        %v522 = vadd.f32 %v229, %v436
        %v523 = vadd.f32 %v230, %v443
        %v524 = vadd.f32 %v231, %v447
        %v525 = vadd.f32 %v232, %v454
        %v526 = vadd.f32 %v233, %v458
        %v527 = vadd.f32 %v234, %v465
        %v528 = vadd.f32 %v235, %v469
        %v529 = vadd.f32 %v236, %v476
        %v530 = vadd.f32 %v237, %v480
        %v531 = vadd.f32 %v238, %v487
        %v532 = vadd.f32 %v239, %v491
        %v533 = vadd.f32 %v240, %v498
        %v534 = vadd.f32 %v241, %v502
        %v535 = vrot.slane %v411, 1
        %v537 = vlaneseq
        %v538 = vshrl.u32 %v537, 7
        %v539 = vsub.s32 0, %v538
        %v540 = vrot.slane %v535, %v539
        %542 = vbcast.lane.b32.xlu0 %v540, 256
        %v543 = vpop.permute.xlu0 %542
        %s545 = sor.u32 256, 8
        %546 = vbcast.lane.b32.xlu0 %v540, %s545
        %v547 = vpop.permute.xlu0 %546
        %v548 = vlaneseq
        %v549 = vshrl.u32 %v548, 7
        %v550 = vsub.s32 1, %v549
        %v551 = vrot.slane %v535, %v550
        %553 = vbcast.lane.b32.xlu0 %v551, 256
        %v554 = vpop.permute.xlu0 %553
        %s556 = sor.u32 256, 8
        %557 = vbcast.lane.b32.xlu0 %v551, %s556
        %v558 = vpop.permute.xlu0 %557
        %v559 = vlaneseq
        %v560 = vshrl.u32 %v559, 7
        %v561 = vsub.s32 2, %v560
        %v562 = vrot.slane %v535, %v561
        %564 = vbcast.lane.b32.xlu0 %v562, 256
        %v565 = vpop.permute.xlu0 %564
        %s567 = sor.u32 256, 8
        %568 = vbcast.lane.b32.xlu0 %v562, %s567
        %v569 = vpop.permute.xlu0 %568
        %v570 = vlaneseq
        %v571 = vshrl.u32 %v570, 7
        %v572 = vsub.s32 3, %v571
        %v573 = vrot.slane %v535, %v572
        %575 = vbcast.lane.b32.xlu0 %v573, 256
        %v576 = vpop.permute.xlu0 %575
        %s578 = sor.u32 256, 8
        %579 = vbcast.lane.b32.xlu0 %v573, %s578
        %v580 = vpop.permute.xlu0 %579
        %v581 = vlaneseq
        %v582 = vshrl.u32 %v581, 7
        %v583 = vsub.s32 4, %v582
        %v584 = vrot.slane %v535, %v583
        %586 = vbcast.lane.b32.xlu0 %v584, 256
        %v587 = vpop.permute.xlu0 %586
        %s589 = sor.u32 256, 8
        %590 = vbcast.lane.b32.xlu0 %v584, %s589
        %v591 = vpop.permute.xlu0 %590
        %v592 = vlaneseq
        %v593 = vshrl.u32 %v592, 7
        %v594 = vsub.s32 5, %v593
        %v595 = vrot.slane %v535, %v594
        %597 = vbcast.lane.b32.xlu0 %v595, 256
        %v598 = vpop.permute.xlu0 %597
        %s600 = sor.u32 256, 8
        %601 = vbcast.lane.b32.xlu0 %v595, %s600
        %v602 = vpop.permute.xlu0 %601
        %v603 = vlaneseq
        %v604 = vshrl.u32 %v603, 7
        %v605 = vsub.s32 6, %v604
        %v606 = vrot.slane %v535, %v605
        %608 = vbcast.lane.b32.xlu0 %v606, 256
        %v609 = vpop.permute.xlu0 %608
        %s611 = sor.u32 256, 8
        %612 = vbcast.lane.b32.xlu0 %v606, %s611
        %v613 = vpop.permute.xlu0 %612
        %v614 = vlaneseq
        %v615 = vshrl.u32 %v614, 7
        %v616 = vsub.s32 7, %v615
        %v617 = vrot.slane %v535, %v616
        %619 = vbcast.lane.b32.xlu0 %v617, 256
        %v620 = vpop.permute.xlu0 %619
        %s622 = sor.u32 256, 8
        %623 = vbcast.lane.b32.xlu0 %v617, %s622
        %v624 = vpop.permute.xlu0 %623
        %v641 = vadd.f32 %v519, %v543
        %v642 = vadd.f32 %v520, %v547
        %v643 = vadd.f32 %v521, %v554
        %v644 = vadd.f32 %v522, %v558
        %v645 = vadd.f32 %v523, %v565
        %v646 = vadd.f32 %v524, %v569
        %v647 = vadd.f32 %v525, %v576
        %v648 = vadd.f32 %v526, %v580
        %v649 = vadd.f32 %v527, %v587
        %v650 = vadd.f32 %v528, %v591
        %v651 = vadd.f32 %v529, %v598
        %v652 = vadd.f32 %v530, %v602
        %v653 = vadd.f32 %v531, %v609
        %v654 = vadd.f32 %v532, %v613
        %v655 = vadd.f32 %v533, %v620
        %v656 = vadd.f32 %v534, %v624
        %v657 = vrot.slane %v411, 6
        %v659 = vlaneseq
        %v660 = vshrl.u32 %v659, 7
        %v661 = vsub.s32 0, %v660
        %v662 = vrot.slane %v657, %v661
        %664 = vbcast.lane.b32.xlu0 %v662, 256
        %v665 = vpop.permute.xlu0 %664
        %s667 = sor.u32 256, 8
        %668 = vbcast.lane.b32.xlu0 %v662, %s667
        %v669 = vpop.permute.xlu0 %668
        %v670 = vlaneseq
        %v671 = vshrl.u32 %v670, 7
        %v672 = vsub.s32 1, %v671
        %v673 = vrot.slane %v657, %v672
        %675 = vbcast.lane.b32.xlu0 %v673, 256
        %v676 = vpop.permute.xlu0 %675
        %s678 = sor.u32 256, 8
        %679 = vbcast.lane.b32.xlu0 %v673, %s678
        %v680 = vpop.permute.xlu0 %679
        %v681 = vlaneseq
        %v682 = vshrl.u32 %v681, 7
        %v683 = vsub.s32 2, %v682
        %v684 = vrot.slane %v657, %v683
        %686 = vbcast.lane.b32.xlu0 %v684, 256
        %v687 = vpop.permute.xlu0 %686
        %s689 = sor.u32 256, 8
        %690 = vbcast.lane.b32.xlu0 %v684, %s689
        %v691 = vpop.permute.xlu0 %690
        %v692 = vlaneseq
        %v693 = vshrl.u32 %v692, 7
        %v694 = vsub.s32 3, %v693
        %v695 = vrot.slane %v657, %v694
        %697 = vbcast.lane.b32.xlu0 %v695, 256
        %v698 = vpop.permute.xlu0 %697
        %s700 = sor.u32 256, 8
        %701 = vbcast.lane.b32.xlu0 %v695, %s700
        %v702 = vpop.permute.xlu0 %701
        %v703 = vlaneseq
        %v704 = vshrl.u32 %v703, 7
        %v705 = vsub.s32 4, %v704
        %v706 = vrot.slane %v657, %v705
        %708 = vbcast.lane.b32.xlu0 %v706, 256
        %v709 = vpop.permute.xlu0 %708
        %s711 = sor.u32 256, 8
        %712 = vbcast.lane.b32.xlu0 %v706, %s711
        %v713 = vpop.permute.xlu0 %712
        %v714 = vlaneseq
        %v715 = vshrl.u32 %v714, 7
        %v716 = vsub.s32 5, %v715
        %v717 = vrot.slane %v657, %v716
        %719 = vbcast.lane.b32.xlu0 %v717, 256
        %v720 = vpop.permute.xlu0 %719
        %s722 = sor.u32 256, 8
        %723 = vbcast.lane.b32.xlu0 %v717, %s722
        %v724 = vpop.permute.xlu0 %723
        %v725 = vlaneseq
        %v726 = vshrl.u32 %v725, 7
        %v727 = vsub.s32 6, %v726
        %v728 = vrot.slane %v657, %v727
        %730 = vbcast.lane.b32.xlu0 %v728, 256
        %v731 = vpop.permute.xlu0 %730
        %s733 = sor.u32 256, 8
        %734 = vbcast.lane.b32.xlu0 %v728, %s733
        %v735 = vpop.permute.xlu0 %734
        %v736 = vlaneseq
        %v737 = vshrl.u32 %v736, 7
        %v738 = vsub.s32 7, %v737
        %v739 = vrot.slane %v657, %v738
        %741 = vbcast.lane.b32.xlu0 %v739, 256
        %v742 = vpop.permute.xlu0 %741
        %s744 = sor.u32 256, 8
        %745 = vbcast.lane.b32.xlu0 %v739, %s744
        %v746 = vpop.permute.xlu0 %745
        %v763 = vadd.f32 %v641, %v665
        %v764 = vadd.f32 %v642, %v669
        %v765 = vadd.f32 %v643, %v676
        %v766 = vadd.f32 %v644, %v680
        %v767 = vadd.f32 %v645, %v687
        %v768 = vadd.f32 %v646, %v691
        %v769 = vadd.f32 %v647, %v698
        %v770 = vadd.f32 %v648, %v702
        %v771 = vadd.f32 %v649, %v709
        %v772 = vadd.f32 %v650, %v713
        %v773 = vadd.f32 %v651, %v720
        %v774 = vadd.f32 %v652, %v724
        %v775 = vadd.f32 %v653, %v731
        %v776 = vadd.f32 %v654, %v735
        %v777 = vadd.f32 %v655, %v742
        %v778 = vadd.f32 %v656, %v746
        %v779 = vrot.slane %v411, 2
        %v781 = vlaneseq
        %v782 = vshrl.u32 %v781, 7
        %v783 = vsub.s32 0, %v782
        %v784 = vrot.slane %v779, %v783
        %786 = vbcast.lane.b32.xlu0 %v784, 256
        %v787 = vpop.permute.xlu0 %786
        %s789 = sor.u32 256, 8
        %790 = vbcast.lane.b32.xlu0 %v784, %s789
        %v791 = vpop.permute.xlu0 %790
        %v792 = vlaneseq
        %v793 = vshrl.u32 %v792, 7
        %v794 = vsub.s32 1, %v793
        %v795 = vrot.slane %v779, %v794
        %797 = vbcast.lane.b32.xlu0 %v795, 256
        %v798 = vpop.permute.xlu0 %797
        %s800 = sor.u32 256, 8
        %801 = vbcast.lane.b32.xlu0 %v795, %s800
        %v802 = vpop.permute.xlu0 %801
        %v803 = vlaneseq
        %v804 = vshrl.u32 %v803, 7
        %v805 = vsub.s32 2, %v804
        %v806 = vrot.slane %v779, %v805
        %808 = vbcast.lane.b32.xlu0 %v806, 256
        %v809 = vpop.permute.xlu0 %808
        %s811 = sor.u32 256, 8
        %812 = vbcast.lane.b32.xlu0 %v806, %s811
        %v813 = vpop.permute.xlu0 %812
        %v814 = vlaneseq
        %v815 = vshrl.u32 %v814, 7
        %v816 = vsub.s32 3, %v815
        %v817 = vrot.slane %v779, %v816
        %819 = vbcast.lane.b32.xlu0 %v817, 256
        %v820 = vpop.permute.xlu0 %819
        %s822 = sor.u32 256, 8
        %823 = vbcast.lane.b32.xlu0 %v817, %s822
        %v824 = vpop.permute.xlu0 %823
        %v825 = vlaneseq
        %v826 = vshrl.u32 %v825, 7
        %v827 = vsub.s32 4, %v826
        %v828 = vrot.slane %v779, %v827
        %830 = vbcast.lane.b32.xlu0 %v828, 256
        %v831 = vpop.permute.xlu0 %830
        %s833 = sor.u32 256, 8
        %834 = vbcast.lane.b32.xlu0 %v828, %s833
        %v835 = vpop.permute.xlu0 %834
        %v836 = vlaneseq
        %v837 = vshrl.u32 %v836, 7
        %v838 = vsub.s32 5, %v837
        %v839 = vrot.slane %v779, %v838
        %841 = vbcast.lane.b32.xlu0 %v839, 256
        %v842 = vpop.permute.xlu0 %841
        %s844 = sor.u32 256, 8
        %845 = vbcast.lane.b32.xlu0 %v839, %s844
        %v846 = vpop.permute.xlu0 %845
        %v847 = vlaneseq
        %v848 = vshrl.u32 %v847, 7
        %v849 = vsub.s32 6, %v848
        %v850 = vrot.slane %v779, %v849
        %852 = vbcast.lane.b32.xlu0 %v850, 256
        %v853 = vpop.permute.xlu0 %852
        %s855 = sor.u32 256, 8
        %856 = vbcast.lane.b32.xlu0 %v850, %s855
        %v857 = vpop.permute.xlu0 %856
        %v858 = vlaneseq
        %v859 = vshrl.u32 %v858, 7
        %v860 = vsub.s32 7, %v859
        %v861 = vrot.slane %v779, %v860
        %863 = vbcast.lane.b32.xlu0 %v861, 256
        %v864 = vpop.permute.xlu0 %863
        %s866 = sor.u32 256, 8
        %867 = vbcast.lane.b32.xlu0 %v861, %s866
        %v868 = vpop.permute.xlu0 %867
        %v885 = vadd.f32 %v763, %v787
        %v886 = vadd.f32 %v764, %v791
        %v887 = vadd.f32 %v765, %v798
        %v888 = vadd.f32 %v766, %v802
        %v889 = vadd.f32 %v767, %v809
        %v890 = vadd.f32 %v768, %v813
        %v891 = vadd.f32 %v769, %v820
        %v892 = vadd.f32 %v770, %v824
        %v893 = vadd.f32 %v771, %v831
        %v894 = vadd.f32 %v772, %v835
        %v895 = vadd.f32 %v773, %v842
        %v896 = vadd.f32 %v774, %v846
        %v897 = vadd.f32 %v775, %v853
        %v898 = vadd.f32 %v776, %v857
        %v899 = vadd.f32 %v777, %v864
        %v900 = vadd.f32 %v778, %v868
        %v901 = vlaneseq
        %v902 = vshrl.u32 %v901, 7
        %vm903 = vcmp.eq.s32.totalorder %v902, 0
        %v904 = vadd.f32 %v228, %v230
        %v905 = vadd.f32 %v229, %v231
        %v906 = vsub.f32 %v904, %v240
        %v907 = vsub.f32 %v905, %v241
        %v908 = vsub.f32 %v906, %v238
        %v909 = vsub.f32 %v907, %v239
        %v912 = vlaneseq
        %v913 = vshrl.u32 %v912, 7
        %v914 = vsub.s32 %v323, %v913
        %v915 = vrot.slane %v908, %v914
        %v916 = vlaneseq
        %v917 = vshrl.u32 %v916, 7
        %v918 = vsub.s32 %v328, %v917
        %v919 = vrot.slane %v909, %v918
        %v920 = vsel %vm333, %v919, %v915
        %v921 = vsel %vm400, %v920, %v920
        %v922 = vsel %vm402, %v920, %v921
        %v923 = vsel %vm404, %v920, %v922
        %v924 = vsel %vm406, %v920, %v923
        %v925 = vsel %vm408, %v920, %v924
        %v926 = vsel %vm410, %v920, %v925
        %v928 = vsel %vm903, %v926, 0.0
        %v930 = vlaneseq
        %v931 = vshrl.u32 %v930, 7
        %v932 = vsub.s32 0, %v931
        %v933 = vrot.slane %v928, %v932
        %935 = vbcast.lane.b32.xlu0 %v933, 256
        %v936 = vpop.permute.xlu0 %935
        %s938 = sor.u32 256, 8
        %939 = vbcast.lane.b32.xlu0 %v933, %s938
        %v940 = vpop.permute.xlu0 %939
        %v941 = vlaneseq
        %v942 = vshrl.u32 %v941, 7
        %v943 = vsub.s32 1, %v942
        %v944 = vrot.slane %v928, %v943
        %946 = vbcast.lane.b32.xlu0 %v944, 256
        %v947 = vpop.permute.xlu0 %946
        %s949 = sor.u32 256, 8
        %950 = vbcast.lane.b32.xlu0 %v944, %s949
        %v951 = vpop.permute.xlu0 %950
        %v952 = vlaneseq
        %v953 = vshrl.u32 %v952, 7
        %v954 = vsub.s32 2, %v953
        %v955 = vrot.slane %v928, %v954
        %957 = vbcast.lane.b32.xlu0 %v955, 256
        %v958 = vpop.permute.xlu0 %957
        %s960 = sor.u32 256, 8
        %961 = vbcast.lane.b32.xlu0 %v955, %s960
        %v962 = vpop.permute.xlu0 %961
        %v963 = vlaneseq
        %v964 = vshrl.u32 %v963, 7
        %v965 = vsub.s32 3, %v964
        %v966 = vrot.slane %v928, %v965
        %968 = vbcast.lane.b32.xlu0 %v966, 256
        %v969 = vpop.permute.xlu0 %968
        %s971 = sor.u32 256, 8
        %972 = vbcast.lane.b32.xlu0 %v966, %s971
        %v973 = vpop.permute.xlu0 %972
        %v974 = vlaneseq
        %v975 = vshrl.u32 %v974, 7
        %v976 = vsub.s32 4, %v975
        %v977 = vrot.slane %v928, %v976
        %979 = vbcast.lane.b32.xlu0 %v977, 256
        %v980 = vpop.permute.xlu0 %979
        %s982 = sor.u32 256, 8
        %983 = vbcast.lane.b32.xlu0 %v977, %s982
        %v984 = vpop.permute.xlu0 %983
        %v985 = vlaneseq
        %v986 = vshrl.u32 %v985, 7
        %v987 = vsub.s32 5, %v986
        %v988 = vrot.slane %v928, %v987
        %990 = vbcast.lane.b32.xlu0 %v988, 256
        %v991 = vpop.permute.xlu0 %990
        %s993 = sor.u32 256, 8
        %994 = vbcast.lane.b32.xlu0 %v988, %s993
        %v995 = vpop.permute.xlu0 %994
        %v996 = vlaneseq
        %v997 = vshrl.u32 %v996, 7
        %v998 = vsub.s32 6, %v997
        %v999 = vrot.slane %v928, %v998
        %1001 = vbcast.lane.b32.xlu0 %v999, 256
        %v1002 = vpop.permute.xlu0 %1001
        %s1004 = sor.u32 256, 8
        %1005 = vbcast.lane.b32.xlu0 %v999, %s1004
        %v1006 = vpop.permute.xlu0 %1005
        %v1007 = vlaneseq
        %v1008 = vshrl.u32 %v1007, 7
        %v1009 = vsub.s32 7, %v1008
        %v1010 = vrot.slane %v928, %v1009
        %1012 = vbcast.lane.b32.xlu0 %v1010, 256
        %v1013 = vpop.permute.xlu0 %1012
        %s1015 = sor.u32 256, 8
        %1016 = vbcast.lane.b32.xlu0 %v1010, %s1015
        %v1017 = vpop.permute.xlu0 %1016
        %v1034 = vadd.f32 %v885, %v936
        %v1035 = vadd.f32 %v886, %v940
        %v1036 = vadd.f32 %v887, %v947
        %v1037 = vadd.f32 %v888, %v951
        %v1038 = vadd.f32 %v889, %v958
        %v1039 = vadd.f32 %v890, %v962
        %v1040 = vadd.f32 %v891, %v969
        %v1041 = vadd.f32 %v892, %v973
        %v1042 = vadd.f32 %v893, %v980
        %v1043 = vadd.f32 %v894, %v984
        %v1044 = vadd.f32 %v895, %v991
        %v1045 = vadd.f32 %v896, %v995
        %v1046 = vadd.f32 %v897, %v1002
        %v1047 = vadd.f32 %v898, %v1006
        %v1048 = vadd.f32 %v899, %v1013
        %v1049 = vadd.f32 %v900, %v1017
        %vm1050 = vcmp.eq.s32.totalorder %v902, 1
        %v1051 = vsub.f32 %v228, %v240
        %v1052 = vsub.f32 %v229, %v241
        %v1055 = vlaneseq
        %v1056 = vshrl.u32 %v1055, 7
        %v1057 = vsub.s32 %v323, %v1056
        %v1058 = vrot.slane %v1051, %v1057
        %v1059 = vlaneseq
        %v1060 = vshrl.u32 %v1059, 7
        %v1061 = vsub.s32 %v328, %v1060
        %v1062 = vrot.slane %v1052, %v1061
        %v1063 = vsel %vm333, %v1062, %v1058
        %v1064 = vsel %vm400, %v1063, %v1063
        %v1065 = vsel %vm402, %v1063, %v1064
        %v1066 = vsel %vm404, %v1063, %v1065
        %v1067 = vsel %vm406, %v1063, %v1066
        %v1068 = vsel %vm408, %v1063, %v1067
        %v1069 = vsel %vm410, %v1063, %v1068
        %v1071 = vsel %vm1050, %v1069, 0.0
        %v1073 = vlaneseq
        %v1074 = vshrl.u32 %v1073, 7
        %v1075 = vsub.s32 0, %v1074
        %v1076 = vrot.slane %v1071, %v1075
        %1078 = vbcast.lane.b32.xlu0 %v1076, 256
        %v1079 = vpop.permute.xlu0 %1078
        %s1081 = sor.u32 256, 8
        %1082 = vbcast.lane.b32.xlu0 %v1076, %s1081
        %v1083 = vpop.permute.xlu0 %1082
        %v1084 = vlaneseq
        %v1085 = vshrl.u32 %v1084, 7
        %v1086 = vsub.s32 1, %v1085
        %v1087 = vrot.slane %v1071, %v1086
        %1089 = vbcast.lane.b32.xlu0 %v1087, 256
        %v1090 = vpop.permute.xlu0 %1089
        %s1092 = sor.u32 256, 8
        %1093 = vbcast.lane.b32.xlu0 %v1087, %s1092
        %v1094 = vpop.permute.xlu0 %1093
        %v1095 = vlaneseq
        %v1096 = vshrl.u32 %v1095, 7
        %v1097 = vsub.s32 2, %v1096
        %v1098 = vrot.slane %v1071, %v1097
        %1100 = vbcast.lane.b32.xlu0 %v1098, 256
        %v1101 = vpop.permute.xlu0 %1100
        %s1103 = sor.u32 256, 8
        %1104 = vbcast.lane.b32.xlu0 %v1098, %s1103
        %v1105 = vpop.permute.xlu0 %1104
        %v1106 = vlaneseq
        %v1107 = vshrl.u32 %v1106, 7
        %v1108 = vsub.s32 3, %v1107
        %v1109 = vrot.slane %v1071, %v1108
        %1111 = vbcast.lane.b32.xlu0 %v1109, 256
        %v1112 = vpop.permute.xlu0 %1111
        %s1114 = sor.u32 256, 8
        %1115 = vbcast.lane.b32.xlu0 %v1109, %s1114
        %v1116 = vpop.permute.xlu0 %1115
        %v1117 = vlaneseq
        %v1118 = vshrl.u32 %v1117, 7
        %v1119 = vsub.s32 4, %v1118
        %v1120 = vrot.slane %v1071, %v1119
        %1122 = vbcast.lane.b32.xlu0 %v1120, 256
        %v1123 = vpop.permute.xlu0 %1122
        %s1125 = sor.u32 256, 8
        %1126 = vbcast.lane.b32.xlu0 %v1120, %s1125
        %v1127 = vpop.permute.xlu0 %1126
        %v1128 = vlaneseq
        %v1129 = vshrl.u32 %v1128, 7
        %v1130 = vsub.s32 5, %v1129
        %v1131 = vrot.slane %v1071, %v1130
        %1133 = vbcast.lane.b32.xlu0 %v1131, 256
        %v1134 = vpop.permute.xlu0 %1133
        %s1136 = sor.u32 256, 8
        %1137 = vbcast.lane.b32.xlu0 %v1131, %s1136
        %v1138 = vpop.permute.xlu0 %1137
        %v1139 = vlaneseq
        %v1140 = vshrl.u32 %v1139, 7
        %v1141 = vsub.s32 6, %v1140
        %v1142 = vrot.slane %v1071, %v1141
        %1144 = vbcast.lane.b32.xlu0 %v1142, 256
        %v1145 = vpop.permute.xlu0 %1144
        %s1147 = sor.u32 256, 8
        %1148 = vbcast.lane.b32.xlu0 %v1142, %s1147
        %v1149 = vpop.permute.xlu0 %1148
        %v1150 = vlaneseq
        %v1151 = vshrl.u32 %v1150, 7
        %v1152 = vsub.s32 7, %v1151
        %v1153 = vrot.slane %v1071, %v1152
        %1155 = vbcast.lane.b32.xlu0 %v1153, 256
        %v1156 = vpop.permute.xlu0 %1155
        %s1158 = sor.u32 256, 8
        %1159 = vbcast.lane.b32.xlu0 %v1153, %s1158
        %v1160 = vpop.permute.xlu0 %1159
        %v1177 = vadd.f32 %v1034, %v1079
        %v1178 = vadd.f32 %v1035, %v1083
        %v1179 = vadd.f32 %v1036, %v1090
        %v1180 = vadd.f32 %v1037, %v1094
        %v1181 = vadd.f32 %v1038, %v1101
        %v1182 = vadd.f32 %v1039, %v1105
        %v1183 = vadd.f32 %v1040, %v1112
        %v1184 = vadd.f32 %v1041, %v1116
        %v1185 = vadd.f32 %v1042, %v1123
        %v1186 = vadd.f32 %v1043, %v1127
        %v1187 = vadd.f32 %v1044, %v1134
        %v1188 = vadd.f32 %v1045, %v1138
        %v1189 = vadd.f32 %v1046, %v1145
        %v1190 = vadd.f32 %v1047, %v1149
        %v1191 = vadd.f32 %v1048, %v1156
        %v1192 = vadd.f32 %v1049, %v1160
        %vm1193 = vcmp.eq.s32.totalorder %v902, 6
        %v1194 = vsub.f32 %v238, %v226
        %v1195 = vsub.f32 %v239, %v227
        %v1198 = vlaneseq
        %v1199 = vshrl.u32 %v1198, 7
        %v1200 = vsub.s32 %v323, %v1199
        %v1201 = vrot.slane %v1194, %v1200
        %v1202 = vlaneseq
        %v1203 = vshrl.u32 %v1202, 7
        %v1204 = vsub.s32 %v328, %v1203
        %v1205 = vrot.slane %v1195, %v1204
        %v1206 = vsel %vm333, %v1205, %v1201
        %v1207 = vsel %vm400, %v1206, %v1206
        %v1208 = vsel %vm402, %v1206, %v1207
        %v1209 = vsel %vm404, %v1206, %v1208
        %v1210 = vsel %vm406, %v1206, %v1209
        %v1211 = vsel %vm408, %v1206, %v1210
        %v1212 = vsel %vm410, %v1206, %v1211
        %v1214 = vsel %vm1193, %v1212, 0.0
        %v1216 = vlaneseq
        %v1217 = vshrl.u32 %v1216, 7
        %v1218 = vsub.s32 0, %v1217
        %v1219 = vrot.slane %v1214, %v1218
        %1221 = vbcast.lane.b32.xlu0 %v1219, 256
        %v1222 = vpop.permute.xlu0 %1221
        %s1224 = sor.u32 256, 8
        %1225 = vbcast.lane.b32.xlu0 %v1219, %s1224
        %v1226 = vpop.permute.xlu0 %1225
        %v1227 = vlaneseq
        %v1228 = vshrl.u32 %v1227, 7
        %v1229 = vsub.s32 1, %v1228
        %v1230 = vrot.slane %v1214, %v1229
        %1232 = vbcast.lane.b32.xlu0 %v1230, 256
        %v1233 = vpop.permute.xlu0 %1232
        %s1235 = sor.u32 256, 8
        %1236 = vbcast.lane.b32.xlu0 %v1230, %s1235
        %v1237 = vpop.permute.xlu0 %1236
        %v1238 = vlaneseq
        %v1239 = vshrl.u32 %v1238, 7
        %v1240 = vsub.s32 2, %v1239
        %v1241 = vrot.slane %v1214, %v1240
        %1243 = vbcast.lane.b32.xlu0 %v1241, 256
        %v1244 = vpop.permute.xlu0 %1243
        %s1246 = sor.u32 256, 8
        %1247 = vbcast.lane.b32.xlu0 %v1241, %s1246
        %v1248 = vpop.permute.xlu0 %1247
        %v1249 = vlaneseq
        %v1250 = vshrl.u32 %v1249, 7
        %v1251 = vsub.s32 3, %v1250
        %v1252 = vrot.slane %v1214, %v1251
        %1254 = vbcast.lane.b32.xlu0 %v1252, 256
        %v1255 = vpop.permute.xlu0 %1254
        %s1257 = sor.u32 256, 8
        %1258 = vbcast.lane.b32.xlu0 %v1252, %s1257
        %v1259 = vpop.permute.xlu0 %1258
        %v1260 = vlaneseq
        %v1261 = vshrl.u32 %v1260, 7
        %v1262 = vsub.s32 4, %v1261
        %v1263 = vrot.slane %v1214, %v1262
        %1265 = vbcast.lane.b32.xlu0 %v1263, 256
        %v1266 = vpop.permute.xlu0 %1265
        %s1268 = sor.u32 256, 8
        %1269 = vbcast.lane.b32.xlu0 %v1263, %s1268
        %v1270 = vpop.permute.xlu0 %1269
        %v1271 = vlaneseq
        %v1272 = vshrl.u32 %v1271, 7
        %v1273 = vsub.s32 5, %v1272
        %v1274 = vrot.slane %v1214, %v1273
        %1276 = vbcast.lane.b32.xlu0 %v1274, 256
        %v1277 = vpop.permute.xlu0 %1276
        %s1279 = sor.u32 256, 8
        %1280 = vbcast.lane.b32.xlu0 %v1274, %s1279
        %v1281 = vpop.permute.xlu0 %1280
        %v1282 = vlaneseq
        %v1283 = vshrl.u32 %v1282, 7
        %v1284 = vsub.s32 6, %v1283
        %v1285 = vrot.slane %v1214, %v1284
        %1287 = vbcast.lane.b32.xlu0 %v1285, 256
        %v1288 = vpop.permute.xlu0 %1287
        %s1290 = sor.u32 256, 8
        %1291 = vbcast.lane.b32.xlu0 %v1285, %s1290
        %v1292 = vpop.permute.xlu0 %1291
        %v1293 = vlaneseq
        %v1294 = vshrl.u32 %v1293, 7
        %v1295 = vsub.s32 7, %v1294
        %v1296 = vrot.slane %v1214, %v1295
        %1298 = vbcast.lane.b32.xlu0 %v1296, 256
        %v1299 = vpop.permute.xlu0 %1298
        %s1301 = sor.u32 256, 8
        %1302 = vbcast.lane.b32.xlu0 %v1296, %s1301
        %v1303 = vpop.permute.xlu0 %1302
        %v1320 = vadd.f32 %v1177, %v1222
        %v1321 = vadd.f32 %v1178, %v1226
        %v1322 = vadd.f32 %v1179, %v1233
        %v1323 = vadd.f32 %v1180, %v1237
        %v1324 = vadd.f32 %v1181, %v1244
        %v1325 = vadd.f32 %v1182, %v1248
        %v1326 = vadd.f32 %v1183, %v1255
        %v1327 = vadd.f32 %v1184, %v1259
        %v1328 = vadd.f32 %v1185, %v1266
        %v1329 = vadd.f32 %v1186, %v1270
        %v1330 = vadd.f32 %v1187, %v1277
        %v1331 = vadd.f32 %v1188, %v1281
        %v1332 = vadd.f32 %v1189, %v1288
        %v1333 = vadd.f32 %v1190, %v1292
        %v1334 = vadd.f32 %v1191, %v1299
        %v1335 = vadd.f32 %v1192, %v1303
        %vm1336 = vcmp.eq.s32.totalorder %v902, 7
        %v1337 = vadd.f32 %v238, %v236
        %v1338 = vadd.f32 %v239, %v237
        %v1339 = vsub.f32 %v1337, %v226
        %v1340 = vsub.f32 %v1338, %v227
        %v1341 = vsub.f32 %v1339, %v228
        %v1342 = vsub.f32 %v1340, %v229
        %v1345 = vlaneseq
        %v1346 = vshrl.u32 %v1345, 7
        %v1347 = vsub.s32 %v323, %v1346
        %v1348 = vrot.slane %v1341, %v1347
        %v1349 = vlaneseq
        %v1350 = vshrl.u32 %v1349, 7
        %v1351 = vsub.s32 %v328, %v1350
        %v1352 = vrot.slane %v1342, %v1351
        %v1353 = vsel %vm333, %v1352, %v1348
        %v1354 = vsel %vm400, %v1353, %v1353
        %v1355 = vsel %vm402, %v1353, %v1354
        %v1356 = vsel %vm404, %v1353, %v1355
        %v1357 = vsel %vm406, %v1353, %v1356
        %v1358 = vsel %vm408, %v1353, %v1357
        %v1359 = vsel %vm410, %v1353, %v1358
        %v1361 = vsel %vm1336, %v1359, 0.0
        %v1363 = vlaneseq
        %v1364 = vshrl.u32 %v1363, 7
        %v1365 = vsub.s32 0, %v1364
        %v1366 = vrot.slane %v1361, %v1365
        %1368 = vbcast.lane.b32.xlu0 %v1366, 256
        %v1369 = vpop.permute.xlu0 %1368
        %s1371 = sor.u32 256, 8
        %1372 = vbcast.lane.b32.xlu0 %v1366, %s1371
        %v1373 = vpop.permute.xlu0 %1372
        %v1374 = vlaneseq
        %v1375 = vshrl.u32 %v1374, 7
        %v1376 = vsub.s32 1, %v1375
        %v1377 = vrot.slane %v1361, %v1376
        %1379 = vbcast.lane.b32.xlu0 %v1377, 256
        %v1380 = vpop.permute.xlu0 %1379
        %s1382 = sor.u32 256, 8
        %1383 = vbcast.lane.b32.xlu0 %v1377, %s1382
        %v1384 = vpop.permute.xlu0 %1383
        %v1385 = vlaneseq
        %v1386 = vshrl.u32 %v1385, 7
        %v1387 = vsub.s32 2, %v1386
        %v1388 = vrot.slane %v1361, %v1387
        %1390 = vbcast.lane.b32.xlu0 %v1388, 256
        %v1391 = vpop.permute.xlu0 %1390
        %s1393 = sor.u32 256, 8
        %1394 = vbcast.lane.b32.xlu0 %v1388, %s1393
        %v1395 = vpop.permute.xlu0 %1394
        %v1396 = vlaneseq
        %v1397 = vshrl.u32 %v1396, 7
        %v1398 = vsub.s32 3, %v1397
        %v1399 = vrot.slane %v1361, %v1398
        %1401 = vbcast.lane.b32.xlu0 %v1399, 256
        %v1402 = vpop.permute.xlu0 %1401
        %s1404 = sor.u32 256, 8
        %1405 = vbcast.lane.b32.xlu0 %v1399, %s1404
        %v1406 = vpop.permute.xlu0 %1405
        %v1407 = vlaneseq
        %v1408 = vshrl.u32 %v1407, 7
        %v1409 = vsub.s32 4, %v1408
        %v1410 = vrot.slane %v1361, %v1409
        %1412 = vbcast.lane.b32.xlu0 %v1410, 256
        %v1413 = vpop.permute.xlu0 %1412
        %s1415 = sor.u32 256, 8
        %1416 = vbcast.lane.b32.xlu0 %v1410, %s1415
        %v1417 = vpop.permute.xlu0 %1416
        %v1418 = vlaneseq
        %v1419 = vshrl.u32 %v1418, 7
        %v1420 = vsub.s32 5, %v1419
        %v1421 = vrot.slane %v1361, %v1420
        %1423 = vbcast.lane.b32.xlu0 %v1421, 256
        %v1424 = vpop.permute.xlu0 %1423
        %s1426 = sor.u32 256, 8
        %1427 = vbcast.lane.b32.xlu0 %v1421, %s1426
        %v1428 = vpop.permute.xlu0 %1427
        %v1429 = vlaneseq
        %v1430 = vshrl.u32 %v1429, 7
        %v1431 = vsub.s32 6, %v1430
        %v1432 = vrot.slane %v1361, %v1431
        %1434 = vbcast.lane.b32.xlu0 %v1432, 256
        %v1435 = vpop.permute.xlu0 %1434
        %s1437 = sor.u32 256, 8
        %1438 = vbcast.lane.b32.xlu0 %v1432, %s1437
        %v1439 = vpop.permute.xlu0 %1438
        %v1440 = vlaneseq
        %v1441 = vshrl.u32 %v1440, 7
        %v1442 = vsub.s32 7, %v1441
        %v1443 = vrot.slane %v1361, %v1442
        %1445 = vbcast.lane.b32.xlu0 %v1443, 256
        %v1446 = vpop.permute.xlu0 %1445
        %s1448 = sor.u32 256, 8
        %1449 = vbcast.lane.b32.xlu0 %v1443, %s1448
        %v1450 = vpop.permute.xlu0 %1449
        %v1467 = vadd.f32 %v1320, %v1369
        %v1468 = vadd.f32 %v1321, %v1373
        %v1469 = vadd.f32 %v1322, %v1380
        %v1470 = vadd.f32 %v1323, %v1384
        %v1471 = vadd.f32 %v1324, %v1391
        %v1472 = vadd.f32 %v1325, %v1395
        %v1473 = vadd.f32 %v1326, %v1402
        %v1474 = vadd.f32 %v1327, %v1406
        %v1475 = vadd.f32 %v1328, %v1413
        %v1476 = vadd.f32 %v1329, %v1417
        %v1477 = vadd.f32 %v1330, %v1424
        %v1478 = vadd.f32 %v1331, %v1428
        %v1479 = vadd.f32 %v1332, %v1435
        %v1480 = vadd.f32 %v1333, %v1439
        %v1481 = vadd.f32 %v1334, %v1446
        %v1482 = vadd.f32 %v1335, %v1450
        %1499 = vset.pattern.permute.xlu0 0
        %1500 = vperm.xlu0 %1499, %v1467
        %v1501 = vpop.permute.xlu0 %1500
        %1502 = vset.pattern.permute.xlu0 0
        %1503 = vperm.xlu0 %1502, %v1468
        %v1504 = vpop.permute.xlu0 %1503
        %1505 = vset.pattern.permute.xlu0 0
        %1506 = vperm.xlu0 %1505, %v1469
        %v1507 = vpop.permute.xlu0 %1506
        %1508 = vset.pattern.permute.xlu0 0
        %1509 = vperm.xlu0 %1508, %v1470
        %v1510 = vpop.permute.xlu0 %1509
        %1511 = vset.pattern.permute.xlu0 0
        %1512 = vperm.xlu0 %1511, %v1471
        %v1513 = vpop.permute.xlu0 %1512
        %1514 = vset.pattern.permute.xlu0 0
        %1515 = vperm.xlu0 %1514, %v1472
        %v1516 = vpop.permute.xlu0 %1515
        %1517 = vset.pattern.permute.xlu0 0
        %1518 = vperm.xlu0 %1517, %v1473
        %v1519 = vpop.permute.xlu0 %1518
        %1520 = vset.pattern.permute.xlu0 0
        %1521 = vperm.xlu0 %1520, %v1474
        %v1522 = vpop.permute.xlu0 %1521
        %1523 = vset.pattern.permute.xlu0 0
        %1524 = vperm.xlu0 %1523, %v1475
        %v1525 = vpop.permute.xlu0 %1524
        %1526 = vset.pattern.permute.xlu0 0
        %1527 = vperm.xlu0 %1526, %v1476
        %v1528 = vpop.permute.xlu0 %1527
        %1529 = vset.pattern.permute.xlu0 0
        %1530 = vperm.xlu0 %1529, %v1477
        %v1531 = vpop.permute.xlu0 %1530
        %1532 = vset.pattern.permute.xlu0 0
        %1533 = vperm.xlu0 %1532, %v1478
        %v1534 = vpop.permute.xlu0 %1533
        %1535 = vset.pattern.permute.xlu0 0
        %1536 = vperm.xlu0 %1535, %v1479
        %v1537 = vpop.permute.xlu0 %1536
        %1538 = vset.pattern.permute.xlu0 0
        %1539 = vperm.xlu0 %1538, %v1480
        %v1540 = vpop.permute.xlu0 %1539
        %1541 = vset.pattern.permute.xlu0 0
        %1542 = vperm.xlu0 %1541, %v1481
        %v1543 = vpop.permute.xlu0 %1542
        %1544 = vset.pattern.permute.xlu0 0
        %1545 = vperm.xlu0 %1544, %v1482
        %v1546 = vpop.permute.xlu0 %1545
        %v1547 = vlaneseq
        %v1548 = vshrl.u32 %v1547, 7
        %v1549 = vsub.s32 %v323, %v1548
        %v1550 = vrot.slane %v1501, %v1549
        %v1551 = vlaneseq
        %v1552 = vshrl.u32 %v1551, 7
        %v1553 = vsub.s32 %v328, %v1552
        %v1554 = vrot.slane %v1504, %v1553
        %v1555 = vsel %vm333, %v1554, %v1550
        %v1556 = vlaneseq
        %v1557 = vshrl.u32 %v1556, 7
        %v1558 = vsub.s32 %v323, %v1557
        %v1559 = vrot.slane %v1507, %v1558
        %v1560 = vlaneseq
        %v1561 = vshrl.u32 %v1560, 7
        %v1562 = vsub.s32 %v328, %v1561
        %v1563 = vrot.slane %v1510, %v1562
        %v1564 = vsel %vm333, %v1563, %v1559
        %v1565 = vlaneseq
        %v1566 = vshrl.u32 %v1565, 7
        %v1567 = vsub.s32 %v323, %v1566
        %v1568 = vrot.slane %v1513, %v1567
        %v1569 = vlaneseq
        %v1570 = vshrl.u32 %v1569, 7
        %v1571 = vsub.s32 %v328, %v1570
        %v1572 = vrot.slane %v1516, %v1571
        %v1573 = vsel %vm333, %v1572, %v1568
        %v1574 = vlaneseq
        %v1575 = vshrl.u32 %v1574, 7
        %v1576 = vsub.s32 %v323, %v1575
        %v1577 = vrot.slane %v1519, %v1576
        %v1578 = vlaneseq
        %v1579 = vshrl.u32 %v1578, 7
        %v1580 = vsub.s32 %v328, %v1579
        %v1581 = vrot.slane %v1522, %v1580
        %v1582 = vsel %vm333, %v1581, %v1577
        %v1583 = vlaneseq
        %v1584 = vshrl.u32 %v1583, 7
        %v1585 = vsub.s32 %v323, %v1584
        %v1586 = vrot.slane %v1525, %v1585
        %v1587 = vlaneseq
        %v1588 = vshrl.u32 %v1587, 7
        %v1589 = vsub.s32 %v328, %v1588
        %v1590 = vrot.slane %v1528, %v1589
        %v1591 = vsel %vm333, %v1590, %v1586
        %v1592 = vlaneseq
        %v1593 = vshrl.u32 %v1592, 7
        %v1594 = vsub.s32 %v323, %v1593
        %v1595 = vrot.slane %v1531, %v1594
        %v1596 = vlaneseq
        %v1597 = vshrl.u32 %v1596, 7
        %v1598 = vsub.s32 %v328, %v1597
        %v1599 = vrot.slane %v1534, %v1598
        %v1600 = vsel %vm333, %v1599, %v1595
        %v1601 = vlaneseq
        %v1602 = vshrl.u32 %v1601, 7
        %v1603 = vsub.s32 %v323, %v1602
        %v1604 = vrot.slane %v1537, %v1603
        %v1605 = vlaneseq
        %v1606 = vshrl.u32 %v1605, 7
        %v1607 = vsub.s32 %v328, %v1606
        %v1608 = vrot.slane %v1540, %v1607
        %v1609 = vsel %vm333, %v1608, %v1604
        %v1610 = vlaneseq
        %v1611 = vshrl.u32 %v1610, 7
        %v1612 = vsub.s32 %v323, %v1611
        %v1613 = vrot.slane %v1543, %v1612
        %v1614 = vlaneseq
        %v1615 = vshrl.u32 %v1614, 7
        %v1616 = vsub.s32 %v328, %v1615
        %v1617 = vrot.slane %v1546, %v1616
        %v1618 = vsel %vm333, %v1617, %v1613
        %v1619 = vsel %vm398, %v1564, %v1555
        %v1620 = vsel %vm400, %v1573, %v1619
        %v1621 = vsel %vm402, %v1582, %v1620
        %v1622 = vsel %vm404, %v1591, %v1621
        %v1623 = vsel %vm406, %v1600, %v1622
        %v1624 = vsel %vm408, %v1609, %v1623
        %v1625 = vsel %vm410, %v1618, %v1624
        %vm1627 = vcmask 1047680
        %1628 = vrot.lane.b32.xlu0 %v1625, 16
        %v1629 = vpop.permute.xlu0 %1628
        %v1630 = vsel %vm1627, %v1629, %v1625
        %1631 = vrot.lane.b32.xlu0 %v1630, 16
        %v1632 = vpop.permute.xlu0 %1631
        %v1633 = vsel %vm1627, %v1632, %v1625
        %v1635 = vlaneseq
        %v1636 = vshrl.u32 %v1635, 7
        %v1637 = vsub.s32 0, %v1636
        %v1638 = vrot.slane %v1633, %v1637
        %s1640 = sor.u32 256, 15
        %1641 = vbcast.lane.b32.xlu0 %v1638, %s1640
        %v1642 = vpop.permute.xlu0 %1641
        %s1644 = sor.u32 256, 23
        %1645 = vbcast.lane.b32.xlu0 %v1638, %s1644
        %v1646 = vpop.permute.xlu0 %1645
        %v1647 = vlaneseq
        %v1648 = vshrl.u32 %v1647, 7
        %v1649 = vsub.s32 1, %v1648
        %v1650 = vrot.slane %v1633, %v1649
        %s1652 = sor.u32 256, 15
        %1653 = vbcast.lane.b32.xlu0 %v1650, %s1652
        %v1654 = vpop.permute.xlu0 %1653
        %s1656 = sor.u32 256, 23
        %1657 = vbcast.lane.b32.xlu0 %v1650, %s1656
        %v1658 = vpop.permute.xlu0 %1657
        %v1659 = vlaneseq
        %v1660 = vshrl.u32 %v1659, 7
        %v1661 = vsub.s32 2, %v1660
        %v1662 = vrot.slane %v1633, %v1661
        %s1664 = sor.u32 256, 15
        %1665 = vbcast.lane.b32.xlu0 %v1662, %s1664
        %v1666 = vpop.permute.xlu0 %1665
        %s1668 = sor.u32 256, 23
        %1669 = vbcast.lane.b32.xlu0 %v1662, %s1668
        %v1670 = vpop.permute.xlu0 %1669
        %v1671 = vlaneseq
        %v1672 = vshrl.u32 %v1671, 7
        %v1673 = vsub.s32 3, %v1672
        %v1674 = vrot.slane %v1633, %v1673
        %s1676 = sor.u32 256, 15
        %1677 = vbcast.lane.b32.xlu0 %v1674, %s1676
        %v1678 = vpop.permute.xlu0 %1677
        %s1680 = sor.u32 256, 23
        %1681 = vbcast.lane.b32.xlu0 %v1674, %s1680
        %v1682 = vpop.permute.xlu0 %1681
        %v1683 = vlaneseq
        %v1684 = vshrl.u32 %v1683, 7
        %v1685 = vsub.s32 4, %v1684
        %v1686 = vrot.slane %v1633, %v1685
        %s1688 = sor.u32 256, 15
        %1689 = vbcast.lane.b32.xlu0 %v1686, %s1688
        %v1690 = vpop.permute.xlu0 %1689
        %s1692 = sor.u32 256, 23
        %1693 = vbcast.lane.b32.xlu0 %v1686, %s1692
        %v1694 = vpop.permute.xlu0 %1693
        %v1695 = vlaneseq
        %v1696 = vshrl.u32 %v1695, 7
        %v1697 = vsub.s32 5, %v1696
        %v1698 = vrot.slane %v1633, %v1697
        %s1700 = sor.u32 256, 15
        %1701 = vbcast.lane.b32.xlu0 %v1698, %s1700
        %v1702 = vpop.permute.xlu0 %1701
        %s1704 = sor.u32 256, 23
        %1705 = vbcast.lane.b32.xlu0 %v1698, %s1704
        %v1706 = vpop.permute.xlu0 %1705
        %v1707 = vlaneseq
        %v1708 = vshrl.u32 %v1707, 7
        %v1709 = vsub.s32 6, %v1708
        %v1710 = vrot.slane %v1633, %v1709
        %s1712 = sor.u32 256, 15
        %1713 = vbcast.lane.b32.xlu0 %v1710, %s1712
        %v1714 = vpop.permute.xlu0 %1713
        %s1716 = sor.u32 256, 23
        %1717 = vbcast.lane.b32.xlu0 %v1710, %s1716
        %v1718 = vpop.permute.xlu0 %1717
        %v1719 = vlaneseq
        %v1720 = vshrl.u32 %v1719, 7
        %v1721 = vsub.s32 7, %v1720
        %v1722 = vrot.slane %v1633, %v1721
        %s1724 = sor.u32 256, 15
        %1725 = vbcast.lane.b32.xlu0 %v1722, %s1724
        %v1726 = vpop.permute.xlu0 %1725
        %s1728 = sor.u32 256, 23
        %1729 = vbcast.lane.b32.xlu0 %v1722, %s1728
        %v1730 = vpop.permute.xlu0 %1729
        %v1747 = vadd.f32 %v1467, %v1642
        %v1748 = vadd.f32 %v1468, %v1646
        %v1749 = vadd.f32 %v1469, %v1654
        %v1750 = vadd.f32 %v1470, %v1658
        %v1751 = vadd.f32 %v1471, %v1666
        %v1752 = vadd.f32 %v1472, %v1670
        %v1753 = vadd.f32 %v1473, %v1678
        %v1754 = vadd.f32 %v1474, %v1682
        %v1755 = vadd.f32 %v1475, %v1690
        %v1756 = vadd.f32 %v1476, %v1694
        %v1757 = vadd.f32 %v1477, %v1702
        %v1758 = vadd.f32 %v1478, %v1706
        %v1759 = vadd.f32 %v1479, %v1714
        %v1760 = vadd.f32 %v1480, %v1718
        %v1761 = vadd.f32 %v1481, %v1726
        %v1762 = vadd.f32 %v1482, %v1730
        %s1764 = sor.u32 256, 1
        %1765 = vbcast.lane.b32.xlu0 %v1638, %s1764
        %v1766 = vpop.permute.xlu0 %1765
        %s1768 = sor.u32 256, 9
        %1769 = vbcast.lane.b32.xlu0 %v1638, %s1768
        %v1770 = vpop.permute.xlu0 %1769
        %s1772 = sor.u32 256, 1
        %1773 = vbcast.lane.b32.xlu0 %v1650, %s1772
        %v1774 = vpop.permute.xlu0 %1773
        %s1776 = sor.u32 256, 9
        %1777 = vbcast.lane.b32.xlu0 %v1650, %s1776
        %v1778 = vpop.permute.xlu0 %1777
        %s1780 = sor.u32 256, 1
        %1781 = vbcast.lane.b32.xlu0 %v1662, %s1780
        %v1782 = vpop.permute.xlu0 %1781
        %s1784 = sor.u32 256, 9
        %1785 = vbcast.lane.b32.xlu0 %v1662, %s1784
        %v1786 = vpop.permute.xlu0 %1785
        %s1788 = sor.u32 256, 1
        %1789 = vbcast.lane.b32.xlu0 %v1674, %s1788
        %v1790 = vpop.permute.xlu0 %1789
        %s1792 = sor.u32 256, 9
        %1793 = vbcast.lane.b32.xlu0 %v1674, %s1792
        %v1794 = vpop.permute.xlu0 %1793
        %s1796 = sor.u32 256, 1
        %1797 = vbcast.lane.b32.xlu0 %v1686, %s1796
        %v1798 = vpop.permute.xlu0 %1797
        %s1800 = sor.u32 256, 9
        %1801 = vbcast.lane.b32.xlu0 %v1686, %s1800
        %v1802 = vpop.permute.xlu0 %1801
        %s1804 = sor.u32 256, 1
        %1805 = vbcast.lane.b32.xlu0 %v1698, %s1804
        %v1806 = vpop.permute.xlu0 %1805
        %s1808 = sor.u32 256, 9
        %1809 = vbcast.lane.b32.xlu0 %v1698, %s1808
        %v1810 = vpop.permute.xlu0 %1809
        %s1812 = sor.u32 256, 1
        %1813 = vbcast.lane.b32.xlu0 %v1710, %s1812
        %v1814 = vpop.permute.xlu0 %1813
        %s1816 = sor.u32 256, 9
        %1817 = vbcast.lane.b32.xlu0 %v1710, %s1816
        %v1818 = vpop.permute.xlu0 %1817
        %s1820 = sor.u32 256, 1
        %1821 = vbcast.lane.b32.xlu0 %v1722, %s1820
        %v1822 = vpop.permute.xlu0 %1821
        %s1824 = sor.u32 256, 9
        %1825 = vbcast.lane.b32.xlu0 %v1722, %s1824
        %v1826 = vpop.permute.xlu0 %1825
        %v1843 = vadd.f32 %v1747, %v1766
        %v1844 = vadd.f32 %v1748, %v1770
        %v1845 = vadd.f32 %v1749, %v1774
        %v1846 = vadd.f32 %v1750, %v1778
        %v1847 = vadd.f32 %v1751, %v1782
        %v1848 = vadd.f32 %v1752, %v1786
        %v1849 = vadd.f32 %v1753, %v1790
        %v1850 = vadd.f32 %v1754, %v1794
        %v1851 = vadd.f32 %v1755, %v1798
        %v1852 = vadd.f32 %v1756, %v1802
        %v1853 = vadd.f32 %v1757, %v1806
        %v1854 = vadd.f32 %v1758, %v1810
        %v1855 = vadd.f32 %v1759, %v1814
        %v1856 = vadd.f32 %v1760, %v1818
        %v1857 = vadd.f32 %v1761, %v1822
        %v1858 = vadd.f32 %v1762, %v1826
        %s1860 = sor.u32 256, 14
        %1861 = vbcast.lane.b32.xlu0 %v1638, %s1860
        %v1862 = vpop.permute.xlu0 %1861
        %s1864 = sor.u32 256, 22
        %1865 = vbcast.lane.b32.xlu0 %v1638, %s1864
        %v1866 = vpop.permute.xlu0 %1865
        %s1868 = sor.u32 256, 14
        %1869 = vbcast.lane.b32.xlu0 %v1650, %s1868
        %v1870 = vpop.permute.xlu0 %1869
        %s1872 = sor.u32 256, 22
        %1873 = vbcast.lane.b32.xlu0 %v1650, %s1872
        %v1874 = vpop.permute.xlu0 %1873
        %s1876 = sor.u32 256, 14
        %1877 = vbcast.lane.b32.xlu0 %v1662, %s1876
        %v1878 = vpop.permute.xlu0 %1877
        %s1880 = sor.u32 256, 22
        %1881 = vbcast.lane.b32.xlu0 %v1662, %s1880
        %v1882 = vpop.permute.xlu0 %1881
        %s1884 = sor.u32 256, 14
        %1885 = vbcast.lane.b32.xlu0 %v1674, %s1884
        %v1886 = vpop.permute.xlu0 %1885
        %s1888 = sor.u32 256, 22
        %1889 = vbcast.lane.b32.xlu0 %v1674, %s1888
        %v1890 = vpop.permute.xlu0 %1889
        %s1892 = sor.u32 256, 14
        %1893 = vbcast.lane.b32.xlu0 %v1686, %s1892
        %v1894 = vpop.permute.xlu0 %1893
        %s1896 = sor.u32 256, 22
        %1897 = vbcast.lane.b32.xlu0 %v1686, %s1896
        %v1898 = vpop.permute.xlu0 %1897
        %s1900 = sor.u32 256, 14
        %1901 = vbcast.lane.b32.xlu0 %v1698, %s1900
        %v1902 = vpop.permute.xlu0 %1901
        %s1904 = sor.u32 256, 22
        %1905 = vbcast.lane.b32.xlu0 %v1698, %s1904
        %v1906 = vpop.permute.xlu0 %1905
        %s1908 = sor.u32 256, 14
        %1909 = vbcast.lane.b32.xlu0 %v1710, %s1908
        %v1910 = vpop.permute.xlu0 %1909
        %s1912 = sor.u32 256, 22
        %1913 = vbcast.lane.b32.xlu0 %v1710, %s1912
        %v1914 = vpop.permute.xlu0 %1913
        %s1916 = sor.u32 256, 14
        %1917 = vbcast.lane.b32.xlu0 %v1722, %s1916
        %v1918 = vpop.permute.xlu0 %1917
        %s1920 = sor.u32 256, 22
        %1921 = vbcast.lane.b32.xlu0 %v1722, %s1920
        %v1922 = vpop.permute.xlu0 %1921
        %v1939 = vadd.f32 %v1843, %v1862
        %v1940 = vadd.f32 %v1844, %v1866
        %v1941 = vadd.f32 %v1845, %v1870
        %v1942 = vadd.f32 %v1846, %v1874
        %v1943 = vadd.f32 %v1847, %v1878
        %v1944 = vadd.f32 %v1848, %v1882
        %v1945 = vadd.f32 %v1849, %v1886
        %v1946 = vadd.f32 %v1850, %v1890
        %v1947 = vadd.f32 %v1851, %v1894
        %v1948 = vadd.f32 %v1852, %v1898
        %v1949 = vadd.f32 %v1853, %v1902
        %v1950 = vadd.f32 %v1854, %v1906
        %v1951 = vadd.f32 %v1855, %v1910
        %v1952 = vadd.f32 %v1856, %v1914
        %v1953 = vadd.f32 %v1857, %v1918
        %v1954 = vadd.f32 %v1858, %v1922
        %s1956 = sor.u32 256, 2
        %1957 = vbcast.lane.b32.xlu0 %v1638, %s1956
        %v1958 = vpop.permute.xlu0 %1957
        %s1960 = sor.u32 256, 10
        %1961 = vbcast.lane.b32.xlu0 %v1638, %s1960
        %v1962 = vpop.permute.xlu0 %1961
        %s1964 = sor.u32 256, 2
        %1965 = vbcast.lane.b32.xlu0 %v1650, %s1964
        %v1966 = vpop.permute.xlu0 %1965
        %s1968 = sor.u32 256, 10
        %1969 = vbcast.lane.b32.xlu0 %v1650, %s1968
        %v1970 = vpop.permute.xlu0 %1969
        %s1972 = sor.u32 256, 2
        %1973 = vbcast.lane.b32.xlu0 %v1662, %s1972
        %v1974 = vpop.permute.xlu0 %1973
        %s1976 = sor.u32 256, 10
        %1977 = vbcast.lane.b32.xlu0 %v1662, %s1976
        %v1978 = vpop.permute.xlu0 %1977
        %s1980 = sor.u32 256, 2
        %1981 = vbcast.lane.b32.xlu0 %v1674, %s1980
        %v1982 = vpop.permute.xlu0 %1981
        %s1984 = sor.u32 256, 10
        %1985 = vbcast.lane.b32.xlu0 %v1674, %s1984
        %v1986 = vpop.permute.xlu0 %1985
        %s1988 = sor.u32 256, 2
        %1989 = vbcast.lane.b32.xlu0 %v1686, %s1988
        %v1990 = vpop.permute.xlu0 %1989
        %s1992 = sor.u32 256, 10
        %1993 = vbcast.lane.b32.xlu0 %v1686, %s1992
        %v1994 = vpop.permute.xlu0 %1993
        %s1996 = sor.u32 256, 2
        %1997 = vbcast.lane.b32.xlu0 %v1698, %s1996
        %v1998 = vpop.permute.xlu0 %1997
        %s2000 = sor.u32 256, 10
        %2001 = vbcast.lane.b32.xlu0 %v1698, %s2000
        %v2002 = vpop.permute.xlu0 %2001
        %s2004 = sor.u32 256, 2
        %2005 = vbcast.lane.b32.xlu0 %v1710, %s2004
        %v2006 = vpop.permute.xlu0 %2005
        %s2008 = sor.u32 256, 10
        %2009 = vbcast.lane.b32.xlu0 %v1710, %s2008
        %v2010 = vpop.permute.xlu0 %2009
        %s2012 = sor.u32 256, 2
        %2013 = vbcast.lane.b32.xlu0 %v1722, %s2012
        %v2014 = vpop.permute.xlu0 %2013
        %s2016 = sor.u32 256, 10
        %2017 = vbcast.lane.b32.xlu0 %v1722, %s2016
        %v2018 = vpop.permute.xlu0 %2017
        %v2035 = vadd.f32 %v1939, %v1958
        %v2036 = vadd.f32 %v1940, %v1962
        %v2037 = vadd.f32 %v1941, %v1966
        %v2038 = vadd.f32 %v1942, %v1970
        %v2039 = vadd.f32 %v1943, %v1974
        %v2040 = vadd.f32 %v1944, %v1978
        %v2041 = vadd.f32 %v1945, %v1982
        %v2042 = vadd.f32 %v1946, %v1986
        %v2043 = vadd.f32 %v1947, %v1990
        %v2044 = vadd.f32 %v1948, %v1994
        %v2045 = vadd.f32 %v1949, %v1998
        %v2046 = vadd.f32 %v1950, %v2002
        %v2047 = vadd.f32 %v1951, %v2006
        %v2048 = vadd.f32 %v1952, %v2010
        %v2049 = vadd.f32 %v1953, %v2014
        %v2050 = vadd.f32 %v1954, %v2018
        %vm2051 = vcmp.eq.s32.totalorder %v323, 0
        %v2052 = vrot.slane %v1467, 1
        %v2053 = vrot.slane %v1469, 1
        %v2054 = vrot.slane %v1471, 1
        %v2055 = vrot.slane %v1473, 1
        %v2056 = vrot.slane %v1475, 1
        %v2057 = vrot.slane %v1477, 1
        %v2058 = vrot.slane %v1479, 1
        %v2059 = vrot.slane %v1481, 1
        %v2068 = vadd.f32 %v1467, %v2052
        %v2069 = vadd.f32 %v1469, %v2053
        %v2070 = vadd.f32 %v1471, %v2054
        %v2071 = vadd.f32 %v1473, %v2055
        %v2072 = vadd.f32 %v1475, %v2056
        %v2073 = vadd.f32 %v1477, %v2057
        %v2074 = vadd.f32 %v1479, %v2058
        %v2075 = vadd.f32 %v1481, %v2059
        %v2076 = vrot.slane %v1468, 6
        %v2077 = vrot.slane %v1470, 6
        %v2078 = vrot.slane %v1472, 6
        %v2079 = vrot.slane %v1474, 6
        %v2080 = vrot.slane %v1476, 6
        %v2081 = vrot.slane %v1478, 6
        %v2082 = vrot.slane %v1480, 6
        %v2083 = vrot.slane %v1482, 6
        %v2092 = vsub.f32 %v2068, %v2076
        %v2093 = vsub.f32 %v2069, %v2077
        %v2094 = vsub.f32 %v2070, %v2078
        %v2095 = vsub.f32 %v2071, %v2079
        %v2096 = vsub.f32 %v2072, %v2080
        %v2097 = vsub.f32 %v2073, %v2081
        %v2098 = vsub.f32 %v2074, %v2082
        %v2099 = vsub.f32 %v2075, %v2083
        %v2100 = vrot.slane %v1468, 5
        %v2101 = vrot.slane %v1470, 5
        %v2102 = vrot.slane %v1472, 5
        %v2103 = vrot.slane %v1474, 5
        %v2104 = vrot.slane %v1476, 5
        %v2105 = vrot.slane %v1478, 5
        %v2106 = vrot.slane %v1480, 5
        %v2107 = vrot.slane %v1482, 5
        %v2116 = vsub.f32 %v2092, %v2100
        %v2117 = vsub.f32 %v2093, %v2101
        %v2118 = vsub.f32 %v2094, %v2102
        %v2119 = vsub.f32 %v2095, %v2103
        %v2120 = vsub.f32 %v2096, %v2104
        %v2121 = vsub.f32 %v2097, %v2105
        %v2122 = vsub.f32 %v2098, %v2106
        %v2123 = vsub.f32 %v2099, %v2107
        %v2124 = vlaneseq
        %v2125 = vshrl.u32 %v2124, 7
        %v2126 = vsub.s32 1, %v2125
        %v2127 = vrot.slane %v2116, %v2126
        %v2128 = vlaneseq
        %v2129 = vshrl.u32 %v2128, 7
        %v2130 = vsub.s32 1, %v2129
        %v2131 = vrot.slane %v2117, %v2130
        %v2132 = vlaneseq
        %v2133 = vshrl.u32 %v2132, 7
        %v2134 = vsub.s32 1, %v2133
        %v2135 = vrot.slane %v2118, %v2134
        %v2136 = vlaneseq
        %v2137 = vshrl.u32 %v2136, 7
        %v2138 = vsub.s32 1, %v2137
        %v2139 = vrot.slane %v2119, %v2138
        %v2140 = vlaneseq
        %v2141 = vshrl.u32 %v2140, 7
        %v2142 = vsub.s32 1, %v2141
        %v2143 = vrot.slane %v2120, %v2142
        %v2144 = vlaneseq
        %v2145 = vshrl.u32 %v2144, 7
        %v2146 = vsub.s32 1, %v2145
        %v2147 = vrot.slane %v2121, %v2146
        %v2148 = vlaneseq
        %v2149 = vshrl.u32 %v2148, 7
        %v2150 = vsub.s32 1, %v2149
        %v2151 = vrot.slane %v2122, %v2150
        %v2152 = vlaneseq
        %v2153 = vshrl.u32 %v2152, 7
        %v2154 = vsub.s32 1, %v2153
        %v2155 = vrot.slane %v2123, %v2154
        %2164 = vset.pattern.permute.xlu0 0
        %2165 = vperm.xlu0 %2164, %v2127
        %v2166 = vpop.permute.xlu0 %2165
        %2167 = vset.pattern.permute.xlu0 0
        %2168 = vperm.xlu0 %2167, %v2131
        %v2169 = vpop.permute.xlu0 %2168
        %2170 = vset.pattern.permute.xlu0 0
        %2171 = vperm.xlu0 %2170, %v2135
        %v2172 = vpop.permute.xlu0 %2171
        %2173 = vset.pattern.permute.xlu0 0
        %2174 = vperm.xlu0 %2173, %v2139
        %v2175 = vpop.permute.xlu0 %2174
        %2176 = vset.pattern.permute.xlu0 0
        %2177 = vperm.xlu0 %2176, %v2143
        %v2178 = vpop.permute.xlu0 %2177
        %2179 = vset.pattern.permute.xlu0 0
        %2180 = vperm.xlu0 %2179, %v2147
        %v2181 = vpop.permute.xlu0 %2180
        %2182 = vset.pattern.permute.xlu0 0
        %2183 = vperm.xlu0 %2182, %v2151
        %v2184 = vpop.permute.xlu0 %2183
        %2185 = vset.pattern.permute.xlu0 0
        %2186 = vperm.xlu0 %2185, %v2155
        %v2187 = vpop.permute.xlu0 %2186
        %v2188 = vsel %vm398, %v2169, %v2166
        %v2189 = vsel %vm400, %v2172, %v2188
        %v2190 = vsel %vm402, %v2175, %v2189
        %v2191 = vsel %vm404, %v2178, %v2190
        %v2192 = vsel %vm406, %v2181, %v2191
        %v2193 = vsel %vm408, %v2184, %v2192
        %v2194 = vsel %vm410, %v2187, %v2193
        %v2196 = vsel %vm2051, %v2194, 0.0
        %v2198 = vlaneseq
        %v2199 = vshrl.u32 %v2198, 7
        %v2200 = vsub.s32 0, %v2199
        %v2201 = vrot.slane %v2196, %v2200
        %2203 = vbcast.lane.b32.xlu0 %v2201, 256
        %v2204 = vpop.permute.xlu0 %2203
        %s2206 = sor.u32 256, 8
        %2207 = vbcast.lane.b32.xlu0 %v2201, %s2206
        %v2208 = vpop.permute.xlu0 %2207
        %v2209 = vlaneseq
        %v2210 = vshrl.u32 %v2209, 7
        %v2211 = vsub.s32 1, %v2210
        %v2212 = vrot.slane %v2196, %v2211
        %2214 = vbcast.lane.b32.xlu0 %v2212, 256
        %v2215 = vpop.permute.xlu0 %2214
        %s2217 = sor.u32 256, 8
        %2218 = vbcast.lane.b32.xlu0 %v2212, %s2217
        %v2219 = vpop.permute.xlu0 %2218
        %v2220 = vlaneseq
        %v2221 = vshrl.u32 %v2220, 7
        %v2222 = vsub.s32 2, %v2221
        %v2223 = vrot.slane %v2196, %v2222
        %2225 = vbcast.lane.b32.xlu0 %v2223, 256
        %v2226 = vpop.permute.xlu0 %2225
        %s2228 = sor.u32 256, 8
        %2229 = vbcast.lane.b32.xlu0 %v2223, %s2228
        %v2230 = vpop.permute.xlu0 %2229
        %v2231 = vlaneseq
        %v2232 = vshrl.u32 %v2231, 7
        %v2233 = vsub.s32 3, %v2232
        %v2234 = vrot.slane %v2196, %v2233
        %2236 = vbcast.lane.b32.xlu0 %v2234, 256
        %v2237 = vpop.permute.xlu0 %2236
        %s2239 = sor.u32 256, 8
        %2240 = vbcast.lane.b32.xlu0 %v2234, %s2239
        %v2241 = vpop.permute.xlu0 %2240
        %v2242 = vlaneseq
        %v2243 = vshrl.u32 %v2242, 7
        %v2244 = vsub.s32 4, %v2243
        %v2245 = vrot.slane %v2196, %v2244
        %2247 = vbcast.lane.b32.xlu0 %v2245, 256
        %v2248 = vpop.permute.xlu0 %2247
        %s2250 = sor.u32 256, 8
        %2251 = vbcast.lane.b32.xlu0 %v2245, %s2250
        %v2252 = vpop.permute.xlu0 %2251
        %v2253 = vlaneseq
        %v2254 = vshrl.u32 %v2253, 7
        %v2255 = vsub.s32 5, %v2254
        %v2256 = vrot.slane %v2196, %v2255
        %2258 = vbcast.lane.b32.xlu0 %v2256, 256
        %v2259 = vpop.permute.xlu0 %2258
        %s2261 = sor.u32 256, 8
        %2262 = vbcast.lane.b32.xlu0 %v2256, %s2261
        %v2263 = vpop.permute.xlu0 %2262
        %v2264 = vlaneseq
        %v2265 = vshrl.u32 %v2264, 7
        %v2266 = vsub.s32 6, %v2265
        %v2267 = vrot.slane %v2196, %v2266
        %2269 = vbcast.lane.b32.xlu0 %v2267, 256
        %v2270 = vpop.permute.xlu0 %2269
        %s2272 = sor.u32 256, 8
        %2273 = vbcast.lane.b32.xlu0 %v2267, %s2272
        %v2274 = vpop.permute.xlu0 %2273
        %v2275 = vlaneseq
        %v2276 = vshrl.u32 %v2275, 7
        %v2277 = vsub.s32 7, %v2276
        %v2278 = vrot.slane %v2196, %v2277
        %2280 = vbcast.lane.b32.xlu0 %v2278, 256
        %v2281 = vpop.permute.xlu0 %2280
        %s2283 = sor.u32 256, 8
        %2284 = vbcast.lane.b32.xlu0 %v2278, %s2283
        %v2285 = vpop.permute.xlu0 %2284
        %v2302 = vadd.f32 %v2035, %v2204
        %v2303 = vadd.f32 %v2036, %v2208
        %v2304 = vadd.f32 %v2037, %v2215
        %v2305 = vadd.f32 %v2038, %v2219
        %v2306 = vadd.f32 %v2039, %v2226
        %v2307 = vadd.f32 %v2040, %v2230
        %v2308 = vadd.f32 %v2041, %v2237
        %v2309 = vadd.f32 %v2042, %v2241
        %v2310 = vadd.f32 %v2043, %v2248
        %v2311 = vadd.f32 %v2044, %v2252
        %v2312 = vadd.f32 %v2045, %v2259
        %v2313 = vadd.f32 %v2046, %v2263
        %v2314 = vadd.f32 %v2047, %v2270
        %v2315 = vadd.f32 %v2048, %v2274
        %v2316 = vadd.f32 %v2049, %v2281
        %v2317 = vadd.f32 %v2050, %v2285
        %vm2318 = vcmp.eq.s32.totalorder %v323, 1
        %v2319 = vsub.f32 %v1467, %v2076
        %v2320 = vsub.f32 %v1469, %v2077
        %v2321 = vsub.f32 %v1471, %v2078
        %v2322 = vsub.f32 %v1473, %v2079
        %v2323 = vsub.f32 %v1475, %v2080
        %v2324 = vsub.f32 %v1477, %v2081
        %v2325 = vsub.f32 %v1479, %v2082
        %v2326 = vsub.f32 %v1481, %v2083
        %v2327 = vlaneseq
        %v2328 = vshrl.u32 %v2327, 7
        %v2329 = vsub.s32 1, %v2328
        %v2330 = vrot.slane %v2319, %v2329
        %v2331 = vlaneseq
        %v2332 = vshrl.u32 %v2331, 7
        %v2333 = vsub.s32 1, %v2332
        %v2334 = vrot.slane %v2320, %v2333
        %v2335 = vlaneseq
        %v2336 = vshrl.u32 %v2335, 7
        %v2337 = vsub.s32 1, %v2336
        %v2338 = vrot.slane %v2321, %v2337
        %v2339 = vlaneseq
        %v2340 = vshrl.u32 %v2339, 7
        %v2341 = vsub.s32 1, %v2340
        %v2342 = vrot.slane %v2322, %v2341
        %v2343 = vlaneseq
        %v2344 = vshrl.u32 %v2343, 7
        %v2345 = vsub.s32 1, %v2344
        %v2346 = vrot.slane %v2323, %v2345
        %v2347 = vlaneseq
        %v2348 = vshrl.u32 %v2347, 7
        %v2349 = vsub.s32 1, %v2348
        %v2350 = vrot.slane %v2324, %v2349
        %v2351 = vlaneseq
        %v2352 = vshrl.u32 %v2351, 7
        %v2353 = vsub.s32 1, %v2352
        %v2354 = vrot.slane %v2325, %v2353
        %v2355 = vlaneseq
        %v2356 = vshrl.u32 %v2355, 7
        %v2357 = vsub.s32 1, %v2356
        %v2358 = vrot.slane %v2326, %v2357
        %2367 = vset.pattern.permute.xlu0 0
        %2368 = vperm.xlu0 %2367, %v2330
        %v2369 = vpop.permute.xlu0 %2368
        %2370 = vset.pattern.permute.xlu0 0
        %2371 = vperm.xlu0 %2370, %v2334
        %v2372 = vpop.permute.xlu0 %2371
        %2373 = vset.pattern.permute.xlu0 0
        %2374 = vperm.xlu0 %2373, %v2338
        %v2375 = vpop.permute.xlu0 %2374
        %2376 = vset.pattern.permute.xlu0 0
        %2377 = vperm.xlu0 %2376, %v2342
        %v2378 = vpop.permute.xlu0 %2377
        %2379 = vset.pattern.permute.xlu0 0
        %2380 = vperm.xlu0 %2379, %v2346
        %v2381 = vpop.permute.xlu0 %2380
        %2382 = vset.pattern.permute.xlu0 0
        %2383 = vperm.xlu0 %2382, %v2350
        %v2384 = vpop.permute.xlu0 %2383
        %2385 = vset.pattern.permute.xlu0 0
        %2386 = vperm.xlu0 %2385, %v2354
        %v2387 = vpop.permute.xlu0 %2386
        %2388 = vset.pattern.permute.xlu0 0
        %2389 = vperm.xlu0 %2388, %v2358
        %v2390 = vpop.permute.xlu0 %2389
        %v2391 = vsel %vm398, %v2372, %v2369
        %v2392 = vsel %vm400, %v2375, %v2391
        %v2393 = vsel %vm402, %v2378, %v2392
        %v2394 = vsel %vm404, %v2381, %v2393
        %v2395 = vsel %vm406, %v2384, %v2394
        %v2396 = vsel %vm408, %v2387, %v2395
        %v2397 = vsel %vm410, %v2390, %v2396
        %v2399 = vsel %vm2318, %v2397, 0.0
        %v2401 = vlaneseq
        %v2402 = vshrl.u32 %v2401, 7
        %v2403 = vsub.s32 0, %v2402
        %v2404 = vrot.slane %v2399, %v2403
        %2406 = vbcast.lane.b32.xlu0 %v2404, 256
        %v2407 = vpop.permute.xlu0 %2406
        %s2409 = sor.u32 256, 8
        %2410 = vbcast.lane.b32.xlu0 %v2404, %s2409
        %v2411 = vpop.permute.xlu0 %2410
        %v2412 = vlaneseq
        %v2413 = vshrl.u32 %v2412, 7
        %v2414 = vsub.s32 1, %v2413
        %v2415 = vrot.slane %v2399, %v2414
        %2417 = vbcast.lane.b32.xlu0 %v2415, 256
        %v2418 = vpop.permute.xlu0 %2417
        %s2420 = sor.u32 256, 8
        %2421 = vbcast.lane.b32.xlu0 %v2415, %s2420
        %v2422 = vpop.permute.xlu0 %2421
        %v2423 = vlaneseq
        %v2424 = vshrl.u32 %v2423, 7
        %v2425 = vsub.s32 2, %v2424
        %v2426 = vrot.slane %v2399, %v2425
        %2428 = vbcast.lane.b32.xlu0 %v2426, 256
        %v2429 = vpop.permute.xlu0 %2428
        %s2431 = sor.u32 256, 8
        %2432 = vbcast.lane.b32.xlu0 %v2426, %s2431
        %v2433 = vpop.permute.xlu0 %2432
        %v2434 = vlaneseq
        %v2435 = vshrl.u32 %v2434, 7
        %v2436 = vsub.s32 3, %v2435
        %v2437 = vrot.slane %v2399, %v2436
        %2439 = vbcast.lane.b32.xlu0 %v2437, 256
        %v2440 = vpop.permute.xlu0 %2439
        %s2442 = sor.u32 256, 8
        %2443 = vbcast.lane.b32.xlu0 %v2437, %s2442
        %v2444 = vpop.permute.xlu0 %2443
        %v2445 = vlaneseq
        %v2446 = vshrl.u32 %v2445, 7
        %v2447 = vsub.s32 4, %v2446
        %v2448 = vrot.slane %v2399, %v2447
        %2450 = vbcast.lane.b32.xlu0 %v2448, 256
        %v2451 = vpop.permute.xlu0 %2450
        %s2453 = sor.u32 256, 8
        %2454 = vbcast.lane.b32.xlu0 %v2448, %s2453
        %v2455 = vpop.permute.xlu0 %2454
        %v2456 = vlaneseq
        %v2457 = vshrl.u32 %v2456, 7
        %v2458 = vsub.s32 5, %v2457
        %v2459 = vrot.slane %v2399, %v2458
        %2461 = vbcast.lane.b32.xlu0 %v2459, 256
        %v2462 = vpop.permute.xlu0 %2461
        %s2464 = sor.u32 256, 8
        %2465 = vbcast.lane.b32.xlu0 %v2459, %s2464
        %v2466 = vpop.permute.xlu0 %2465
        %v2467 = vlaneseq
        %v2468 = vshrl.u32 %v2467, 7
        %v2469 = vsub.s32 6, %v2468
        %v2470 = vrot.slane %v2399, %v2469
        %2472 = vbcast.lane.b32.xlu0 %v2470, 256
        %v2473 = vpop.permute.xlu0 %2472
        %s2475 = sor.u32 256, 8
        %2476 = vbcast.lane.b32.xlu0 %v2470, %s2475
        %v2477 = vpop.permute.xlu0 %2476
        %v2478 = vlaneseq
        %v2479 = vshrl.u32 %v2478, 7
        %v2480 = vsub.s32 7, %v2479
        %v2481 = vrot.slane %v2399, %v2480
        %2483 = vbcast.lane.b32.xlu0 %v2481, 256
        %v2484 = vpop.permute.xlu0 %2483
        %s2486 = sor.u32 256, 8
        %2487 = vbcast.lane.b32.xlu0 %v2481, %s2486
        %v2488 = vpop.permute.xlu0 %2487
        %v2505 = vadd.f32 %v2302, %v2407
        %v2506 = vadd.f32 %v2303, %v2411
        %v2507 = vadd.f32 %v2304, %v2418
        %v2508 = vadd.f32 %v2305, %v2422
        %v2509 = vadd.f32 %v2306, %v2429
        %v2510 = vadd.f32 %v2307, %v2433
        %v2511 = vadd.f32 %v2308, %v2440
        %v2512 = vadd.f32 %v2309, %v2444
        %v2513 = vadd.f32 %v2310, %v2451
        %v2514 = vadd.f32 %v2311, %v2455
        %v2515 = vadd.f32 %v2312, %v2462
        %v2516 = vadd.f32 %v2313, %v2466
        %v2517 = vadd.f32 %v2314, %v2473
        %v2518 = vadd.f32 %v2315, %v2477
        %v2519 = vadd.f32 %v2316, %v2484
        %v2520 = vadd.f32 %v2317, %v2488
        %vm2521 = vcmp.eq.s32.totalorder %v323, 14
        %v2522 = vrot.slane %v1467, 2
        %v2523 = vrot.slane %v1469, 2
        %v2524 = vrot.slane %v1471, 2
        %v2525 = vrot.slane %v1473, 2
        %v2526 = vrot.slane %v1475, 2
        %v2527 = vrot.slane %v1477, 2
        %v2528 = vrot.slane %v1479, 2
        %v2529 = vrot.slane %v1481, 2
        %v2538 = vsub.f32 %v1468, %v2522
        %v2539 = vsub.f32 %v1470, %v2523
        %v2540 = vsub.f32 %v1472, %v2524
        %v2541 = vsub.f32 %v1474, %v2525
        %v2542 = vsub.f32 %v1476, %v2526
        %v2543 = vsub.f32 %v1478, %v2527
        %v2544 = vsub.f32 %v1480, %v2528
        %v2545 = vsub.f32 %v1482, %v2529
        %v2546 = vlaneseq
        %v2547 = vshrl.u32 %v2546, 7
        %v2548 = vsub.s32 6, %v2547
        %v2549 = vrot.slane %v2538, %v2548
        %v2550 = vlaneseq
        %v2551 = vshrl.u32 %v2550, 7
        %v2552 = vsub.s32 6, %v2551
        %v2553 = vrot.slane %v2539, %v2552
        %v2554 = vlaneseq
        %v2555 = vshrl.u32 %v2554, 7
        %v2556 = vsub.s32 6, %v2555
        %v2557 = vrot.slane %v2540, %v2556
        %v2558 = vlaneseq
        %v2559 = vshrl.u32 %v2558, 7
        %v2560 = vsub.s32 6, %v2559
        %v2561 = vrot.slane %v2541, %v2560
        %v2562 = vlaneseq
        %v2563 = vshrl.u32 %v2562, 7
        %v2564 = vsub.s32 6, %v2563
        %v2565 = vrot.slane %v2542, %v2564
        %v2566 = vlaneseq
        %v2567 = vshrl.u32 %v2566, 7
        %v2568 = vsub.s32 6, %v2567
        %v2569 = vrot.slane %v2543, %v2568
        %v2570 = vlaneseq
        %v2571 = vshrl.u32 %v2570, 7
        %v2572 = vsub.s32 6, %v2571
        %v2573 = vrot.slane %v2544, %v2572
        %v2574 = vlaneseq
        %v2575 = vshrl.u32 %v2574, 7
        %v2576 = vsub.s32 6, %v2575
        %v2577 = vrot.slane %v2545, %v2576
        %2586 = vset.pattern.permute.xlu0 0
        %2587 = vperm.xlu0 %2586, %v2549
        %v2588 = vpop.permute.xlu0 %2587
        %2589 = vset.pattern.permute.xlu0 0
        %2590 = vperm.xlu0 %2589, %v2553
        %v2591 = vpop.permute.xlu0 %2590
        %2592 = vset.pattern.permute.xlu0 0
        %2593 = vperm.xlu0 %2592, %v2557
        %v2594 = vpop.permute.xlu0 %2593
        %2595 = vset.pattern.permute.xlu0 0
        %2596 = vperm.xlu0 %2595, %v2561
        %v2597 = vpop.permute.xlu0 %2596
        %2598 = vset.pattern.permute.xlu0 0
        %2599 = vperm.xlu0 %2598, %v2565
        %v2600 = vpop.permute.xlu0 %2599
        %2601 = vset.pattern.permute.xlu0 0
        %2602 = vperm.xlu0 %2601, %v2569
        %v2603 = vpop.permute.xlu0 %2602
        %2604 = vset.pattern.permute.xlu0 0
        %2605 = vperm.xlu0 %2604, %v2573
        %v2606 = vpop.permute.xlu0 %2605
        %2607 = vset.pattern.permute.xlu0 0
        %2608 = vperm.xlu0 %2607, %v2577
        %v2609 = vpop.permute.xlu0 %2608
        %v2610 = vsel %vm398, %v2591, %v2588
        %v2611 = vsel %vm400, %v2594, %v2610
        %v2612 = vsel %vm402, %v2597, %v2611
        %v2613 = vsel %vm404, %v2600, %v2612
        %v2614 = vsel %vm406, %v2603, %v2613
        %v2615 = vsel %vm408, %v2606, %v2614
        %v2616 = vsel %vm410, %v2609, %v2615
        %v2618 = vsel %vm2521, %v2616, 0.0
        %v2620 = vlaneseq
        %v2621 = vshrl.u32 %v2620, 7
        %v2622 = vsub.s32 0, %v2621
        %v2623 = vrot.slane %v2618, %v2622
        %2625 = vbcast.lane.b32.xlu0 %v2623, 256
        %v2626 = vpop.permute.xlu0 %2625
        %s2628 = sor.u32 256, 8
        %2629 = vbcast.lane.b32.xlu0 %v2623, %s2628
        %v2630 = vpop.permute.xlu0 %2629
        %v2631 = vlaneseq
        %v2632 = vshrl.u32 %v2631, 7
        %v2633 = vsub.s32 1, %v2632
        %v2634 = vrot.slane %v2618, %v2633
        %2636 = vbcast.lane.b32.xlu0 %v2634, 256
        %v2637 = vpop.permute.xlu0 %2636
        %s2639 = sor.u32 256, 8
        %2640 = vbcast.lane.b32.xlu0 %v2634, %s2639
        %v2641 = vpop.permute.xlu0 %2640
        %v2642 = vlaneseq
        %v2643 = vshrl.u32 %v2642, 7
        %v2644 = vsub.s32 2, %v2643
        %v2645 = vrot.slane %v2618, %v2644
        %2647 = vbcast.lane.b32.xlu0 %v2645, 256
        %v2648 = vpop.permute.xlu0 %2647
        %s2650 = sor.u32 256, 8
        %2651 = vbcast.lane.b32.xlu0 %v2645, %s2650
        %v2652 = vpop.permute.xlu0 %2651
        %v2653 = vlaneseq
        %v2654 = vshrl.u32 %v2653, 7
        %v2655 = vsub.s32 3, %v2654
        %v2656 = vrot.slane %v2618, %v2655
        %2658 = vbcast.lane.b32.xlu0 %v2656, 256
        %v2659 = vpop.permute.xlu0 %2658
        %s2661 = sor.u32 256, 8
        %2662 = vbcast.lane.b32.xlu0 %v2656, %s2661
        %v2663 = vpop.permute.xlu0 %2662
        %v2664 = vlaneseq
        %v2665 = vshrl.u32 %v2664, 7
        %v2666 = vsub.s32 4, %v2665
        %v2667 = vrot.slane %v2618, %v2666
        %2669 = vbcast.lane.b32.xlu0 %v2667, 256
        %v2670 = vpop.permute.xlu0 %2669
        %s2672 = sor.u32 256, 8
        %2673 = vbcast.lane.b32.xlu0 %v2667, %s2672
        %v2674 = vpop.permute.xlu0 %2673
        %v2675 = vlaneseq
        %v2676 = vshrl.u32 %v2675, 7
        %v2677 = vsub.s32 5, %v2676
        %v2678 = vrot.slane %v2618, %v2677
        %2680 = vbcast.lane.b32.xlu0 %v2678, 256
        %v2681 = vpop.permute.xlu0 %2680
        %s2683 = sor.u32 256, 8
        %2684 = vbcast.lane.b32.xlu0 %v2678, %s2683
        %v2685 = vpop.permute.xlu0 %2684
        %v2686 = vlaneseq
        %v2687 = vshrl.u32 %v2686, 7
        %v2688 = vsub.s32 6, %v2687
        %v2689 = vrot.slane %v2618, %v2688
        %2691 = vbcast.lane.b32.xlu0 %v2689, 256
        %v2692 = vpop.permute.xlu0 %2691
        %s2694 = sor.u32 256, 8
        %2695 = vbcast.lane.b32.xlu0 %v2689, %s2694
        %v2696 = vpop.permute.xlu0 %2695
        %v2697 = vlaneseq
        %v2698 = vshrl.u32 %v2697, 7
        %v2699 = vsub.s32 7, %v2698
        %v2700 = vrot.slane %v2618, %v2699
        %2702 = vbcast.lane.b32.xlu0 %v2700, 256
        %v2703 = vpop.permute.xlu0 %2702
        %s2705 = sor.u32 256, 8
        %2706 = vbcast.lane.b32.xlu0 %v2700, %s2705
        %v2707 = vpop.permute.xlu0 %2706
        %v2724 = vadd.f32 %v2505, %v2626
        %v2725 = vadd.f32 %v2506, %v2630
        %v2726 = vadd.f32 %v2507, %v2637
        %v2727 = vadd.f32 %v2508, %v2641
        %v2728 = vadd.f32 %v2509, %v2648
        %v2729 = vadd.f32 %v2510, %v2652
        %v2730 = vadd.f32 %v2511, %v2659
        %v2731 = vadd.f32 %v2512, %v2663
        %v2732 = vadd.f32 %v2513, %v2670
        %v2733 = vadd.f32 %v2514, %v2674
        %v2734 = vadd.f32 %v2515, %v2681
        %v2735 = vadd.f32 %v2516, %v2685
        %v2736 = vadd.f32 %v2517, %v2692
        %v2737 = vadd.f32 %v2518, %v2696
        %v2738 = vadd.f32 %v2519, %v2703
        %v2739 = vadd.f32 %v2520, %v2707
        %vm2740 = vcmp.eq.s32.totalorder %v323, 15
        %v2741 = vrot.slane %v1468, 7
        %v2742 = vrot.slane %v1470, 7
        %v2743 = vrot.slane %v1472, 7
        %v2744 = vrot.slane %v1474, 7
        %v2745 = vrot.slane %v1476, 7
        %v2746 = vrot.slane %v1478, 7
        %v2747 = vrot.slane %v1480, 7
        %v2748 = vrot.slane %v1482, 7
        %v2757 = vadd.f32 %v1468, %v2741
        %v2758 = vadd.f32 %v1470, %v2742
        %v2759 = vadd.f32 %v1472, %v2743
        %v2760 = vadd.f32 %v1474, %v2744
        %v2761 = vadd.f32 %v1476, %v2745
        %v2762 = vadd.f32 %v1478, %v2746
        %v2763 = vadd.f32 %v1480, %v2747
        %v2764 = vadd.f32 %v1482, %v2748
        %v2765 = vsub.f32 %v2757, %v2522
        %v2766 = vsub.f32 %v2758, %v2523
        %v2767 = vsub.f32 %v2759, %v2524
        %v2768 = vsub.f32 %v2760, %v2525
        %v2769 = vsub.f32 %v2761, %v2526
        %v2770 = vsub.f32 %v2762, %v2527
        %v2771 = vsub.f32 %v2763, %v2528
        %v2772 = vsub.f32 %v2764, %v2529
        %v2773 = vrot.slane %v1467, 3
        %v2774 = vrot.slane %v1469, 3
        %v2775 = vrot.slane %v1471, 3
        %v2776 = vrot.slane %v1473, 3
        %v2777 = vrot.slane %v1475, 3
        %v2778 = vrot.slane %v1477, 3
        %v2779 = vrot.slane %v1479, 3
        %v2780 = vrot.slane %v1481, 3
        %v2789 = vsub.f32 %v2765, %v2773
        %v2790 = vsub.f32 %v2766, %v2774
        %v2791 = vsub.f32 %v2767, %v2775
        %v2792 = vsub.f32 %v2768, %v2776
        %v2793 = vsub.f32 %v2769, %v2777
        %v2794 = vsub.f32 %v2770, %v2778
        %v2795 = vsub.f32 %v2771, %v2779
        %v2796 = vsub.f32 %v2772, %v2780
        %v2797 = vlaneseq
        %v2798 = vshrl.u32 %v2797, 7
        %v2799 = vsub.s32 6, %v2798
        %v2800 = vrot.slane %v2789, %v2799
        %v2801 = vlaneseq
        %v2802 = vshrl.u32 %v2801, 7
        %v2803 = vsub.s32 6, %v2802
        %v2804 = vrot.slane %v2790, %v2803
        %v2805 = vlaneseq
        %v2806 = vshrl.u32 %v2805, 7
        %v2807 = vsub.s32 6, %v2806
        %v2808 = vrot.slane %v2791, %v2807
        %v2809 = vlaneseq
        %v2810 = vshrl.u32 %v2809, 7
        %v2811 = vsub.s32 6, %v2810
        %v2812 = vrot.slane %v2792, %v2811
        %v2813 = vlaneseq
        %v2814 = vshrl.u32 %v2813, 7
        %v2815 = vsub.s32 6, %v2814
        %v2816 = vrot.slane %v2793, %v2815
        %v2817 = vlaneseq
        %v2818 = vshrl.u32 %v2817, 7
        %v2819 = vsub.s32 6, %v2818
        %v2820 = vrot.slane %v2794, %v2819
        %v2821 = vlaneseq
        %v2822 = vshrl.u32 %v2821, 7
        %v2823 = vsub.s32 6, %v2822
        %v2824 = vrot.slane %v2795, %v2823
        %v2825 = vlaneseq
        %v2826 = vshrl.u32 %v2825, 7
        %v2827 = vsub.s32 6, %v2826
        %v2828 = vrot.slane %v2796, %v2827
        %2837 = vset.pattern.permute.xlu0 0
        %2838 = vperm.xlu0 %2837, %v2800
        %v2839 = vpop.permute.xlu0 %2838
        %2840 = vset.pattern.permute.xlu0 0
        %2841 = vperm.xlu0 %2840, %v2804
        %v2842 = vpop.permute.xlu0 %2841
        %2843 = vset.pattern.permute.xlu0 0
        %2844 = vperm.xlu0 %2843, %v2808
        %v2845 = vpop.permute.xlu0 %2844
        %2846 = vset.pattern.permute.xlu0 0
        %2847 = vperm.xlu0 %2846, %v2812
        %v2848 = vpop.permute.xlu0 %2847
        %2849 = vset.pattern.permute.xlu0 0
        %2850 = vperm.xlu0 %2849, %v2816
        %v2851 = vpop.permute.xlu0 %2850
        %2852 = vset.pattern.permute.xlu0 0
        %2853 = vperm.xlu0 %2852, %v2820
        %v2854 = vpop.permute.xlu0 %2853
        %2855 = vset.pattern.permute.xlu0 0
        %2856 = vperm.xlu0 %2855, %v2824
        %v2857 = vpop.permute.xlu0 %2856
        %2858 = vset.pattern.permute.xlu0 0
        %2859 = vperm.xlu0 %2858, %v2828
        %v2860 = vpop.permute.xlu0 %2859
        %v2861 = vsel %vm398, %v2842, %v2839
        %v2862 = vsel %vm400, %v2845, %v2861
        %v2863 = vsel %vm402, %v2848, %v2862
        %v2864 = vsel %vm404, %v2851, %v2863
        %v2865 = vsel %vm406, %v2854, %v2864
        %v2866 = vsel %vm408, %v2857, %v2865
        %v2867 = vsel %vm410, %v2860, %v2866
        %v2869 = vsel %vm2740, %v2867, 0.0
        %v2871 = vlaneseq
        %v2872 = vshrl.u32 %v2871, 7
        %v2873 = vsub.s32 0, %v2872
        %v2874 = vrot.slane %v2869, %v2873
        %2876 = vbcast.lane.b32.xlu0 %v2874, 256
        %v2877 = vpop.permute.xlu0 %2876
        %s2879 = sor.u32 256, 8
        %2880 = vbcast.lane.b32.xlu0 %v2874, %s2879
        %v2881 = vpop.permute.xlu0 %2880
        %v2882 = vlaneseq
        %v2883 = vshrl.u32 %v2882, 7
        %v2884 = vsub.s32 1, %v2883
        %v2885 = vrot.slane %v2869, %v2884
        %2887 = vbcast.lane.b32.xlu0 %v2885, 256
        %v2888 = vpop.permute.xlu0 %2887
        %s2890 = sor.u32 256, 8
        %2891 = vbcast.lane.b32.xlu0 %v2885, %s2890
        %v2892 = vpop.permute.xlu0 %2891
        %v2893 = vlaneseq
        %v2894 = vshrl.u32 %v2893, 7
        %v2895 = vsub.s32 2, %v2894
        %v2896 = vrot.slane %v2869, %v2895
        %2898 = vbcast.lane.b32.xlu0 %v2896, 256
        %v2899 = vpop.permute.xlu0 %2898
        %s2901 = sor.u32 256, 8
        %2902 = vbcast.lane.b32.xlu0 %v2896, %s2901
        %v2903 = vpop.permute.xlu0 %2902
        %v2904 = vlaneseq
        %v2905 = vshrl.u32 %v2904, 7
        %v2906 = vsub.s32 3, %v2905
        %v2907 = vrot.slane %v2869, %v2906
        %2909 = vbcast.lane.b32.xlu0 %v2907, 256
        %v2910 = vpop.permute.xlu0 %2909
        %s2912 = sor.u32 256, 8
        %2913 = vbcast.lane.b32.xlu0 %v2907, %s2912
        %v2914 = vpop.permute.xlu0 %2913
        %v2915 = vlaneseq
        %v2916 = vshrl.u32 %v2915, 7
        %v2917 = vsub.s32 4, %v2916
        %v2918 = vrot.slane %v2869, %v2917
        %2920 = vbcast.lane.b32.xlu0 %v2918, 256
        %v2921 = vpop.permute.xlu0 %2920
        %s2923 = sor.u32 256, 8
        %2924 = vbcast.lane.b32.xlu0 %v2918, %s2923
        %v2925 = vpop.permute.xlu0 %2924
        %v2926 = vlaneseq
        %v2927 = vshrl.u32 %v2926, 7
        %v2928 = vsub.s32 5, %v2927
        %v2929 = vrot.slane %v2869, %v2928
        %2931 = vbcast.lane.b32.xlu0 %v2929, 256
        %v2932 = vpop.permute.xlu0 %2931
        %s2934 = sor.u32 256, 8
        %2935 = vbcast.lane.b32.xlu0 %v2929, %s2934
        %v2936 = vpop.permute.xlu0 %2935
        %v2937 = vlaneseq
        %v2938 = vshrl.u32 %v2937, 7
        %v2939 = vsub.s32 6, %v2938
        %v2940 = vrot.slane %v2869, %v2939
        %2942 = vbcast.lane.b32.xlu0 %v2940, 256
        %v2943 = vpop.permute.xlu0 %2942
        %s2945 = sor.u32 256, 8
        %2946 = vbcast.lane.b32.xlu0 %v2940, %s2945
        %v2947 = vpop.permute.xlu0 %2946
        %v2948 = vlaneseq
        %v2949 = vshrl.u32 %v2948, 7
        %v2950 = vsub.s32 7, %v2949
        %v2951 = vrot.slane %v2869, %v2950
        %2953 = vbcast.lane.b32.xlu0 %v2951, 256
        %v2954 = vpop.permute.xlu0 %2953
        %s2956 = sor.u32 256, 8
        %2957 = vbcast.lane.b32.xlu0 %v2951, %s2956
        %v2958 = vpop.permute.xlu0 %2957
        %v2975 = vadd.f32 %v2724, %v2877
        %v2976 = vadd.f32 %v2725, %v2881
        %v2977 = vadd.f32 %v2726, %v2888
        %v2978 = vadd.f32 %v2727, %v2892
        %v2979 = vadd.f32 %v2728, %v2899
        %v2980 = vadd.f32 %v2729, %v2903
        %v2981 = vadd.f32 %v2730, %v2910
        %v2982 = vadd.f32 %v2731, %v2914
        %v2983 = vadd.f32 %v2732, %v2921
        %v2984 = vadd.f32 %v2733, %v2925
        %v2985 = vadd.f32 %v2734, %v2932
        %v2986 = vadd.f32 %v2735, %v2936
        %v2987 = vadd.f32 %v2736, %v2943
        %v2988 = vadd.f32 %v2737, %v2947
        %v2989 = vadd.f32 %v2738, %v2954
        %v2990 = vadd.f32 %v2739, %v2958
        %v2991 = vmul.f32 %v2975, 0.04
        %v2992 = vmul.f32 %v2976, 0.04
        %v2993 = vmul.f32 %v2977, 0.04
        %v2994 = vmul.f32 %v2978, 0.04
        %v2995 = vmul.f32 %v2979, 0.04
        %v2996 = vmul.f32 %v2980, 0.04
        %v2997 = vmul.f32 %v2981, 0.04
        %v2998 = vmul.f32 %v2982, 0.04
        %v2999 = vmul.f32 %v2983, 0.04
        %v3000 = vmul.f32 %v2984, 0.04
        %v3001 = vmul.f32 %v2985, 0.04
        %v3002 = vmul.f32 %v2986, 0.04
        %v3003 = vmul.f32 %v2987, 0.04
        %v3004 = vmul.f32 %v2988, 0.04
        %v3005 = vmul.f32 %v2989, 0.04
        %v3006 = vmul.f32 %v2990, 0.04
        %v3007 = vsub.f32 %v226, %v2991
        %v3008 = vsub.f32 %v227, %v2992
        %v3009 = vsub.f32 %v228, %v2993
        %v3010 = vsub.f32 %v229, %v2994
        %v3011 = vsub.f32 %v230, %v2995
        %v3012 = vsub.f32 %v231, %v2996
        %v3013 = vsub.f32 %v232, %v2997
        %v3014 = vsub.f32 %v233, %v2998
        %v3015 = vsub.f32 %v234, %v2999
        %v3016 = vsub.f32 %v235, %v3000
        %v3017 = vsub.f32 %v236, %v3001
        %v3018 = vsub.f32 %v237, %v3002
        %v3019 = vsub.f32 %v238, %v3003
        %v3020 = vsub.f32 %v239, %v3004
        %v3021 = vsub.f32 %v240, %v3005
        %v3022 = vsub.f32 %v241, %v3006
        %3039 = vset.pattern.permute.xlu0 0
        %3040 = vperm.xlu0 %3039, %v3007
        %v3041 = vpop.permute.xlu0 %3040
        %3042 = vset.pattern.permute.xlu0 0
        %3043 = vperm.xlu0 %3042, %v3008
        %v3044 = vpop.permute.xlu0 %3043
        %3045 = vset.pattern.permute.xlu0 0
        %3046 = vperm.xlu0 %3045, %v3009
        %v3047 = vpop.permute.xlu0 %3046
        %3048 = vset.pattern.permute.xlu0 0
        %3049 = vperm.xlu0 %3048, %v3010
        %v3050 = vpop.permute.xlu0 %3049
        %3051 = vset.pattern.permute.xlu0 0
        %3052 = vperm.xlu0 %3051, %v3011
        %v3053 = vpop.permute.xlu0 %3052
        %3054 = vset.pattern.permute.xlu0 0
        %3055 = vperm.xlu0 %3054, %v3012
        %v3056 = vpop.permute.xlu0 %3055
        %3057 = vset.pattern.permute.xlu0 0
        %3058 = vperm.xlu0 %3057, %v3013
        %v3059 = vpop.permute.xlu0 %3058
        %3060 = vset.pattern.permute.xlu0 0
        %3061 = vperm.xlu0 %3060, %v3014
        %v3062 = vpop.permute.xlu0 %3061
        %3063 = vset.pattern.permute.xlu0 0
        %3064 = vperm.xlu0 %3063, %v3015
        %v3065 = vpop.permute.xlu0 %3064
        %3066 = vset.pattern.permute.xlu0 0
        %3067 = vperm.xlu0 %3066, %v3016
        %v3068 = vpop.permute.xlu0 %3067
        %3069 = vset.pattern.permute.xlu0 0
        %3070 = vperm.xlu0 %3069, %v3017
        %v3071 = vpop.permute.xlu0 %3070
        %3072 = vset.pattern.permute.xlu0 0
        %3073 = vperm.xlu0 %3072, %v3018
        %v3074 = vpop.permute.xlu0 %3073
        %3075 = vset.pattern.permute.xlu0 0
        %3076 = vperm.xlu0 %3075, %v3019
        %v3077 = vpop.permute.xlu0 %3076
        %3078 = vset.pattern.permute.xlu0 0
        %3079 = vperm.xlu0 %3078, %v3020
        %v3080 = vpop.permute.xlu0 %3079
        %3081 = vset.pattern.permute.xlu0 0
        %3082 = vperm.xlu0 %3081, %v3021
        %v3083 = vpop.permute.xlu0 %3082
        %3084 = vset.pattern.permute.xlu0 0
        %3085 = vperm.xlu0 %3084, %v3022
        %v3086 = vpop.permute.xlu0 %3085
        %v3087 = vlaneseq
        %v3088 = vshrl.u32 %v3087, 7
        %v3089 = vsub.s32 %v323, %v3088
        %v3090 = vrot.slane %v3041, %v3089
        %v3091 = vlaneseq
        %v3092 = vshrl.u32 %v3091, 7
        %v3093 = vsub.s32 %v328, %v3092
        %v3094 = vrot.slane %v3044, %v3093
        %v3095 = vsel %vm333, %v3094, %v3090
        %v3096 = vlaneseq
        %v3097 = vshrl.u32 %v3096, 7
        %v3098 = vsub.s32 %v323, %v3097
        %v3099 = vrot.slane %v3047, %v3098
        %v3100 = vlaneseq
        %v3101 = vshrl.u32 %v3100, 7
        %v3102 = vsub.s32 %v328, %v3101
        %v3103 = vrot.slane %v3050, %v3102
        %v3104 = vsel %vm333, %v3103, %v3099
        %v3105 = vlaneseq
        %v3106 = vshrl.u32 %v3105, 7
        %v3107 = vsub.s32 %v323, %v3106
        %v3108 = vrot.slane %v3053, %v3107
        %v3109 = vlaneseq
        %v3110 = vshrl.u32 %v3109, 7
        %v3111 = vsub.s32 %v328, %v3110
        %v3112 = vrot.slane %v3056, %v3111
        %v3113 = vsel %vm333, %v3112, %v3108
        %v3114 = vlaneseq
        %v3115 = vshrl.u32 %v3114, 7
        %v3116 = vsub.s32 %v323, %v3115
        %v3117 = vrot.slane %v3059, %v3116
        %v3118 = vlaneseq
        %v3119 = vshrl.u32 %v3118, 7
        %v3120 = vsub.s32 %v328, %v3119
        %v3121 = vrot.slane %v3062, %v3120
        %v3122 = vsel %vm333, %v3121, %v3117
        %v3123 = vlaneseq
        %v3124 = vshrl.u32 %v3123, 7
        %v3125 = vsub.s32 %v323, %v3124
        %v3126 = vrot.slane %v3065, %v3125
        %v3127 = vlaneseq
        %v3128 = vshrl.u32 %v3127, 7
        %v3129 = vsub.s32 %v328, %v3128
        %v3130 = vrot.slane %v3068, %v3129
        %v3131 = vsel %vm333, %v3130, %v3126
        %v3132 = vlaneseq
        %v3133 = vshrl.u32 %v3132, 7
        %v3134 = vsub.s32 %v323, %v3133
        %v3135 = vrot.slane %v3071, %v3134
        %v3136 = vlaneseq
        %v3137 = vshrl.u32 %v3136, 7
        %v3138 = vsub.s32 %v328, %v3137
        %v3139 = vrot.slane %v3074, %v3138
        %v3140 = vsel %vm333, %v3139, %v3135
        %v3141 = vlaneseq
        %v3142 = vshrl.u32 %v3141, 7
        %v3143 = vsub.s32 %v323, %v3142
        %v3144 = vrot.slane %v3077, %v3143
        %v3145 = vlaneseq
        %v3146 = vshrl.u32 %v3145, 7
        %v3147 = vsub.s32 %v328, %v3146
        %v3148 = vrot.slane %v3080, %v3147
        %v3149 = vsel %vm333, %v3148, %v3144
        %v3150 = vlaneseq
        %v3151 = vshrl.u32 %v3150, 7
        %v3152 = vsub.s32 %v323, %v3151
        %v3153 = vrot.slane %v3083, %v3152
        %v3154 = vlaneseq
        %v3155 = vshrl.u32 %v3154, 7
        %v3156 = vsub.s32 %v328, %v3155
        %v3157 = vrot.slane %v3086, %v3156
        %v3158 = vsel %vm333, %v3157, %v3153
        %v3159 = vsel %vm398, %v3104, %v3095
        %v3160 = vsel %vm400, %v3113, %v3159
        %v3161 = vsel %vm402, %v3122, %v3160
        %v3162 = vsel %vm404, %v3131, %v3161
        %v3163 = vsel %vm406, %v3140, %v3162
        %v3164 = vsel %vm408, %v3149, %v3163
        %v3165 = vsel %vm410, %v3158, %v3164
        %v3167 = vsel %vm177, %v3165, 0.0
        %3168 = vadd.xlane.f32.xlu0 %v3167
        %v3169 = vpop.xlane.xlu0 %3168
        %v3170 = vrcp.pop 16.0
        %v3171 = vmul.f32 %v3169, %v3170
        %v3173 = vrot.slane %v3171, 1
        %v3174 = vrot.slane %v3171, 2
        %v3175 = vrot.slane %v3171, 3
        %v3176 = vrot.slane %v3171, 4
        %v3177 = vrot.slane %v3171, 5
        %v3178 = vrot.slane %v3171, 6
        %v3179 = vrot.slane %v3171, 7
        %v3188 = vsub.f32 %v298, %v3171
        %v3189 = vsub.f32 %v299, %v3173
        %v3190 = vsub.f32 %v300, %v3174
        %v3191 = vsub.f32 %v301, %v3175
        %v3192 = vsub.f32 %v302, %v3176
        %v3193 = vsub.f32 %v303, %v3177
        %v3194 = vsub.f32 %v304, %v3178
        %v3195 = vsub.f32 %v305, %v3179
        %v3204 = vrot.slane %v3189, 7
        %v3205 = vsel %vm398, %v3204, %v3188
        %v3206 = vrot.slane %v3190, 6
        %v3207 = vsel %vm400, %v3206, %v3205
        %v3208 = vrot.slane %v3191, 5
        %v3209 = vsel %vm402, %v3208, %v3207
        %v3210 = vrot.slane %v3192, 4
        %v3211 = vsel %vm404, %v3210, %v3209
        %v3212 = vrot.slane %v3193, 3
        %v3213 = vsel %vm406, %v3212, %v3211
        %v3214 = vrot.slane %v3194, 2
        %v3215 = vsel %vm408, %v3214, %v3213
        %v3216 = vrot.slane %v3195, 1
        %v3217 = vsel %vm410, %v3216, %v3215
        %v3219 = vrot.slane %v3217, 7
        %v3221 = vrot.slane %v3219, 1
        %v3222 = vrot.slane %v3219, 2
        %v3223 = vrot.slane %v3219, 3
        %v3224 = vrot.slane %v3219, 4
        %v3225 = vrot.slane %v3219, 5
        %v3226 = vrot.slane %v3219, 6
        %v3227 = vrot.slane %v3219, 7
        %v3236 = vadd.f32 %v3188, %v3219
        %v3237 = vadd.f32 %v3189, %v3221
        %v3238 = vadd.f32 %v3190, %v3222
        %v3239 = vadd.f32 %v3191, %v3223
        %v3240 = vadd.f32 %v3192, %v3224
        %v3241 = vadd.f32 %v3193, %v3225
        %v3242 = vadd.f32 %v3194, %v3226
        %v3243 = vadd.f32 %v3195, %v3227
        %v3244 = vrot.slane %v3217, 1
        %v3246 = vrot.slane %v3244, 1
        %v3247 = vrot.slane %v3244, 2
        %v3248 = vrot.slane %v3244, 3
        %v3249 = vrot.slane %v3244, 4
        %v3250 = vrot.slane %v3244, 5
        %v3251 = vrot.slane %v3244, 6
        %v3252 = vrot.slane %v3244, 7
        %v3261 = vadd.f32 %v3236, %v3244
        %v3262 = vadd.f32 %v3237, %v3246
        %v3263 = vadd.f32 %v3238, %v3247
        %v3264 = vadd.f32 %v3239, %v3248
        %v3265 = vadd.f32 %v3240, %v3249
        %v3266 = vadd.f32 %v3241, %v3250
        %v3267 = vadd.f32 %v3242, %v3251
        %v3268 = vadd.f32 %v3243, %v3252
        %v3269 = vrot.slane %v3217, 6
        %v3271 = vrot.slane %v3269, 1
        %v3272 = vrot.slane %v3269, 2
        %v3273 = vrot.slane %v3269, 3
        %v3274 = vrot.slane %v3269, 4
        %v3275 = vrot.slane %v3269, 5
        %v3276 = vrot.slane %v3269, 6
        %v3277 = vrot.slane %v3269, 7
        %v3286 = vadd.f32 %v3261, %v3269
        %v3287 = vadd.f32 %v3262, %v3271
        %v3288 = vadd.f32 %v3263, %v3272
        %v3289 = vadd.f32 %v3264, %v3273
        %v3290 = vadd.f32 %v3265, %v3274
        %v3291 = vadd.f32 %v3266, %v3275
        %v3292 = vadd.f32 %v3267, %v3276
        %v3293 = vadd.f32 %v3268, %v3277
        %v3294 = vrot.slane %v3217, 2
        %v3296 = vrot.slane %v3294, 1
        %v3297 = vrot.slane %v3294, 2
        %v3298 = vrot.slane %v3294, 3
        %v3299 = vrot.slane %v3294, 4
        %v3300 = vrot.slane %v3294, 5
        %v3301 = vrot.slane %v3294, 6
        %v3302 = vrot.slane %v3294, 7
        %v3311 = vadd.f32 %v3286, %v3294
        %v3312 = vadd.f32 %v3287, %v3296
        %v3313 = vadd.f32 %v3288, %v3297
        %v3314 = vadd.f32 %v3289, %v3298
        %v3315 = vadd.f32 %v3290, %v3299
        %v3316 = vadd.f32 %v3291, %v3300
        %v3317 = vadd.f32 %v3292, %v3301
        %v3318 = vadd.f32 %v3293, %v3302
        %v3319 = vadd.f32 %v3189, %v3190
        %v3320 = vsub.f32 %v3319, %v3195
        %v3321 = vsub.f32 %v3320, %v3194
        %v3322 = vlaneseq
        %v3323 = vshrl.u32 %v3322, 7
        %v3324 = vsub.s32 0, %v3323
        %v3325 = vrot.slane %v3321, %v3324
        %v3326 = vsel %vm903, %v3325, 0.0
        %v3328 = vrot.slane %v3326, 1
        %v3329 = vrot.slane %v3326, 2
        %v3330 = vrot.slane %v3326, 3
        %v3331 = vrot.slane %v3326, 4
        %v3332 = vrot.slane %v3326, 5
        %v3333 = vrot.slane %v3326, 6
        %v3334 = vrot.slane %v3326, 7
        %v3343 = vadd.f32 %v3311, %v3326
        %v3344 = vadd.f32 %v3312, %v3328
        %v3345 = vadd.f32 %v3313, %v3329
        %v3346 = vadd.f32 %v3314, %v3330
        %v3347 = vadd.f32 %v3315, %v3331
        %v3348 = vadd.f32 %v3316, %v3332
        %v3349 = vadd.f32 %v3317, %v3333
        %v3350 = vadd.f32 %v3318, %v3334
        %v3351 = vsub.f32 %v3189, %v3195
        %v3352 = vlaneseq
        %v3353 = vshrl.u32 %v3352, 7
        %v3354 = vsub.s32 0, %v3353
        %v3355 = vrot.slane %v3351, %v3354
        %v3356 = vsel %vm1050, %v3355, 0.0
        %v3358 = vrot.slane %v3356, 1
        %v3359 = vrot.slane %v3356, 2
        %v3360 = vrot.slane %v3356, 3
        %v3361 = vrot.slane %v3356, 4
        %v3362 = vrot.slane %v3356, 5
        %v3363 = vrot.slane %v3356, 6
        %v3364 = vrot.slane %v3356, 7
        %v3373 = vadd.f32 %v3343, %v3356
        %v3374 = vadd.f32 %v3344, %v3358
        %v3375 = vadd.f32 %v3345, %v3359
        %v3376 = vadd.f32 %v3346, %v3360
        %v3377 = vadd.f32 %v3347, %v3361
        %v3378 = vadd.f32 %v3348, %v3362
        %v3379 = vadd.f32 %v3349, %v3363
        %v3380 = vadd.f32 %v3350, %v3364
        %v3381 = vsub.f32 %v3194, %v3188
        %v3382 = vlaneseq
        %v3383 = vshrl.u32 %v3382, 7
        %v3384 = vsub.s32 0, %v3383
        %v3385 = vrot.slane %v3381, %v3384
        %v3386 = vsel %vm1193, %v3385, 0.0
        %v3388 = vrot.slane %v3386, 1
        %v3389 = vrot.slane %v3386, 2
        %v3390 = vrot.slane %v3386, 3
        %v3391 = vrot.slane %v3386, 4
        %v3392 = vrot.slane %v3386, 5
        %v3393 = vrot.slane %v3386, 6
        %v3394 = vrot.slane %v3386, 7
        %v3403 = vadd.f32 %v3373, %v3386
        %v3404 = vadd.f32 %v3374, %v3388
        %v3405 = vadd.f32 %v3375, %v3389
        %v3406 = vadd.f32 %v3376, %v3390
        %v3407 = vadd.f32 %v3377, %v3391
        %v3408 = vadd.f32 %v3378, %v3392
        %v3409 = vadd.f32 %v3379, %v3393
        %v3410 = vadd.f32 %v3380, %v3394
        %v3411 = vadd.f32 %v3194, %v3193
        %v3412 = vsub.f32 %v3411, %v3188
        %v3413 = vsub.f32 %v3412, %v3189
        %v3414 = vlaneseq
        %v3415 = vshrl.u32 %v3414, 7
        %v3416 = vsub.s32 0, %v3415
        %v3417 = vrot.slane %v3413, %v3416
        %v3418 = vsel %vm1336, %v3417, 0.0
        %v3420 = vrot.slane %v3418, 1
        %v3421 = vrot.slane %v3418, 2
        %v3422 = vrot.slane %v3418, 3
        %v3423 = vrot.slane %v3418, 4
        %v3424 = vrot.slane %v3418, 5
        %v3425 = vrot.slane %v3418, 6
        %v3426 = vrot.slane %v3418, 7
        %v3435 = vadd.f32 %v3403, %v3418
        %v3436 = vadd.f32 %v3404, %v3420
        %v3437 = vadd.f32 %v3405, %v3421
        %v3438 = vadd.f32 %v3406, %v3422
        %v3439 = vadd.f32 %v3407, %v3423
        %v3440 = vadd.f32 %v3408, %v3424
        %v3441 = vadd.f32 %v3409, %v3425
        %v3442 = vadd.f32 %v3410, %v3426
        %v3451 = vrot.slane %v3436, 7
        %v3452 = vsel %vm398, %v3451, %v3435
        %v3453 = vrot.slane %v3437, 6
        %v3454 = vsel %vm400, %v3453, %v3452
        %v3455 = vrot.slane %v3438, 5
        %v3456 = vsel %vm402, %v3455, %v3454
        %v3457 = vrot.slane %v3439, 4
        %v3458 = vsel %vm404, %v3457, %v3456
        %v3459 = vrot.slane %v3440, 3
        %v3460 = vsel %vm406, %v3459, %v3458
        %v3461 = vrot.slane %v3441, 2
        %v3462 = vsel %vm408, %v3461, %v3460
        %v3463 = vrot.slane %v3442, 1
        %v3464 = vsel %vm410, %v3463, %v3462
        %3466 = vrot.lane.b32.xlu0 %v3464, 16
        %v3467 = vpop.permute.xlu0 %3466
        %v3468 = vsel %vm1627, %v3467, %v3464
        %3469 = vrot.lane.b32.xlu0 %v3468, 16
        %v3470 = vpop.permute.xlu0 %3469
        %v3471 = vsel %vm1627, %v3470, %v3464
        %v3473 = vrot.slane %v3471, 1
        %v3474 = vrot.slane %v3471, 2
        %v3475 = vrot.slane %v3471, 3
        %v3476 = vrot.slane %v3471, 4
        %v3477 = vrot.slane %v3471, 5
        %v3478 = vrot.slane %v3471, 6
        %v3479 = vrot.slane %v3471, 7
        %3480 = vrot.lane.b32.xlu0 %v3471, 113
        %v3481 = vpop.permute.xlu0 %3480
        %3482 = vrot.lane.b32.xlu0 %v3473, 113
        %v3483 = vpop.permute.xlu0 %3482
        %3484 = vrot.lane.b32.xlu0 %v3474, 113
        %v3485 = vpop.permute.xlu0 %3484
        %3486 = vrot.lane.b32.xlu0 %v3475, 113
        %v3487 = vpop.permute.xlu0 %3486
        %3488 = vrot.lane.b32.xlu0 %v3476, 113
        %v3489 = vpop.permute.xlu0 %3488
        %3490 = vrot.lane.b32.xlu0 %v3477, 113
        %v3491 = vpop.permute.xlu0 %3490
        %3492 = vrot.lane.b32.xlu0 %v3478, 113
        %v3493 = vpop.permute.xlu0 %3492
        %3494 = vrot.lane.b32.xlu0 %v3479, 113
        %v3495 = vpop.permute.xlu0 %3494
        %v3504 = vadd.f32 %v3435, %v3481
        %v3505 = vadd.f32 %v3436, %v3483
        %v3506 = vadd.f32 %v3437, %v3485
        %v3507 = vadd.f32 %v3438, %v3487
        %v3508 = vadd.f32 %v3439, %v3489
        %v3509 = vadd.f32 %v3440, %v3491
        %v3510 = vadd.f32 %v3441, %v3493
        %v3511 = vadd.f32 %v3442, %v3495
        %3512 = vrot.lane.b32.xlu0 %v3471, 127
        %v3513 = vpop.permute.xlu0 %3512
        %3514 = vrot.lane.b32.xlu0 %v3473, 127
        %v3515 = vpop.permute.xlu0 %3514
        %3516 = vrot.lane.b32.xlu0 %v3474, 127
        %v3517 = vpop.permute.xlu0 %3516
        %3518 = vrot.lane.b32.xlu0 %v3475, 127
        %v3519 = vpop.permute.xlu0 %3518
        %3520 = vrot.lane.b32.xlu0 %v3476, 127
        %v3521 = vpop.permute.xlu0 %3520
        %3522 = vrot.lane.b32.xlu0 %v3477, 127
        %v3523 = vpop.permute.xlu0 %3522
        %3524 = vrot.lane.b32.xlu0 %v3478, 127
        %v3525 = vpop.permute.xlu0 %3524
        %3526 = vrot.lane.b32.xlu0 %v3479, 127
        %v3527 = vpop.permute.xlu0 %3526
        %v3536 = vadd.f32 %v3504, %v3513
        %v3537 = vadd.f32 %v3505, %v3515
        %v3538 = vadd.f32 %v3506, %v3517
        %v3539 = vadd.f32 %v3507, %v3519
        %v3540 = vadd.f32 %v3508, %v3521
        %v3541 = vadd.f32 %v3509, %v3523
        %v3542 = vadd.f32 %v3510, %v3525
        %v3543 = vadd.f32 %v3511, %v3527
        %3544 = vrot.lane.b32.xlu0 %v3471, 114
        %v3545 = vpop.permute.xlu0 %3544
        %3546 = vrot.lane.b32.xlu0 %v3473, 114
        %v3547 = vpop.permute.xlu0 %3546
        %3548 = vrot.lane.b32.xlu0 %v3474, 114
        %v3549 = vpop.permute.xlu0 %3548
        %3550 = vrot.lane.b32.xlu0 %v3475, 114
        %v3551 = vpop.permute.xlu0 %3550
        %3552 = vrot.lane.b32.xlu0 %v3476, 114
        %v3553 = vpop.permute.xlu0 %3552
        %3554 = vrot.lane.b32.xlu0 %v3477, 114
        %v3555 = vpop.permute.xlu0 %3554
        %3556 = vrot.lane.b32.xlu0 %v3478, 114
        %v3557 = vpop.permute.xlu0 %3556
        %3558 = vrot.lane.b32.xlu0 %v3479, 114
        %v3559 = vpop.permute.xlu0 %3558
        %v3568 = vadd.f32 %v3536, %v3545
        %v3569 = vadd.f32 %v3537, %v3547
        %v3570 = vadd.f32 %v3538, %v3549
        %v3571 = vadd.f32 %v3539, %v3551
        %v3572 = vadd.f32 %v3540, %v3553
        %v3573 = vadd.f32 %v3541, %v3555
        %v3574 = vadd.f32 %v3542, %v3557
        %v3575 = vadd.f32 %v3543, %v3559
        %3576 = vrot.lane.b32.xlu0 %v3471, 126
        %v3577 = vpop.permute.xlu0 %3576
        %3578 = vrot.lane.b32.xlu0 %v3473, 126
        %v3579 = vpop.permute.xlu0 %3578
        %3580 = vrot.lane.b32.xlu0 %v3474, 126
        %v3581 = vpop.permute.xlu0 %3580
        %3582 = vrot.lane.b32.xlu0 %v3475, 126
        %v3583 = vpop.permute.xlu0 %3582
        %3584 = vrot.lane.b32.xlu0 %v3476, 126
        %v3585 = vpop.permute.xlu0 %3584
        %3586 = vrot.lane.b32.xlu0 %v3477, 126
        %v3587 = vpop.permute.xlu0 %3586
        %3588 = vrot.lane.b32.xlu0 %v3478, 126
        %v3589 = vpop.permute.xlu0 %3588
        %3590 = vrot.lane.b32.xlu0 %v3479, 126
        %v3591 = vpop.permute.xlu0 %3590
        %v3600 = vadd.f32 %v3568, %v3577
        %v3601 = vadd.f32 %v3569, %v3579
        %v3602 = vadd.f32 %v3570, %v3581
        %v3603 = vadd.f32 %v3571, %v3583
        %v3604 = vadd.f32 %v3572, %v3585
        %v3605 = vadd.f32 %v3573, %v3587
        %v3606 = vadd.f32 %v3574, %v3589
        %v3607 = vadd.f32 %v3575, %v3591
        %3608 = vrot.lane.b32.xlu0 %v3435, 127
        %v3609 = vpop.permute.xlu0 %3608
        %3610 = vrot.lane.b32.xlu0 %v3436, 127
        %v3611 = vpop.permute.xlu0 %3610
        %3612 = vrot.lane.b32.xlu0 %v3437, 127
        %v3613 = vpop.permute.xlu0 %3612
        %3614 = vrot.lane.b32.xlu0 %v3438, 127
        %v3615 = vpop.permute.xlu0 %3614
        %3616 = vrot.lane.b32.xlu0 %v3439, 127
        %v3617 = vpop.permute.xlu0 %3616
        %3618 = vrot.lane.b32.xlu0 %v3440, 127
        %v3619 = vpop.permute.xlu0 %3618
        %3620 = vrot.lane.b32.xlu0 %v3441, 127
        %v3621 = vpop.permute.xlu0 %3620
        %3622 = vrot.lane.b32.xlu0 %v3442, 127
        %v3623 = vpop.permute.xlu0 %3622
        %v3632 = vadd.f32 %v3435, %v3609
        %v3633 = vadd.f32 %v3436, %v3611
        %v3634 = vadd.f32 %v3437, %v3613
        %v3635 = vadd.f32 %v3438, %v3615
        %v3636 = vadd.f32 %v3439, %v3617
        %v3637 = vadd.f32 %v3440, %v3619
        %v3638 = vadd.f32 %v3441, %v3621
        %v3639 = vadd.f32 %v3442, %v3623
        %3640 = vrot.lane.b32.xlu0 %v3435, 114
        %v3641 = vpop.permute.xlu0 %3640
        %3642 = vrot.lane.b32.xlu0 %v3436, 114
        %v3643 = vpop.permute.xlu0 %3642
        %3644 = vrot.lane.b32.xlu0 %v3437, 114
        %v3645 = vpop.permute.xlu0 %3644
        %3646 = vrot.lane.b32.xlu0 %v3438, 114
        %v3647 = vpop.permute.xlu0 %3646
        %3648 = vrot.lane.b32.xlu0 %v3439, 114
        %v3649 = vpop.permute.xlu0 %3648
        %3650 = vrot.lane.b32.xlu0 %v3440, 114
        %v3651 = vpop.permute.xlu0 %3650
        %3652 = vrot.lane.b32.xlu0 %v3441, 114
        %v3653 = vpop.permute.xlu0 %3652
        %3654 = vrot.lane.b32.xlu0 %v3442, 114
        %v3655 = vpop.permute.xlu0 %3654
        %v3664 = vsub.f32 %v3632, %v3641
        %v3665 = vsub.f32 %v3633, %v3643
        %v3666 = vsub.f32 %v3634, %v3645
        %v3667 = vsub.f32 %v3635, %v3647
        %v3668 = vsub.f32 %v3636, %v3649
        %v3669 = vsub.f32 %v3637, %v3651
        %v3670 = vsub.f32 %v3638, %v3653
        %v3671 = vsub.f32 %v3639, %v3655
        %3672 = vrot.lane.b32.xlu0 %v3435, 115
        %v3673 = vpop.permute.xlu0 %3672
        %3674 = vrot.lane.b32.xlu0 %v3436, 115
        %v3675 = vpop.permute.xlu0 %3674
        %3676 = vrot.lane.b32.xlu0 %v3437, 115
        %v3677 = vpop.permute.xlu0 %3676
        %3678 = vrot.lane.b32.xlu0 %v3438, 115
        %v3679 = vpop.permute.xlu0 %3678
        %3680 = vrot.lane.b32.xlu0 %v3439, 115
        %v3681 = vpop.permute.xlu0 %3680
        %3682 = vrot.lane.b32.xlu0 %v3440, 115
        %v3683 = vpop.permute.xlu0 %3682
        %3684 = vrot.lane.b32.xlu0 %v3441, 115
        %v3685 = vpop.permute.xlu0 %3684
        %3686 = vrot.lane.b32.xlu0 %v3442, 115
        %v3687 = vpop.permute.xlu0 %3686
        %v3696 = vsub.f32 %v3664, %v3673
        %v3697 = vsub.f32 %v3665, %v3675
        %v3698 = vsub.f32 %v3666, %v3677
        %v3699 = vsub.f32 %v3667, %v3679
        %v3700 = vsub.f32 %v3668, %v3681
        %v3701 = vsub.f32 %v3669, %v3683
        %v3702 = vsub.f32 %v3670, %v3685
        %v3703 = vsub.f32 %v3671, %v3687
        %3705 = vset.pattern.permute.xlu0 1
        %3706 = vperm.xlu0 %3705, %v3696
        %v3707 = vpop.permute.xlu0 %3706
        %3709 = vset.pattern.permute.xlu0 1
        %3710 = vperm.xlu0 %3709, %v3697
        %v3711 = vpop.permute.xlu0 %3710
        %3713 = vset.pattern.permute.xlu0 1
        %3714 = vperm.xlu0 %3713, %v3698
        %v3715 = vpop.permute.xlu0 %3714
        %3717 = vset.pattern.permute.xlu0 1
        %3718 = vperm.xlu0 %3717, %v3699
        %v3719 = vpop.permute.xlu0 %3718
        %3721 = vset.pattern.permute.xlu0 1
        %3722 = vperm.xlu0 %3721, %v3700
        %v3723 = vpop.permute.xlu0 %3722
        %3725 = vset.pattern.permute.xlu0 1
        %3726 = vperm.xlu0 %3725, %v3701
        %v3727 = vpop.permute.xlu0 %3726
        %3729 = vset.pattern.permute.xlu0 1
        %3730 = vperm.xlu0 %3729, %v3702
        %v3731 = vpop.permute.xlu0 %3730
        %3733 = vset.pattern.permute.xlu0 1
        %3734 = vperm.xlu0 %3733, %v3703
        %v3735 = vpop.permute.xlu0 %3734
        %v3736 = vrot.slane %v3711, 7
        %v3737 = vsel %vm398, %v3736, %v3707
        %v3738 = vrot.slane %v3715, 6
        %v3739 = vsel %vm400, %v3738, %v3737
        %v3740 = vrot.slane %v3719, 5
        %v3741 = vsel %vm402, %v3740, %v3739
        %v3742 = vrot.slane %v3723, 4
        %v3743 = vsel %vm404, %v3742, %v3741
        %v3744 = vrot.slane %v3727, 3
        %v3745 = vsel %vm406, %v3744, %v3743
        %v3746 = vrot.slane %v3731, 2
        %v3747 = vsel %vm408, %v3746, %v3745
        %v3748 = vrot.slane %v3735, 1
        %v3749 = vsel %vm410, %v3748, %v3747
        %v3751 = vsel %vm2051, %v3749, 0.0
        %v3753 = vrot.slane %v3751, 1
        %v3754 = vrot.slane %v3751, 2
        %v3755 = vrot.slane %v3751, 3
        %v3756 = vrot.slane %v3751, 4
        %v3757 = vrot.slane %v3751, 5
        %v3758 = vrot.slane %v3751, 6
        %v3759 = vrot.slane %v3751, 7
        %v3768 = vadd.f32 %v3600, %v3751
        %v3769 = vadd.f32 %v3601, %v3753
        %v3770 = vadd.f32 %v3602, %v3754
        %v3771 = vadd.f32 %v3603, %v3755
        %v3772 = vadd.f32 %v3604, %v3756
        %v3773 = vadd.f32 %v3605, %v3757
        %v3774 = vadd.f32 %v3606, %v3758
        %v3775 = vadd.f32 %v3607, %v3759
        %v3776 = vsub.f32 %v3435, %v3641
        %v3777 = vsub.f32 %v3436, %v3643
        %v3778 = vsub.f32 %v3437, %v3645
        %v3779 = vsub.f32 %v3438, %v3647
        %v3780 = vsub.f32 %v3439, %v3649
        %v3781 = vsub.f32 %v3440, %v3651
        %v3782 = vsub.f32 %v3441, %v3653
        %v3783 = vsub.f32 %v3442, %v3655
        %3785 = vset.pattern.permute.xlu0 1
        %3786 = vperm.xlu0 %3785, %v3776
        %v3787 = vpop.permute.xlu0 %3786
        %3789 = vset.pattern.permute.xlu0 1
        %3790 = vperm.xlu0 %3789, %v3777
        %v3791 = vpop.permute.xlu0 %3790
        %3793 = vset.pattern.permute.xlu0 1
        %3794 = vperm.xlu0 %3793, %v3778
        %v3795 = vpop.permute.xlu0 %3794
        %3797 = vset.pattern.permute.xlu0 1
        %3798 = vperm.xlu0 %3797, %v3779
        %v3799 = vpop.permute.xlu0 %3798
        %3801 = vset.pattern.permute.xlu0 1
        %3802 = vperm.xlu0 %3801, %v3780
        %v3803 = vpop.permute.xlu0 %3802
        %3805 = vset.pattern.permute.xlu0 1
        %3806 = vperm.xlu0 %3805, %v3781
        %v3807 = vpop.permute.xlu0 %3806
        %3809 = vset.pattern.permute.xlu0 1
        %3810 = vperm.xlu0 %3809, %v3782
        %v3811 = vpop.permute.xlu0 %3810
        %3813 = vset.pattern.permute.xlu0 1
        %3814 = vperm.xlu0 %3813, %v3783
        %v3815 = vpop.permute.xlu0 %3814
        %v3816 = vrot.slane %v3791, 7
        %v3817 = vsel %vm398, %v3816, %v3787
        %v3818 = vrot.slane %v3795, 6
        %v3819 = vsel %vm400, %v3818, %v3817
        %v3820 = vrot.slane %v3799, 5
        %v3821 = vsel %vm402, %v3820, %v3819
        %v3822 = vrot.slane %v3803, 4
        %v3823 = vsel %vm404, %v3822, %v3821
        %v3824 = vrot.slane %v3807, 3
        %v3825 = vsel %vm406, %v3824, %v3823
        %v3826 = vrot.slane %v3811, 2
        %v3827 = vsel %vm408, %v3826, %v3825
        %v3828 = vrot.slane %v3815, 1
        %v3829 = vsel %vm410, %v3828, %v3827
        %v3831 = vsel %vm2318, %v3829, 0.0
        %v3833 = vrot.slane %v3831, 1
        %v3834 = vrot.slane %v3831, 2
        %v3835 = vrot.slane %v3831, 3
        %v3836 = vrot.slane %v3831, 4
        %v3837 = vrot.slane %v3831, 5
        %v3838 = vrot.slane %v3831, 6
        %v3839 = vrot.slane %v3831, 7
        %v3848 = vadd.f32 %v3768, %v3831
        %v3849 = vadd.f32 %v3769, %v3833
        %v3850 = vadd.f32 %v3770, %v3834
        %v3851 = vadd.f32 %v3771, %v3835
        %v3852 = vadd.f32 %v3772, %v3836
        %v3853 = vadd.f32 %v3773, %v3837
        %v3854 = vadd.f32 %v3774, %v3838
        %v3855 = vadd.f32 %v3775, %v3839
        %3856 = vrot.lane.b32.xlu0 %v3435, 14
        %v3857 = vpop.permute.xlu0 %3856
        %3858 = vrot.lane.b32.xlu0 %v3436, 14
        %v3859 = vpop.permute.xlu0 %3858
        %3860 = vrot.lane.b32.xlu0 %v3437, 14
        %v3861 = vpop.permute.xlu0 %3860
        %3862 = vrot.lane.b32.xlu0 %v3438, 14
        %v3863 = vpop.permute.xlu0 %3862
        %3864 = vrot.lane.b32.xlu0 %v3439, 14
        %v3865 = vpop.permute.xlu0 %3864
        %3866 = vrot.lane.b32.xlu0 %v3440, 14
        %v3867 = vpop.permute.xlu0 %3866
        %3868 = vrot.lane.b32.xlu0 %v3441, 14
        %v3869 = vpop.permute.xlu0 %3868
        %3870 = vrot.lane.b32.xlu0 %v3442, 14
        %v3871 = vpop.permute.xlu0 %3870
        %v3880 = vsub.f32 %v3435, %v3857
        %v3881 = vsub.f32 %v3436, %v3859
        %v3882 = vsub.f32 %v3437, %v3861
        %v3883 = vsub.f32 %v3438, %v3863
        %v3884 = vsub.f32 %v3439, %v3865
        %v3885 = vsub.f32 %v3440, %v3867
        %v3886 = vsub.f32 %v3441, %v3869
        %v3887 = vsub.f32 %v3442, %v3871
        %3889 = vset.pattern.permute.xlu0 14
        %3890 = vperm.xlu0 %3889, %v3880
        %v3891 = vpop.permute.xlu0 %3890
        %3893 = vset.pattern.permute.xlu0 14
        %3894 = vperm.xlu0 %3893, %v3881
        %v3895 = vpop.permute.xlu0 %3894
        %3897 = vset.pattern.permute.xlu0 14
        %3898 = vperm.xlu0 %3897, %v3882
        %v3899 = vpop.permute.xlu0 %3898
        %3901 = vset.pattern.permute.xlu0 14
        %3902 = vperm.xlu0 %3901, %v3883
        %v3903 = vpop.permute.xlu0 %3902
        %3905 = vset.pattern.permute.xlu0 14
        %3906 = vperm.xlu0 %3905, %v3884
        %v3907 = vpop.permute.xlu0 %3906
        %3909 = vset.pattern.permute.xlu0 14
        %3910 = vperm.xlu0 %3909, %v3885
        %v3911 = vpop.permute.xlu0 %3910
        %3913 = vset.pattern.permute.xlu0 14
        %3914 = vperm.xlu0 %3913, %v3886
        %v3915 = vpop.permute.xlu0 %3914
        %3917 = vset.pattern.permute.xlu0 14
        %3918 = vperm.xlu0 %3917, %v3887
        %v3919 = vpop.permute.xlu0 %3918
        %v3920 = vrot.slane %v3895, 7
        %v3921 = vsel %vm398, %v3920, %v3891
        %v3922 = vrot.slane %v3899, 6
        %v3923 = vsel %vm400, %v3922, %v3921
        %v3924 = vrot.slane %v3903, 5
        %v3925 = vsel %vm402, %v3924, %v3923
        %v3926 = vrot.slane %v3907, 4
        %v3927 = vsel %vm404, %v3926, %v3925
        %v3928 = vrot.slane %v3911, 3
        %v3929 = vsel %vm406, %v3928, %v3927
        %v3930 = vrot.slane %v3915, 2
        %v3931 = vsel %vm408, %v3930, %v3929
        %v3932 = vrot.slane %v3919, 1
        %v3933 = vsel %vm410, %v3932, %v3931
        %v3935 = vsel %vm2521, %v3933, 0.0
        %v3937 = vrot.slane %v3935, 1
        %v3938 = vrot.slane %v3935, 2
        %v3939 = vrot.slane %v3935, 3
        %v3940 = vrot.slane %v3935, 4
        %v3941 = vrot.slane %v3935, 5
        %v3942 = vrot.slane %v3935, 6
        %v3943 = vrot.slane %v3935, 7
        %v3952 = vadd.f32 %v3848, %v3935
        %v3953 = vadd.f32 %v3849, %v3937
        %v3954 = vadd.f32 %v3850, %v3938
        %v3955 = vadd.f32 %v3851, %v3939
        %v3956 = vadd.f32 %v3852, %v3940
        %v3957 = vadd.f32 %v3853, %v3941
        %v3958 = vadd.f32 %v3854, %v3942
        %v3959 = vadd.f32 %v3855, %v3943
        %3960 = vrot.lane.b32.xlu0 %v3435, 1
        %v3961 = vpop.permute.xlu0 %3960
        %3962 = vrot.lane.b32.xlu0 %v3436, 1
        %v3963 = vpop.permute.xlu0 %3962
        %3964 = vrot.lane.b32.xlu0 %v3437, 1
        %v3965 = vpop.permute.xlu0 %3964
        %3966 = vrot.lane.b32.xlu0 %v3438, 1
        %v3967 = vpop.permute.xlu0 %3966
        %3968 = vrot.lane.b32.xlu0 %v3439, 1
        %v3969 = vpop.permute.xlu0 %3968
        %3970 = vrot.lane.b32.xlu0 %v3440, 1
        %v3971 = vpop.permute.xlu0 %3970
        %3972 = vrot.lane.b32.xlu0 %v3441, 1
        %v3973 = vpop.permute.xlu0 %3972
        %3974 = vrot.lane.b32.xlu0 %v3442, 1
        %v3975 = vpop.permute.xlu0 %3974
        %v3984 = vadd.f32 %v3435, %v3961
        %v3985 = vadd.f32 %v3436, %v3963
        %v3986 = vadd.f32 %v3437, %v3965
        %v3987 = vadd.f32 %v3438, %v3967
        %v3988 = vadd.f32 %v3439, %v3969
        %v3989 = vadd.f32 %v3440, %v3971
        %v3990 = vadd.f32 %v3441, %v3973
        %v3991 = vadd.f32 %v3442, %v3975
        %v3992 = vsub.f32 %v3984, %v3857
        %v3993 = vsub.f32 %v3985, %v3859
        %v3994 = vsub.f32 %v3986, %v3861
        %v3995 = vsub.f32 %v3987, %v3863
        %v3996 = vsub.f32 %v3988, %v3865
        %v3997 = vsub.f32 %v3989, %v3867
        %v3998 = vsub.f32 %v3990, %v3869
        %v3999 = vsub.f32 %v3991, %v3871
        %4000 = vrot.lane.b32.xlu0 %v3435, 13
        %v4001 = vpop.permute.xlu0 %4000
        %4002 = vrot.lane.b32.xlu0 %v3436, 13
        %v4003 = vpop.permute.xlu0 %4002
        %4004 = vrot.lane.b32.xlu0 %v3437, 13
        %v4005 = vpop.permute.xlu0 %4004
        %4006 = vrot.lane.b32.xlu0 %v3438, 13
        %v4007 = vpop.permute.xlu0 %4006
        %4008 = vrot.lane.b32.xlu0 %v3439, 13
        %v4009 = vpop.permute.xlu0 %4008
        %4010 = vrot.lane.b32.xlu0 %v3440, 13
        %v4011 = vpop.permute.xlu0 %4010
        %4012 = vrot.lane.b32.xlu0 %v3441, 13
        %v4013 = vpop.permute.xlu0 %4012
        %4014 = vrot.lane.b32.xlu0 %v3442, 13
        %v4015 = vpop.permute.xlu0 %4014
        %v4024 = vsub.f32 %v3992, %v4001
        %v4025 = vsub.f32 %v3993, %v4003
        %v4026 = vsub.f32 %v3994, %v4005
        %v4027 = vsub.f32 %v3995, %v4007
        %v4028 = vsub.f32 %v3996, %v4009
        %v4029 = vsub.f32 %v3997, %v4011
        %v4030 = vsub.f32 %v3998, %v4013
        %v4031 = vsub.f32 %v3999, %v4015
        %4033 = vset.pattern.permute.xlu0 14
        %4034 = vperm.xlu0 %4033, %v4024
        %v4035 = vpop.permute.xlu0 %4034
        %4037 = vset.pattern.permute.xlu0 14
        %4038 = vperm.xlu0 %4037, %v4025
        %v4039 = vpop.permute.xlu0 %4038
        %4041 = vset.pattern.permute.xlu0 14
        %4042 = vperm.xlu0 %4041, %v4026
        %v4043 = vpop.permute.xlu0 %4042
        %4045 = vset.pattern.permute.xlu0 14
        %4046 = vperm.xlu0 %4045, %v4027
        %v4047 = vpop.permute.xlu0 %4046
        %4049 = vset.pattern.permute.xlu0 14
        %4050 = vperm.xlu0 %4049, %v4028
        %v4051 = vpop.permute.xlu0 %4050
        %4053 = vset.pattern.permute.xlu0 14
        %4054 = vperm.xlu0 %4053, %v4029
        %v4055 = vpop.permute.xlu0 %4054
        %4057 = vset.pattern.permute.xlu0 14
        %4058 = vperm.xlu0 %4057, %v4030
        %v4059 = vpop.permute.xlu0 %4058
        %4061 = vset.pattern.permute.xlu0 14
        %4062 = vperm.xlu0 %4061, %v4031
        %v4063 = vpop.permute.xlu0 %4062
        %v4064 = vrot.slane %v4039, 7
        %v4065 = vsel %vm398, %v4064, %v4035
        %v4066 = vrot.slane %v4043, 6
        %v4067 = vsel %vm400, %v4066, %v4065
        %v4068 = vrot.slane %v4047, 5
        %v4069 = vsel %vm402, %v4068, %v4067
        %v4070 = vrot.slane %v4051, 4
        %v4071 = vsel %vm404, %v4070, %v4069
        %v4072 = vrot.slane %v4055, 3
        %v4073 = vsel %vm406, %v4072, %v4071
        %v4074 = vrot.slane %v4059, 2
        %v4075 = vsel %vm408, %v4074, %v4073
        %v4076 = vrot.slane %v4063, 1
        %v4077 = vsel %vm410, %v4076, %v4075
        %v4079 = vsel %vm2740, %v4077, 0.0
        %v4081 = vrot.slane %v4079, 1
        %v4082 = vrot.slane %v4079, 2
        %v4083 = vrot.slane %v4079, 3
        %v4084 = vrot.slane %v4079, 4
        %v4085 = vrot.slane %v4079, 5
        %v4086 = vrot.slane %v4079, 6
        %v4087 = vrot.slane %v4079, 7
        %v4096 = vadd.f32 %v3952, %v4079
        %v4097 = vadd.f32 %v3953, %v4081
        %v4098 = vadd.f32 %v3954, %v4082
        %v4099 = vadd.f32 %v3955, %v4083
        %v4100 = vadd.f32 %v3956, %v4084
        %v4101 = vadd.f32 %v3957, %v4085
        %v4102 = vadd.f32 %v3958, %v4086
        %v4103 = vadd.f32 %v3959, %v4087
        %v4104 = vmul.f32 %v4096, 0.04
        %v4105 = vmul.f32 %v4097, 0.04
        %v4106 = vmul.f32 %v4098, 0.04
        %v4107 = vmul.f32 %v4099, 0.04
        %v4108 = vmul.f32 %v4100, 0.04
        %v4109 = vmul.f32 %v4101, 0.04
        %v4110 = vmul.f32 %v4102, 0.04
        %v4111 = vmul.f32 %v4103, 0.04
        %v4112 = vsub.f32 %v3188, %v4104
        %v4113 = vsub.f32 %v3189, %v4105
        %v4114 = vsub.f32 %v3190, %v4106
        %v4115 = vsub.f32 %v3191, %v4107
        %v4116 = vsub.f32 %v3192, %v4108
        %v4117 = vsub.f32 %v3193, %v4109
        %v4118 = vsub.f32 %v3194, %v4110
        %v4119 = vsub.f32 %v3195, %v4111
        %v4136 = vsub.f32 %v161, %v3041
        %v4137 = vsub.f32 %v162, %v3044
        %v4138 = vsub.f32 %v163, %v3047
        %v4139 = vsub.f32 %v164, %v3050
        %v4140 = vsub.f32 %v165, %v3053
        %v4141 = vsub.f32 %v166, %v3056
        %v4142 = vsub.f32 %v167, %v3059
        %v4143 = vsub.f32 %v168, %v3062
        %v4144 = vsub.f32 %v169, %v3065
        %v4145 = vsub.f32 %v170, %v3068
        %v4146 = vsub.f32 %v171, %v3071
        %v4147 = vsub.f32 %v172, %v3074
        %v4148 = vsub.f32 %v173, %v3077
        %v4149 = vsub.f32 %v174, %v3080
        %v4150 = vsub.f32 %v175, %v3083
        %v4151 = vsub.f32 %v176, %v3086
        %v4152 = vlaneseq
        %v4153 = vshrl.u32 %v4152, 7
        %v4154 = vsub.s32 0, %v4153
        %v4155 = vrot.slane %v4112, %v4154
        %v4156 = vlaneseq
        %v4157 = vshrl.u32 %v4156, 7
        %v4158 = vsub.s32 0, %v4157
        %v4159 = vrot.slane %v4113, %v4158
        %v4160 = vlaneseq
        %v4161 = vshrl.u32 %v4160, 7
        %v4162 = vsub.s32 0, %v4161
        %v4163 = vrot.slane %v4114, %v4162
        %v4164 = vlaneseq
        %v4165 = vshrl.u32 %v4164, 7
        %v4166 = vsub.s32 0, %v4165
        %v4167 = vrot.slane %v4115, %v4166
        %v4168 = vlaneseq
        %v4169 = vshrl.u32 %v4168, 7
        %v4170 = vsub.s32 0, %v4169
        %v4171 = vrot.slane %v4116, %v4170
        %v4172 = vlaneseq
        %v4173 = vshrl.u32 %v4172, 7
        %v4174 = vsub.s32 0, %v4173
        %v4175 = vrot.slane %v4117, %v4174
        %v4176 = vlaneseq
        %v4177 = vshrl.u32 %v4176, 7
        %v4178 = vsub.s32 0, %v4177
        %v4179 = vrot.slane %v4118, %v4178
        %v4180 = vlaneseq
        %v4181 = vshrl.u32 %v4180, 7
        %v4182 = vsub.s32 0, %v4181
        %v4183 = vrot.slane %v4119, %v4182
        %v4184 = vsub.f32 %v4136, %v4155
        %v4185 = vsub.f32 %v4137, %v4155
        %v4186 = vsub.f32 %v4138, %v4159
        %v4187 = vsub.f32 %v4139, %v4159
        %v4188 = vsub.f32 %v4140, %v4163
        %v4189 = vsub.f32 %v4141, %v4163
        %v4190 = vsub.f32 %v4142, %v4167
        %v4191 = vsub.f32 %v4143, %v4167
        %v4192 = vsub.f32 %v4144, %v4171
        %v4193 = vsub.f32 %v4145, %v4171
        %v4194 = vsub.f32 %v4146, %v4175
        %v4195 = vsub.f32 %v4147, %v4175
        %v4196 = vsub.f32 %v4148, %v4179
        %v4197 = vsub.f32 %v4149, %v4179
        %v4198 = vsub.f32 %v4150, %v4183
        %v4199 = vsub.f32 %v4151, %v4183
        %4200 = vst.msk [vmem:[%s160] sm:$0xff] %vm177, %v4184
        %4201 = vst.msk [vmem:[%s160 + $0x8] sm:$0xff] %vm177, %v4185
        %4202 = vst.msk [vmem:[%s160 + $0x30] sm:$0xff] %vm177, %v4186
        %4203 = vst.msk [vmem:[%s160 + $0x38] sm:$0xff] %vm177, %v4187
        %4204 = vst.msk [vmem:[%s160 + $0x60] sm:$0xff] %vm177, %v4188
        %4205 = vst.msk [vmem:[%s160 + $0x68] sm:$0xff] %vm177, %v4189
        %4206 = vst.msk [vmem:[%s160 + $0x90] sm:$0xff] %vm177, %v4190
        %4207 = vst.msk [vmem:[%s160 + $0x98] sm:$0xff] %vm177, %v4191
        %4208 = vst.msk [vmem:[%s160 + $0xc0] sm:$0xff] %vm177, %v4192
        %4209 = vst.msk [vmem:[%s160 + $0xc8] sm:$0xff] %vm177, %v4193
        %4210 = vst.msk [vmem:[%s160 + $0xf0] sm:$0xff] %vm177, %v4194
        %4211 = vst.msk [vmem:[%s160 + $0xf8] sm:$0xff] %vm177, %v4195
        %4212 = vst.msk [vmem:[%s160 + $0x120] sm:$0xff] %vm177, %v4196
        %4213 = vst.msk [vmem:[%s160 + $0x128] sm:$0xff] %vm177, %v4197
        %4214 = vst.msk [vmem:[%s160 + $0x150] sm:$0xff] %vm177, %v4198
        %4215 = vst.msk [vmem:[%s160 + $0x158] sm:$0xff] %vm177, %v4199
        %s4216 = scalar_lea.vmem %s160, 16 [#allocation5]
        %4217 = vst.msk [vmem:[%s4216] sm:$0xff] %vm177, %v4184
        %4218 = vst.msk [vmem:[%s4216 + $0x8] sm:$0xff] %vm177, %v4185
        %4219 = vst.msk [vmem:[%s4216 + $0x30] sm:$0xff] %vm177, %v4186
        %4220 = vst.msk [vmem:[%s4216 + $0x38] sm:$0xff] %vm177, %v4187
        %4221 = vst.msk [vmem:[%s4216 + $0x60] sm:$0xff] %vm177, %v4188
        %4222 = vst.msk [vmem:[%s4216 + $0x68] sm:$0xff] %vm177, %v4189
        %4223 = vst.msk [vmem:[%s4216 + $0x90] sm:$0xff] %vm177, %v4190
        %4224 = vst.msk [vmem:[%s4216 + $0x98] sm:$0xff] %vm177, %v4191
        %4225 = vst.msk [vmem:[%s4216 + $0xc0] sm:$0xff] %vm177, %v4192
        %4226 = vst.msk [vmem:[%s4216 + $0xc8] sm:$0xff] %vm177, %v4193
        %4227 = vst.msk [vmem:[%s4216 + $0xf0] sm:$0xff] %vm177, %v4194
        %4228 = vst.msk [vmem:[%s4216 + $0xf8] sm:$0xff] %vm177, %v4195
        %4229 = vst.msk [vmem:[%s4216 + $0x120] sm:$0xff] %vm177, %v4196
        %4230 = vst.msk [vmem:[%s4216 + $0x128] sm:$0xff] %vm177, %v4197
        %4231 = vst.msk [vmem:[%s4216 + $0x150] sm:$0xff] %vm177, %v4198
        %4232 = vst.msk [vmem:[%s4216 + $0x158] sm:$0xff] %vm177, %v4199
        %s4233 = scalar_lea.vmem %s160, 32 [#allocation5]
        %4234 = vst.msk [vmem:[%s4233] sm:$0xff] %vm177, %v4184
        %4235 = vst.msk [vmem:[%s4233 + $0x8] sm:$0xff] %vm177, %v4185
        %4236 = vst.msk [vmem:[%s4233 + $0x30] sm:$0xff] %vm177, %v4186
        %4237 = vst.msk [vmem:[%s4233 + $0x38] sm:$0xff] %vm177, %v4187
        %4238 = vst.msk [vmem:[%s4233 + $0x60] sm:$0xff] %vm177, %v4188
        %4239 = vst.msk [vmem:[%s4233 + $0x68] sm:$0xff] %vm177, %v4189
        %4240 = vst.msk [vmem:[%s4233 + $0x90] sm:$0xff] %vm177, %v4190
        %4241 = vst.msk [vmem:[%s4233 + $0x98] sm:$0xff] %vm177, %v4191
        %4242 = vst.msk [vmem:[%s4233 + $0xc0] sm:$0xff] %vm177, %v4192
        %4243 = vst.msk [vmem:[%s4233 + $0xc8] sm:$0xff] %vm177, %v4193
        %4244 = vst.msk [vmem:[%s4233 + $0xf0] sm:$0xff] %vm177, %v4194
        %4245 = vst.msk [vmem:[%s4233 + $0xf8] sm:$0xff] %vm177, %v4195
        %4246 = vst.msk [vmem:[%s4233 + $0x120] sm:$0xff] %vm177, %v4196
        %4247 = vst.msk [vmem:[%s4233 + $0x128] sm:$0xff] %vm177, %v4197
        %4248 = vst.msk [vmem:[%s4233 + $0x150] sm:$0xff] %vm177, %v4198
        %4249 = vst.msk [vmem:[%s4233 + $0x158] sm:$0xff] %vm177, %v4199
        %s4250 = sand.u32 %s52, 1
        %s4251 = scalar_lea.sflag [#allocation4], %s4250
        %s4252 = sand.u32 %s52, 1
        %s4253 = smul.addr %s4252, 384
        %s4254 = scalar_lea.vmem [#allocation5], %s4253
        // Predicated region
        $region29: #{lnpp_rowcol_forward.1} parent=23 // pred_check
          %p4255 = pneg %p62
        $region30: #{lnpp_rowcol_forward.1} parent=23 // pred_check_branch
          %4257 = sbr.rel (%p4255) target = $region32
        $region31: #{lnpp_rowcol_forward.1} parent=23 // pred_region
          %s4259 = ssub.s32 6144, 6144
          %4260 = vsyncadd %s4251, %s4259
          %s4261 = smul.addr %s18, 48
          %s4262 = smul.addr %s4261, 128
          %s4263 = scalar_lea.hbm %s1, %s4262
          %s4264 = sshll.u32 %s4254, 4
          %s4265 = int_to_ptr.vmem [resolvable:$true] %s4264
          %4270 = dma.vmem_to_hbm [thread:$0]  %s4265, 6144, %s4263, %s4251, 128, 128, 8
        $region32: #{lnpp_rowcol_forward.1} parent=23 // pred_fallthru
          _
      $region24: #{lnpp_rowcol_forward.1} parent=5 // pred_fallthru
        _
      %p4271 = scmp.le.s32.totalorder 2, %s13
      // Predicated region
      $region33: #{lnpp_rowcol_forward.1} parent=5 // pred_check
        %p4272 = pneg %p4271
      $region34: #{lnpp_rowcol_forward.1} parent=5 // pred_check_branch
        %4274 = sbr.rel (%p4272) target = $region36
      $region35: #{lnpp_rowcol_forward.1} parent=5 // pred_region
        %s4275 = ssub.s32 %s13, 2
        // Predicated region
        $region37: #{lnpp_rowcol_forward.1} parent=35 // pred_check
          %p4276 = pneg %p68
        $region38: #{lnpp_rowcol_forward.1} parent=35 // pred_check_branch
          %4278 = sbr.rel (%p4276) target = $region40
        $region39: #{lnpp_rowcol_forward.1} parent=35 // pred_region
          %s4279 = sand.u32 %s53, 1
          %s4280 = scalar_lea.sflag [#allocation4], %s4279
          %s4281 = sand.u32 %s53, 1
          %s4282 = smul.addr %s4281, 384
          %s4283 = scalar_lea.vmem [#allocation5], %s4282
          %4284 = dma.done %s4280, 6144
        $region40: #{lnpp_rowcol_forward.1} parent=35 // pred_fallthru
          _
      $region36: #{lnpp_rowcol_forward.1} parent=5 // pred_fallthru
        _
    $region6: #{lnpp_rowcol_forward.1} parent=1 // loop_footer
      %s17 = sadd.s32 1, %s13
    $region7: #{lnpp_rowcol_forward.1} parent=1 // loop_footer_branch
      %12 = sbr.rel target = $region3
    $region8: #{lnpp_rowcol_forward.1} parent=1 // loop_exit
      _
    %4285 = vsyncpa [#allocation3], 1
    %s4286 = scalar_lea.sflag [#allocation3], 1
    %4287 = vsyncpa %s4286, 1
    %4288 = vsyncpa [#allocation4], 1
    %s4289 = scalar_lea.sflag [#allocation4], 1
    %4290 = vsyncpa %s4289, 1

</llo_original>
